<compile_context>
chip_gen: v6e
topology: v6e:2x2x1
jax: 0.10.0
libtpu: 0.0.40
codegen_flags: <defaults>
</compile_context>

<pallas_src>
import jax
import jax.numpy as jnp
from jax import lax
from jax.experimental import pallas as pl
from jax.experimental.pallas import tpu as pltpu


def _round_up(x, m):
    return (x + m - 1) // m * m


def _fold_bn(gamma, beta, mean, var, eps=1e-5):
    scale = gamma / jnp.sqrt(var + eps)
    bias = beta - mean * scale
    return scale.astype(jnp.float32), bias.astype(jnp.float32)


def _make_kernel(TH, W, Cin_p, Cp, has_projection):
    """Build the kernel for a fixed (row-tile, width, padded-channel) config."""
    TWH = (TH + 2) * W   # conv1 rows (tile + 1-row halo each side) * width
    TW = TH * W          # output rows * width

    def kernel(*refs):
        if has_projection:
            (x_ref, w1_ref, sb1_ref, w2_ref, sb2_ref, wsc_ref, sbsc_ref,
             out_ref, acc1_ref, acc2_ref, mid_ref) = refs
        else:
            (x_ref, w1_ref, sb1_ref, w2_ref, sb2_ref,
             out_ref, acc1_ref, acc2_ref, mid_ref) = refs
            wsc_ref = sbsc_ref = None

        h = pl.program_id(1)
        row0 = pl.multiple_of(h * TH, TH)   # top of this tile in padded-x rows

        # ---- conv1: 9 shifted taps, K = Cin_p (>=128), f32 accumulate in VMEM ----
        # conv1 is evaluated for TH + 2 output rows (tile plus one halo row on
        # each side) so conv2 needs no cross-tile communication.
        for kh in range(3):
            for kw in range(3):
                patch = x_ref[pl.ds(row0 + kh, TH + 2), pl.ds(kw, W), :]
                patch = patch.reshape(TWH, Cin_p).astype(jnp.bfloat16)
                contrib = jnp.dot(patch, w1_ref[kh * 3 + kw],
                                  preferred_element_type=jnp.float32)
                if kh == 0 and kw == 0:
                    acc1_ref[...] = contrib
                else:
                    acc1_ref[...] += contrib

        # bn1 + relu, write into the interior of the haloed scratch `mid`.
        out1 = jnp.maximum(acc1_ref[...] * sb1_ref[0:1, :] + sb1_ref[1:2, :], 0.0)
        mid_ref[:, 1:W + 1, :] = out1.reshape(TH + 2, W, Cp)

        # Zero only the halo border of `mid` (never the whole buffer):
        #   * left/right columns every step,
        #   * top/bottom halo rows only for the tiles touching the image edge
        #     (those rows are conv2's zero padding, not conv1 outputs).
        zcol = jnp.zeros((TH + 2, 1, Cp), jnp.float32)
        mid_ref[:, 0:1, :] = zcol
        mid_ref[:, W + 1:W + 2, :] = zcol

        @pl.when(h == 0)
        def _():
            mid_ref[0:1, :, :] = jnp.zeros((1, W + 2, Cp), jnp.float32)

        @pl.when(h == pl.num_programs(1) - 1)
        def _():
            mid_ref[TH + 1:TH + 2, :, :] = jnp.zeros((1, W + 2, Cp), jnp.float32)

        # ---- conv2: 9 shifted taps on `mid`, f32 accumulate in VMEM ----
        for kh in range(3):
            for kw in range(3):
                patch = mid_ref[kh:kh + TH, kw:kw + W, :]
                patch = patch.reshape(TW, Cp).astype(jnp.bfloat16)
                contrib = jnp.dot(patch, w2_ref[kh * 3 + kw],
                                  preferred_element_type=jnp.float32)
                if kh == 0 and kw == 0:
                    acc2_ref[...] = contrib
                else:
                    acc2_ref[...] += contrib
        out2 = acc2_ref[...] * sb2_ref[0:1, :] + sb2_ref[1:2, :]

        # ---- shortcut ----
        xc = x_ref[pl.ds(row0 + 2, TH), pl.ds(1, W), :].reshape(TW, Cin_p)
        if has_projection:
            sc = jnp.dot(xc.astype(jnp.bfloat16), wsc_ref[...],
                         preferred_element_type=jnp.float32)
            sc = sc * sbsc_ref[0:1, :] + sbsc_ref[1:2, :]
        else:
            sc = xc.astype(jnp.float32)    # identity shortcut: no matmul at all

        out = jnp.maximum(out2 + sc, 0.0)
        out_ref[...] = out.reshape(TH, W, Cp).astype(out_ref.dtype)

    return kernel


def basic_block_pallas(x_nchw, params, in_planes, planes, stride=1):
    """BasicBlock forward. x_nchw: (N, Cin, H, W) f32 -> (N, planes, H, W) f32."""
    assert stride == 1, "TODO(synk): strided conv path not implemented in-kernel"
    N, Cin, H, W = x_nchw.shape
    C = planes
    assert Cin == in_planes
    has_projection = (stride != 1) or (in_planes != planes)

    Cin_p = _round_up(Cin, 128)   # lane-dense padded channel counts
    Cp = _round_up(C, 128)

    TH = 8 if H % 8 == 0 else H   # rows of output per grid step
    assert H % TH == 0
    nH = H // TH

    # Glue (done once, outside the kernel): NCHW -> NHWC, spatial pad
    # (2 rows top/bottom for the conv2 halo recompute, 1 col left/right),
    # channel pad to a multiple of 128.
    x = jnp.transpose(x_nchw, (0, 2, 3, 1)).astype(jnp.float32)
    xpad = jnp.zeros((N, H + 4, W + 2, Cin_p), jnp.float32)
    xpad = xpad.at[:, 2:H + 2, 1:W + 1, :Cin].set(x)

    def pad_w(w, ci, co, cip, cop):
        wp = jnp.zeros(w.shape[:-2] + (cip, cop), jnp.bfloat16)
        return wp.at[..., :ci, :co].set(w.astype(jnp.bfloat16))

    def pack_sb(bn):
        s, b = _fold_bn(*bn)
        sb = jnp.zeros((2, Cp), jnp.float32)
        return sb.at[0, :C].set(s).at[1, :C].set(b)

    w1 = pad_w(params["w1"], Cin, C, Cin_p, Cp).reshape(9, Cin_p, Cp)
    w2 = pad_w(params["w2"], C, C, Cp, Cp).reshape(9, Cp, Cp)
    sb1 = pack_sb(params["bn1"])
    sb2 = pack_sb(params["bn2"])

    args = [xpad, w1, sb1, w2, sb2]
    in_specs = [
        pl.BlockSpec((None, H + 4, W + 2, Cin_p), lambda n, h: (n, 0, 0, 0)),
        pl.BlockSpec((9, Cin_p, Cp), lambda n, h: (0, 0, 0)),
        pl.BlockSpec((2, Cp), lambda n, h: (0, 0)),
        pl.BlockSpec((9, Cp, Cp), lambda n, h: (0, 0, 0)),
        pl.BlockSpec((2, Cp), lambda n, h: (0, 0)),
    ]
    sc_bytes = 0
    if has_projection:
        wsc = pad_w(params["wsc"], Cin, C, Cin_p, Cp)
        sbsc = pack_sb(params["bnsc"])
        args += [wsc, sbsc]
        in_specs += [pl.BlockSpec((Cin_p, Cp), lambda n, h: (0, 0)),
                     pl.BlockSpec((2, Cp), lambda n, h: (0, 0))]
        sc_bytes = wsc.size * 2

    flops = 2 * N * H * W * (9 * Cin_p * Cp + 9 * Cp * Cp
                             + (Cin_p * Cp if has_projection else 0))
    bytes_accessed = (xpad.size * 4 + N * H * W * Cp * 4
                      + w1.size * 2 + w2.size * 2 + sc_bytes)

    kernel = _make_kernel(TH, W, Cin_p, Cp, has_projection)

    out_nhwc = pl.pallas_call(
        kernel,
        out_shape=jax.ShapeDtypeStruct((N, H, W, Cp), jnp.float32),
        grid=(N, nH),
        in_specs=in_specs,
        out_specs=pl.BlockSpec((None, TH, W, Cp), lambda n, h: (n, h, 0, 0)),
        scratch_shapes=[
            pltpu.VMEM(((TH + 2) * W, Cp), jnp.float32),   # conv1 accumulator
            pltpu.VMEM((TH * W, Cp), jnp.float32),         # conv2 accumulator
            pltpu.VMEM((TH + 2, W + 2, Cp), jnp.float32),  # haloed conv1 output
        ],
        compiler_params=pltpu.CompilerParams(
            dimension_semantics=("parallel", "parallel"),
            vmem_limit_bytes=64 * 1024 * 1024),
        cost_estimate=pl.CostEstimate(flops=flops, transcendentals=0,
                                      bytes_accessed=bytes_accessed),
    )(*args)

    # Drop the channel padding, NHWC -> NCHW to match the PyTorch convention.
    return jnp.transpose(out_nhwc[..., :C], (0, 3, 1, 2))


def basic_block_reference(x_nchw, params, in_planes, planes, stride=1):
    """Pure-JAX reference with the same precision policy (bf16 ops, f32 accum)."""
    x = jnp.transpose(x_nchw, (0, 2, 3, 1)).astype(jnp.float32)  # NHWC
    dn = ("NHWC", "HWIO", "NHWC")

    def conv(v, w, s):
        return lax.conv_general_dilated(
            v.astype(jnp.bfloat16), w.astype(jnp.bfloat16),
            window_strides=(s, s), padding="SAME", dimension_numbers=dn,
            preferred_element_type=jnp.float32)

    s1, b1 = _fold_bn(*params["bn1"])
    s2, b2 = _fold_bn(*params["bn2"])
    out = jnp.maximum(conv(x, params["w1"], stride) * s1 + b1, 0.0)
    out = conv(out, params["w2"], 1) * s2 + b2
    if (stride != 1) or (in_planes != planes):
        ssc, bsc = _fold_bn(*params["bnsc"])
        sc = conv(x, params["wsc"].reshape(1, 1, in_planes, planes), stride) * ssc + bsc
    else:
        sc = x
    return jnp.transpose(jnp.maximum(out + sc, 0.0), (0, 3, 1, 2))


def make_params(key, in_planes, planes):
    ks = jax.random.split(key, 16)
    C, Cin = planes, in_planes

    def bn(k0, k1, k2, k3):
        gamma = 1.0 + 0.1 * jax.random.normal(k0, (C,), jnp.float32)
        beta = 0.1 * jax.random.normal(k1, (C,), jnp.float32)
        mean = 0.1 * jax.random.normal(k2, (C,), jnp.float32)
        var = 0.5 + jnp.abs(jax.random.normal(k3, (C,), jnp.float32)) * 0.2
        return (gamma, beta, mean, var)

    return {
        "w1": 0.2 * jax.random.normal(ks[0], (3, 3, Cin, C), jnp.float32),
        "bn1": bn(ks[1], ks[2], ks[3], ks[4]),
        "w2": 0.2 * jax.random.normal(ks[5], (3, 3, C, C), jnp.float32),
        "bn2": bn(ks[6], ks[7], ks[8], ks[9]),
        "wsc": 0.2 * jax.random.normal(ks[10], (Cin, C), jnp.float32),
        "bnsc": bn(ks[11], ks[12], ks[13], ks[14]),
    }


if __name__ == "__main__":
    key = jax.random.PRNGKey(0)
    kx1, kp1, kx2, kp2 = jax.random.split(key, 4)

    # Config A: channel change (4 -> 8) -> projection (1x1 conv + BN) shortcut.
    N, Cin, H, W, planes = 2, 4, 16, 16, 8
    x = jax.random.normal(kx1, (N, Cin, H, W), jnp.float32)
    params = make_params(kp1, Cin, planes)
    out = jax.block_until_ready(basic_block_pallas(x, params, Cin, planes, 1))
    ref = jax.block_until_ready(basic_block_reference(x, params, Cin, planes, 1))
    assert out.shape == (N, planes, H, W), out.shape
    assert jnp.allclose(out, ref, atol=5e-3, rtol=2e-2), \
        float(jnp.max(jnp.abs(out - ref)))

    # Config B: identity shortcut (in_planes == planes, stride == 1).
    x2 = jax.random.normal(kx2, (N, planes, H, W), jnp.float32)
    params2 = make_params(kp2, planes, planes)
    out2 = jax.block_until_ready(basic_block_pallas(x2, params2, planes, planes, 1))
    ref2 = jax.block_until_ready(basic_block_reference(x2, params2, planes, planes, 1))
    assert out2.shape == (N, planes, H, W), out2.shape
    assert jnp.allclose(out2, ref2, atol=5e-3, rtol=2e-2), \
        float(jnp.max(jnp.abs(out2 - ref2)))

    print("KERNEL_OK")
</pallas_src>

<mosaic_0001>
module attributes {stable_mosaic.version = 11 : i64} {
  func.func @kernel(%arg0: i32, %arg1: i32, %arg2: memref<1x20x18x128xf32, #tpu.memory_space<vmem>>, %arg3: memref<9x128x128xbf16, #tpu.memory_space<vmem>>, %arg4: memref<2x128xf32, #tpu.memory_space<vmem>>, %arg5: memref<9x128x128xbf16, #tpu.memory_space<vmem>>, %arg6: memref<2x128xf32, #tpu.memory_space<vmem>>, %arg7: memref<128x128xbf16, #tpu.memory_space<vmem>>, %arg8: memref<2x128xf32, #tpu.memory_space<vmem>>, %arg9: memref<1x8x16x128xf32, #tpu.memory_space<vmem>>, %arg10: memref<160x128xf32, #tpu.memory_space<vmem>>, %arg11: memref<128x128xf32, #tpu.memory_space<vmem>>, %arg12: memref<10x18x128xf32, #tpu.memory_space<vmem>>) attributes {dimension_semantics = [#tpu.dimension_semantics<parallel>, #tpu.dimension_semantics<parallel>], iteration_bounds = array<i64: 2, 2>, scalar_prefetch = 0 : i64, scratch_operands = 3 : i64, tpu.core_type = #tpu.core_type<tc>, window_params = [{transform_indices = @transform_0, window_bounds = array<i64: 1, 20, 18, 128>}, {pipeline_mode = #tpu.pipeline_mode<synchronous>, transform_indices = @transform_1, window_bounds = array<i64: 9, 128, 128>}, {pipeline_mode = #tpu.pipeline_mode<synchronous>, transform_indices = @transform_2, window_bounds = array<i64: 2, 128>}, {pipeline_mode = #tpu.pipeline_mode<synchronous>, transform_indices = @transform_3, window_bounds = array<i64: 9, 128, 128>}, {pipeline_mode = #tpu.pipeline_mode<synchronous>, transform_indices = @transform_4, window_bounds = array<i64: 2, 128>}, {pipeline_mode = #tpu.pipeline_mode<synchronous>, transform_indices = @transform_5, window_bounds = array<i64: 128, 128>}, {pipeline_mode = #tpu.pipeline_mode<synchronous>, transform_indices = @transform_6, window_bounds = array<i64: 2, 128>}, {transform_indices = @transform_7, window_bounds = array<i64: 1, 8, 16, 128>}]} {
    %c8_i32 = arith.constant 8 : i32
    %0 = arith.muli %arg1, %c8_i32 : i32
    %1 = tpu.assume_multiple %0, 8 : i32
    %c0_i32 = arith.constant 0 : i32
    %2 = arith.addi %1, %c0_i32 : i32
    %c0 = arith.constant 0 : index
    %3 = arith.index_cast %2 : i32 to index
    %c0_0 = arith.constant 0 : index
    %c0_1 = arith.constant 0 : index
    %4 = vector.load %arg2[%c0, %3, %c0_0, %c0_1] : memref<1x20x18x128xf32, #tpu.memory_space<vmem>>, vector<1x10x16x128xf32>
    %5 = vector.shape_cast %4 : vector<1x10x16x128xf32> to vector<10x16x128xf32>
    %6 = vector.shape_cast %5 : vector<10x16x128xf32> to vector<160x128xf32>
    %7 = arith.truncf %6 : vector<160x128xf32> to vector<160x128xbf16>
    %c0_2 = arith.constant 0 : index
    %c0_3 = arith.constant 0 : index
    %c0_4 = arith.constant 0 : index
    %8 = vector.load %arg3[%c0_2, %c0_3, %c0_4] : memref<9x128x128xbf16, #tpu.memory_space<vmem>>, vector<1x128x128xbf16>
    %9 = vector.shape_cast %8 : vector<1x128x128xbf16> to vector<128x128xbf16>
    %cst = arith.constant dense<0.000000e+00> : vector<160x128xf32>
    %10 = tpu.matmul %7, %9, %cst {dimension_numbers = #tpu.dot_dimension_numbers<[1], [0], [0], [1], [0, 0, 1, 1], [], []>} : vector<160x128xbf16>, vector<128x128xbf16>, vector<160x128xf32> -> vector<160x128xf32>
    %c0_5 = arith.constant 0 : index
    %c0_6 = arith.constant 0 : index
    %11 = vector.load %arg10[%c0_5, %c0_6] : memref<160x128xf32, #tpu.memory_space<vmem>>, vector<160x128xf32>
    tpu.vector_store %arg10[%c0_5, %c0_6], %10 {strides = array<i32>} : memref<160x128xf32, #tpu.memory_space<vmem>>, vector<160x128xf32>,
    %c0_i32_7 = arith.constant 0 : i32
    %12 = arith.addi %1, %c0_i32_7 : i32
    %c0_8 = arith.constant 0 : index
    %13 = arith.index_cast %12 : i32 to index
    %c1 = arith.constant 1 : index
    %c0_9 = arith.constant 0 : index
    %14 = vector.load %arg2[%c0_8, %13, %c1, %c0_9] : memref<1x20x18x128xf32, #tpu.memory_space<vmem>>, vector<1x10x16x128xf32>
    %15 = vector.shape_cast %14 : vector<1x10x16x128xf32> to vector<10x16x128xf32>
    %16 = vector.shape_cast %15 : vector<10x16x128xf32> to vector<160x128xf32>
    %17 = arith.truncf %16 : vector<160x128xf32> to vector<160x128xbf16>
    %c1_10 = arith.constant 1 : index
    %c0_11 = arith.constant 0 : index
    %c0_12 = arith.constant 0 : index
    %18 = vector.load %arg3[%c1_10, %c0_11, %c0_12] : memref<9x128x128xbf16, #tpu.memory_space<vmem>>, vector<1x128x128xbf16>
    %19 = vector.shape_cast %18 : vector<1x128x128xbf16> to vector<128x128xbf16>
    %cst_13 = arith.constant dense<0.000000e+00> : vector<160x128xf32>
    %20 = tpu.matmul %17, %19, %cst_13 {dimension_numbers = #tpu.dot_dimension_numbers<[1], [0], [0], [1], [0, 0, 1, 1], [], []>} : vector<160x128xbf16>, vector<128x128xbf16>, vector<160x128xf32> -> vector<160x128xf32>
    %c0_14 = arith.constant 0 : index
    %c0_15 = arith.constant 0 : index
    %21 = vector.load %arg10[%c0_14, %c0_15] : memref<160x128xf32, #tpu.memory_space<vmem>>, vector<160x128xf32>
    %22 = arith.addf %21, %20 : vector<160x128xf32>
    %c0_16 = arith.constant 0 : index
    %c0_17 = arith.constant 0 : index
    %23 = vector.load %arg10[%c0_16, %c0_17] : memref<160x128xf32, #tpu.memory_space<vmem>>, vector<160x128xf32>
    tpu.vector_store %arg10[%c0_16, %c0_17], %22 {strides = array<i32>} : memref<160x128xf32, #tpu.memory_space<vmem>>, vector<160x128xf32>,
    %c0_i32_18 = arith.constant 0 : i32
    %24 = arith.addi %1, %c0_i32_18 : i32
    %c0_19 = arith.constant 0 : index
    %25 = arith.index_cast %24 : i32 to index
    %c2 = arith.constant 2 : index
    %c0_20 = arith.constant 0 : index
    %26 = vector.load %arg2[%c0_19, %25, %c2, %c0_20] : memref<1x20x18x128xf32, #tpu.memory_space<vmem>>, vector<1x10x16x128xf32>
    %27 = vector.shape_cast %26 : vector<1x10x16x128xf32> to vector<10x16x128xf32>
    %28 = vector.shape_cast %27 : vector<10x16x128xf32> to vector<160x128xf32>
    %29 = arith.truncf %28 : vector<160x128xf32> to vector<160x128xbf16>
    %c2_21 = arith.constant 2 : index
    %c0_22 = arith.constant 0 : index
    %c0_23 = arith.constant 0 : index
    %30 = vector.load %arg3[%c2_21, %c0_22, %c0_23] : memref<9x128x128xbf16, #tpu.memory_space<vmem>>, vector<1x128x128xbf16>
    %31 = vector.shape_cast %30 : vector<1x128x128xbf16> to vector<128x128xbf16>
    %cst_24 = arith.constant dense<0.000000e+00> : vector<160x128xf32>
    %32 = tpu.matmul %29, %31, %cst_24 {dimension_numbers = #tpu.dot_dimension_numbers<[1], [0], [0], [1], [0, 0, 1, 1], [], []>} : vector<160x128xbf16>, vector<128x128xbf16>, vector<160x128xf32> -> vector<160x128xf32>
    %c0_25 = arith.constant 0 : index
    %c0_26 = arith.constant 0 : index
    %33 = vector.load %arg10[%c0_25, %c0_26] : memref<160x128xf32, #tpu.memory_space<vmem>>, vector<160x128xf32>
    %34 = arith.addf %33, %32 : vector<160x128xf32>
    %c0_27 = arith.constant 0 : index
    %c0_28 = arith.constant 0 : index
    %35 = vector.load %arg10[%c0_27, %c0_28] : memref<160x128xf32, #tpu.memory_space<vmem>>, vector<160x128xf32>
    tpu.vector_store %arg10[%c0_27, %c0_28], %34 {strides = array<i32>} : memref<160x128xf32, #tpu.memory_space<vmem>>, vector<160x128xf32>,
    %c1_i32 = arith.constant 1 : i32
    %36 = arith.addi %1, %c1_i32 : i32
    %c0_29 = arith.constant 0 : index
    %37 = arith.index_cast %36 : i32 to index
    %c0_30 = arith.constant 0 : index
    %c0_31 = arith.constant 0 : index
    %38 = vector.load %arg2[%c0_29, %37, %c0_30, %c0_31] : memref<1x20x18x128xf32, #tpu.memory_space<vmem>>, vector<1x10x16x128xf32>
    %39 = vector.shape_cast %38 : vector<1x10x16x128xf32> to vector<10x16x128xf32>
    %40 = vector.shape_cast %39 : vector<10x16x128xf32> to vector<160x128xf32>
    %41 = arith.truncf %40 : vector<160x128xf32> to vector<160x128xbf16>
    %c3 = arith.constant 3 : index
    %c0_32 = arith.constant 0 : index
    %c0_33 = arith.constant 0 : index
    %42 = vector.load %arg3[%c3, %c0_32, %c0_33] : memref<9x128x128xbf16, #tpu.memory_space<vmem>>, vector<1x128x128xbf16>
    %43 = vector.shape_cast %42 : vector<1x128x128xbf16> to vector<128x128xbf16>
    %cst_34 = arith.constant dense<0.000000e+00> : vector<160x128xf32>
    %44 = tpu.matmul %41, %43, %cst_34 {dimension_numbers = #tpu.dot_dimension_numbers<[1], [0], [0], [1], [0, 0, 1, 1], [], []>} : vector<160x128xbf16>, vector<128x128xbf16>, vector<160x128xf32> -> vector<160x128xf32>
    %c0_35 = arith.constant 0 : index
    %c0_36 = arith.constant 0 : index
    %45 = vector.load %arg10[%c0_35, %c0_36] : memref<160x128xf32, #tpu.memory_space<vmem>>, vector<160x128xf32>
    %46 = arith.addf %45, %44 : vector<160x128xf32>
    %c0_37 = arith.constant 0 : index
    %c0_38 = arith.constant 0 : index
    %47 = vector.load %arg10[%c0_37, %c0_38] : memref<160x128xf32, #tpu.memory_space<vmem>>, vector<160x128xf32>
    tpu.vector_store %arg10[%c0_37, %c0_38], %46 {strides = array<i32>} : memref<160x128xf32, #tpu.memory_space<vmem>>, vector<160x128xf32>,
    %c1_i32_39 = arith.constant 1 : i32
    %48 = arith.addi %1, %c1_i32_39 : i32
    %c0_40 = arith.constant 0 : index
    %49 = arith.index_cast %48 : i32 to index
    %c1_41 = arith.constant 1 : index
    %c0_42 = arith.constant 0 : index
    %50 = vector.load %arg2[%c0_40, %49, %c1_41, %c0_42] : memref<1x20x18x128xf32, #tpu.memory_space<vmem>>, vector<1x10x16x128xf32>
    %51 = vector.shape_cast %50 : vector<1x10x16x128xf32> to vector<10x16x128xf32>
    %52 = vector.shape_cast %51 : vector<10x16x128xf32> to vector<160x128xf32>
    %53 = arith.truncf %52 : vector<160x128xf32> to vector<160x128xbf16>
    %c4 = arith.constant 4 : index
    %c0_43 = arith.constant 0 : index
    %c0_44 = arith.constant 0 : index
    %54 = vector.load %arg3[%c4, %c0_43, %c0_44] : memref<9x128x128xbf16, #tpu.memory_space<vmem>>, vector<1x128x128xbf16>
    %55 = vector.shape_cast %54 : vector<1x128x128xbf16> to vector<128x128xbf16>
    %cst_45 = arith.constant dense<0.000000e+00> : vector<160x128xf32>
    %56 = tpu.matmul %53, %55, %cst_45 {dimension_numbers = #tpu.dot_dimension_numbers<[1], [0], [0], [1], [0, 0, 1, 1], [], []>} : vector<160x128xbf16>, vector<128x128xbf16>, vector<160x128xf32> -> vector<160x128xf32>
    %c0_46 = arith.constant 0 : index
    %c0_47 = arith.constant 0 : index
    %57 = vector.load %arg10[%c0_46, %c0_47] : memref<160x128xf32, #tpu.memory_space<vmem>>, vector<160x128xf32>
    %58 = arith.addf %57, %56 : vector<160x128xf32>
    %c0_48 = arith.constant 0 : index
    %c0_49 = arith.constant 0 : index
    %59 = vector.load %arg10[%c0_48, %c0_49] : memref<160x128xf32, #tpu.memory_space<vmem>>, vector<160x128xf32>
    tpu.vector_store %arg10[%c0_48, %c0_49], %58 {strides = array<i32>} : memref<160x128xf32, #tpu.memory_space<vmem>>, vector<160x128xf32>,
    %c1_i32_50 = arith.constant 1 : i32
    %60 = arith.addi %1, %c1_i32_50 : i32
    %c0_51 = arith.constant 0 : index
    %61 = arith.index_cast %60 : i32 to index
    %c2_52 = arith.constant 2 : index
    %c0_53 = arith.constant 0 : index
    %62 = vector.load %arg2[%c0_51, %61, %c2_52, %c0_53] : memref<1x20x18x128xf32, #tpu.memory_space<vmem>>, vector<1x10x16x128xf32>
    %63 = vector.shape_cast %62 : vector<1x10x16x128xf32> to vector<10x16x128xf32>
    %64 = vector.shape_cast %63 : vector<10x16x128xf32> to vector<160x128xf32>
    %65 = arith.truncf %64 : vector<160x128xf32> to vector<160x128xbf16>
    %c5 = arith.constant 5 : index
    %c0_54 = arith.constant 0 : index
    %c0_55 = arith.constant 0 : index
    %66 = vector.load %arg3[%c5, %c0_54, %c0_55] : memref<9x128x128xbf16, #tpu.memory_space<vmem>>, vector<1x128x128xbf16>
    %67 = vector.shape_cast %66 : vector<1x128x128xbf16> to vector<128x128xbf16>
    %cst_56 = arith.constant dense<0.000000e+00> : vector<160x128xf32>
    %68 = tpu.matmul %65, %67, %cst_56 {dimension_numbers = #tpu.dot_dimension_numbers<[1], [0], [0], [1], [0, 0, 1, 1], [], []>} : vector<160x128xbf16>, vector<128x128xbf16>, vector<160x128xf32> -> vector<160x128xf32>
    %c0_57 = arith.constant 0 : index
    %c0_58 = arith.constant 0 : index
    %69 = vector.load %arg10[%c0_57, %c0_58] : memref<160x128xf32, #tpu.memory_space<vmem>>, vector<160x128xf32>
    %70 = arith.addf %69, %68 : vector<160x128xf32>
    %c0_59 = arith.constant 0 : index
    %c0_60 = arith.constant 0 : index
    %71 = vector.load %arg10[%c0_59, %c0_60] : memref<160x128xf32, #tpu.memory_space<vmem>>, vector<160x128xf32>
    tpu.vector_store %arg10[%c0_59, %c0_60], %70 {strides = array<i32>} : memref<160x128xf32, #tpu.memory_space<vmem>>, vector<160x128xf32>,
    %c2_i32 = arith.constant 2 : i32
    %72 = arith.addi %1, %c2_i32 : i32
    %c0_61 = arith.constant 0 : index
    %73 = arith.index_cast %72 : i32 to index
    %c0_62 = arith.constant 0 : index
    %c0_63 = arith.constant 0 : index
    %74 = vector.load %arg2[%c0_61, %73, %c0_62, %c0_63] : memref<1x20x18x128xf32, #tpu.memory_space<vmem>>, vector<1x10x16x128xf32>
    %75 = vector.shape_cast %74 : vector<1x10x16x128xf32> to vector<10x16x128xf32>
    %76 = vector.shape_cast %75 : vector<10x16x128xf32> to vector<160x128xf32>
    %77 = arith.truncf %76 : vector<160x128xf32> to vector<160x128xbf16>
    %c6 = arith.constant 6 : index
    %c0_64 = arith.constant 0 : index
    %c0_65 = arith.constant 0 : index
    %78 = vector.load %arg3[%c6, %c0_64, %c0_65] : memref<9x128x128xbf16, #tpu.memory_space<vmem>>, vector<1x128x128xbf16>
    %79 = vector.shape_cast %78 : vector<1x128x128xbf16> to vector<128x128xbf16>
    %cst_66 = arith.constant dense<0.000000e+00> : vector<160x128xf32>
    %80 = tpu.matmul %77, %79, %cst_66 {dimension_numbers = #tpu.dot_dimension_numbers<[1], [0], [0], [1], [0, 0, 1, 1], [], []>} : vector<160x128xbf16>, vector<128x128xbf16>, vector<160x128xf32> -> vector<160x128xf32>
    %c0_67 = arith.constant 0 : index
    %c0_68 = arith.constant 0 : index
    %81 = vector.load %arg10[%c0_67, %c0_68] : memref<160x128xf32, #tpu.memory_space<vmem>>, vector<160x128xf32>
    %82 = arith.addf %81, %80 : vector<160x128xf32>
    %c0_69 = arith.constant 0 : index
    %c0_70 = arith.constant 0 : index
    %83 = vector.load %arg10[%c0_69, %c0_70] : memref<160x128xf32, #tpu.memory_space<vmem>>, vector<160x128xf32>
    tpu.vector_store %arg10[%c0_69, %c0_70], %82 {strides = array<i32>} : memref<160x128xf32, #tpu.memory_space<vmem>>, vector<160x128xf32>,
    %c2_i32_71 = arith.constant 2 : i32
    %84 = arith.addi %1, %c2_i32_71 : i32
    %c0_72 = arith.constant 0 : index
    %85 = arith.index_cast %84 : i32 to index
    %c1_73 = arith.constant 1 : index
    %c0_74 = arith.constant 0 : index
    %86 = vector.load %arg2[%c0_72, %85, %c1_73, %c0_74] : memref<1x20x18x128xf32, #tpu.memory_space<vmem>>, vector<1x10x16x128xf32>
    %87 = vector.shape_cast %86 : vector<1x10x16x128xf32> to vector<10x16x128xf32>
    %88 = vector.shape_cast %87 : vector<10x16x128xf32> to vector<160x128xf32>
    %89 = arith.truncf %88 : vector<160x128xf32> to vector<160x128xbf16>
    %c7 = arith.constant 7 : index
    %c0_75 = arith.constant 0 : index
    %c0_76 = arith.constant 0 : index
    %90 = vector.load %arg3[%c7, %c0_75, %c0_76] : memref<9x128x128xbf16, #tpu.memory_space<vmem>>, vector<1x128x128xbf16>
    %91 = vector.shape_cast %90 : vector<1x128x128xbf16> to vector<128x128xbf16>
    %cst_77 = arith.constant dense<0.000000e+00> : vector<160x128xf32>
    %92 = tpu.matmul %89, %91, %cst_77 {dimension_numbers = #tpu.dot_dimension_numbers<[1], [0], [0], [1], [0, 0, 1, 1], [], []>} : vector<160x128xbf16>, vector<128x128xbf16>, vector<160x128xf32> -> vector<160x128xf32>
    %c0_78 = arith.constant 0 : index
    %c0_79 = arith.constant 0 : index
    %93 = vector.load %arg10[%c0_78, %c0_79] : memref<160x128xf32, #tpu.memory_space<vmem>>, vector<160x128xf32>
    %94 = arith.addf %93, %92 : vector<160x128xf32>
    %c0_80 = arith.constant 0 : index
    %c0_81 = arith.constant 0 : index
    %95 = vector.load %arg10[%c0_80, %c0_81] : memref<160x128xf32, #tpu.memory_space<vmem>>, vector<160x128xf32>
    tpu.vector_store %arg10[%c0_80, %c0_81], %94 {strides = array<i32>} : memref<160x128xf32, #tpu.memory_space<vmem>>, vector<160x128xf32>,
    %c2_i32_82 = arith.constant 2 : i32
    %96 = arith.addi %1, %c2_i32_82 : i32
    %c0_83 = arith.constant 0 : index
    %97 = arith.index_cast %96 : i32 to index
    %c2_84 = arith.constant 2 : index
    %c0_85 = arith.constant 0 : index
    %98 = vector.load %arg2[%c0_83, %97, %c2_84, %c0_85] : memref<1x20x18x128xf32, #tpu.memory_space<vmem>>, vector<1x10x16x128xf32>
    %99 = vector.shape_cast %98 : vector<1x10x16x128xf32> to vector<10x16x128xf32>
    %100 = vector.shape_cast %99 : vector<10x16x128xf32> to vector<160x128xf32>
    %101 = arith.truncf %100 : vector<160x128xf32> to vector<160x128xbf16>
    %c8 = arith.constant 8 : index
    %c0_86 = arith.constant 0 : index
    %c0_87 = arith.constant 0 : index
    %102 = vector.load %arg3[%c8, %c0_86, %c0_87] : memref<9x128x128xbf16, #tpu.memory_space<vmem>>, vector<1x128x128xbf16>
    %103 = vector.shape_cast %102 : vector<1x128x128xbf16> to vector<128x128xbf16>
    %cst_88 = arith.constant dense<0.000000e+00> : vector<160x128xf32>
    %104 = tpu.matmul %101, %103, %cst_88 {dimension_numbers = #tpu.dot_dimension_numbers<[1], [0], [0], [1], [0, 0, 1, 1], [], []>} : vector<160x128xbf16>, vector<128x128xbf16>, vector<160x128xf32> -> vector<160x128xf32>
    %c0_89 = arith.constant 0 : index
    %c0_90 = arith.constant 0 : index
    %105 = vector.load %arg10[%c0_89, %c0_90] : memref<160x128xf32, #tpu.memory_space<vmem>>, vector<160x128xf32>
    %106 = arith.addf %105, %104 : vector<160x128xf32>
    %c0_91 = arith.constant 0 : index
    %c0_92 = arith.constant 0 : index
    %107 = vector.load %arg10[%c0_91, %c0_92] : memref<160x128xf32, #tpu.memory_space<vmem>>, vector<160x128xf32>
    tpu.vector_store %arg10[%c0_91, %c0_92], %106 {strides = array<i32>} : memref<160x128xf32, #tpu.memory_space<vmem>>, vector<160x128xf32>,
    %c0_93 = arith.constant 0 : index
    %c0_94 = arith.constant 0 : index
    %108 = vector.load %arg10[%c0_93, %c0_94] : memref<160x128xf32, #tpu.memory_space<vmem>>, vector<160x128xf32>
    %c0_95 = arith.constant 0 : index
    %c0_96 = arith.constant 0 : index
    %109 = vector.load %arg4[%c0_95, %c0_96] : memref<2x128xf32, #tpu.memory_space<vmem>>, vector<1x128xf32>
    %110 = vector.broadcast %109 : vector<1x128xf32> to vector<160x128xf32>
    %111 = arith.mulf %108, %110 : vector<160x128xf32>
    %c1_97 = arith.constant 1 : index
    %c0_98 = arith.constant 0 : index
    %112 = vector.load %arg4[%c1_97, %c0_98] : memref<2x128xf32, #tpu.memory_space<vmem>>, vector<1x128xf32>
    %113 = vector.broadcast %112 : vector<1x128xf32> to vector<160x128xf32>
    %114 = arith.addf %111, %113 : vector<160x128xf32>
    %cst_99 = arith.constant 0.000000e+00 : f32
    %115 = vector.broadcast %cst_99 : f32 to vector<160x128xf32>
    %116 = arith.maximumf %114, %115 : vector<160x128xf32>
    %117 = vector.shape_cast %116 : vector<160x128xf32> to vector<10x16x128xf32>
    %c0_100 = arith.constant 0 : index
    %c1_101 = arith.constant 1 : index
    %c0_102 = arith.constant 0 : index
    %118 = vector.load %arg12[%c0_100, %c1_101, %c0_102] : memref<10x18x128xf32, #tpu.memory_space<vmem>>, vector<10x16x128xf32>
    tpu.vector_store %arg12[%c0_100, %c1_101, %c0_102], %117 {strides = array<i32>} : memref<10x18x128xf32, #tpu.memory_space<vmem>>, vector<10x16x128xf32>,
    %cst_103 = arith.constant 0.000000e+00 : f32
    %119 = vector.broadcast %cst_103 : f32 to vector<10x1x128xf32>
    %c0_104 = arith.constant 0 : index
    %c0_105 = arith.constant 0 : index
    %c0_106 = arith.constant 0 : index
    %120 = vector.load %arg12[%c0_104, %c0_105, %c0_106] : memref<10x18x128xf32, #tpu.memory_space<vmem>>, vector<10x1x128xf32>
    tpu.vector_store %arg12[%c0_104, %c0_105, %c0_106], %119 {strides = array<i32>} : memref<10x18x128xf32, #tpu.memory_space<vmem>>, vector<10x1x128xf32>,
    %c0_107 = arith.constant 0 : index
    %c17 = arith.constant 17 : index
    %c0_108 = arith.constant 0 : index
    %121 = vector.load %arg12[%c0_107, %c17, %c0_108] : memref<10x18x128xf32, #tpu.memory_space<vmem>>, vector<10x1x128xf32>
    tpu.vector_store %arg12[%c0_107, %c17, %c0_108], %119 {strides = array<i32>} : memref<10x18x128xf32, #tpu.memory_space<vmem>>, vector<10x1x128xf32>,
    %c0_i32_109 = arith.constant 0 : i32
    %122 = arith.cmpi eq, %arg1, %c0_i32_109 : i32
    %123 = arith.extui %122 : i1 to i32
    %c0_i32_110 = arith.constant 0 : i32
    %124 = arith.cmpi ne, %123, %c0_i32_110 : i32
    scf.if %124 {
      %cst_232 = arith.constant 0.000000e+00 : f32
      %235 = vector.broadcast %cst_232 : f32 to vector<1x18x128xf32>
      %c0_233 = arith.constant 0 : index
      %c0_234 = arith.constant 0 : index
      %c0_235 = arith.constant 0 : index
      %236 = vector.load %arg12[%c0_233, %c0_234, %c0_235] : memref<10x18x128xf32, #tpu.memory_space<vmem>>, vector<1x18x128xf32>
      tpu.vector_store %arg12[%c0_233, %c0_234, %c0_235], %235 {strides = array<i32>} : memref<10x18x128xf32, #tpu.memory_space<vmem>>, vector<1x18x128xf32>,
    } else {
    }
    %c1_i32_111 = arith.constant 1 : i32
    %125 = arith.cmpi eq, %arg1, %c1_i32_111 : i32
    %126 = arith.extui %125 : i1 to i32
    %c0_i32_112 = arith.constant 0 : i32
    %127 = arith.cmpi ne, %126, %c0_i32_112 : i32
    scf.if %127 {
      %cst_232 = arith.constant 0.000000e+00 : f32
      %235 = vector.broadcast %cst_232 : f32 to vector<1x18x128xf32>
      %c9 = arith.constant 9 : index
      %c0_233 = arith.constant 0 : index
      %c0_234 = arith.constant 0 : index
      %236 = vector.load %arg12[%c9, %c0_233, %c0_234] : memref<10x18x128xf32, #tpu.memory_space<vmem>>, vector<1x18x128xf32>
      tpu.vector_store %arg12[%c9, %c0_233, %c0_234], %235 {strides = array<i32>} : memref<10x18x128xf32, #tpu.memory_space<vmem>>, vector<1x18x128xf32>,
    } else {
    }
    %c0_113 = arith.constant 0 : index
    %c0_114 = arith.constant 0 : index
    %c0_115 = arith.constant 0 : index
    %128 = vector.load %arg12[%c0_113, %c0_114, %c0_115] : memref<10x18x128xf32, #tpu.memory_space<vmem>>, vector<8x16x128xf32>
    %129 = vector.shape_cast %128 : vector<8x16x128xf32> to vector<128x128xf32>
    %130 = arith.truncf %129 : vector<128x128xf32> to vector<128x128xbf16>
    %c0_116 = arith.constant 0 : index
    %c0_117 = arith.constant 0 : index
    %c0_118 = arith.constant 0 : index
    %131 = vector.load %arg5[%c0_116, %c0_117, %c0_118] : memref<9x128x128xbf16, #tpu.memory_space<vmem>>, vector<1x128x128xbf16>
    %132 = vector.shape_cast %131 : vector<1x128x128xbf16> to vector<128x128xbf16>
    %cst_119 = arith.constant dense<0.000000e+00> : vector<128x128xf32>
    %133 = tpu.matmul %130, %132, %cst_119 {dimension_numbers = #tpu.dot_dimension_numbers<[1], [0], [0], [1], [0, 0, 1, 1], [], []>} : vector<128x128xbf16>, vector<128x128xbf16>, vector<128x128xf32> -> vector<128x128xf32>
    %c0_120 = arith.constant 0 : index
    %c0_121 = arith.constant 0 : index
    %134 = vector.load %arg11[%c0_120, %c0_121] : memref<128x128xf32, #tpu.memory_space<vmem>>, vector<128x128xf32>
    tpu.vector_store %arg11[%c0_120, %c0_121], %133 {strides = array<i32>} : memref<128x128xf32, #tpu.memory_space<vmem>>, vector<128x128xf32>,
    %c0_122 = arith.constant 0 : index
    %c1_123 = arith.constant 1 : index
    %c0_124 = arith.constant 0 : index
    %135 = vector.load %arg12[%c0_122, %c1_123, %c0_124] : memref<10x18x128xf32, #tpu.memory_space<vmem>>, vector<8x16x128xf32>
    %136 = vector.shape_cast %135 : vector<8x16x128xf32> to vector<128x128xf32>
    %137 = arith.truncf %136 : vector<128x128xf32> to vector<128x128xbf16>
    %c1_125 = arith.constant 1 : index
    %c0_126 = arith.constant 0 : index
    %c0_127 = arith.constant 0 : index
    %138 = vector.load %arg5[%c1_125, %c0_126, %c0_127] : memref<9x128x128xbf16, #tpu.memory_space<vmem>>, vector<1x128x128xbf16>
    %139 = vector.shape_cast %138 : vector<1x128x128xbf16> to vector<128x128xbf16>
    %cst_128 = arith.constant dense<0.000000e+00> : vector<128x128xf32>
    %140 = tpu.matmul %137, %139, %cst_128 {dimension_numbers = #tpu.dot_dimension_numbers<[1], [0], [0], [1], [0, 0, 1, 1], [], []>} : vector<128x128xbf16>, vector<128x128xbf16>, vector<128x128xf32> -> vector<128x128xf32>
    %c0_129 = arith.constant 0 : index
    %c0_130 = arith.constant 0 : index
    %141 = vector.load %arg11[%c0_129, %c0_130] : memref<128x128xf32, #tpu.memory_space<vmem>>, vector<128x128xf32>
    %142 = arith.addf %141, %140 : vector<128x128xf32>
    %c0_131 = arith.constant 0 : index
    %c0_132 = arith.constant 0 : index
    %143 = vector.load %arg11[%c0_131, %c0_132] : memref<128x128xf32, #tpu.memory_space<vmem>>, vector<128x128xf32>
    tpu.vector_store %arg11[%c0_131, %c0_132], %142 {strides = array<i32>} : memref<128x128xf32, #tpu.memory_space<vmem>>, vector<128x128xf32>,
    %c0_133 = arith.constant 0 : index
    %c2_134 = arith.constant 2 : index
    %c0_135 = arith.constant 0 : index
    %144 = vector.load %arg12[%c0_133, %c2_134, %c0_135] : memref<10x18x128xf32, #tpu.memory_space<vmem>>, vector<8x16x128xf32>
    %145 = vector.shape_cast %144 : vector<8x16x128xf32> to vector<128x128xf32>
    %146 = arith.truncf %145 : vector<128x128xf32> to vector<128x128xbf16>
    %c2_136 = arith.constant 2 : index
    %c0_137 = arith.constant 0 : index
    %c0_138 = arith.constant 0 : index
    %147 = vector.load %arg5[%c2_136, %c0_137, %c0_138] : memref<9x128x128xbf16, #tpu.memory_space<vmem>>, vector<1x128x128xbf16>
    %148 = vector.shape_cast %147 : vector<1x128x128xbf16> to vector<128x128xbf16>
    %cst_139 = arith.constant dense<0.000000e+00> : vector<128x128xf32>
    %149 = tpu.matmul %146, %148, %cst_139 {dimension_numbers = #tpu.dot_dimension_numbers<[1], [0], [0], [1], [0, 0, 1, 1], [], []>} : vector<128x128xbf16>, vector<128x128xbf16>, vector<128x128xf32> -> vector<128x128xf32>
    %c0_140 = arith.constant 0 : index
    %c0_141 = arith.constant 0 : index
    %150 = vector.load %arg11[%c0_140, %c0_141] : memref<128x128xf32, #tpu.memory_space<vmem>>, vector<128x128xf32>
    %151 = arith.addf %150, %149 : vector<128x128xf32>
    %c0_142 = arith.constant 0 : index
    %c0_143 = arith.constant 0 : index
    %152 = vector.load %arg11[%c0_142, %c0_143] : memref<128x128xf32, #tpu.memory_space<vmem>>, vector<128x128xf32>
    tpu.vector_store %arg11[%c0_142, %c0_143], %151 {strides = array<i32>} : memref<128x128xf32, #tpu.memory_space<vmem>>, vector<128x128xf32>,
    %c1_144 = arith.constant 1 : index
    %c0_145 = arith.constant 0 : index
    %c0_146 = arith.constant 0 : index
    %153 = vector.load %arg12[%c1_144, %c0_145, %c0_146] : memref<10x18x128xf32, #tpu.memory_space<vmem>>, vector<8x16x128xf32>
    %154 = vector.shape_cast %153 : vector<8x16x128xf32> to vector<128x128xf32>
    %155 = arith.truncf %154 : vector<128x128xf32> to vector<128x128xbf16>
    %c3_147 = arith.constant 3 : index
    %c0_148 = arith.constant 0 : index
    %c0_149 = arith.constant 0 : index
    %156 = vector.load %arg5[%c3_147, %c0_148, %c0_149] : memref<9x128x128xbf16, #tpu.memory_space<vmem>>, vector<1x128x128xbf16>
    %157 = vector.shape_cast %156 : vector<1x128x128xbf16> to vector<128x128xbf16>
    %cst_150 = arith.constant dense<0.000000e+00> : vector<128x128xf32>
    %158 = tpu.matmul %155, %157, %cst_150 {dimension_numbers = #tpu.dot_dimension_numbers<[1], [0], [0], [1], [0, 0, 1, 1], [], []>} : vector<128x128xbf16>, vector<128x128xbf16>, vector<128x128xf32> -> vector<128x128xf32>
    %c0_151 = arith.constant 0 : index
    %c0_152 = arith.constant 0 : index
    %159 = vector.load %arg11[%c0_151, %c0_152] : memref<128x128xf32, #tpu.memory_space<vmem>>, vector<128x128xf32>
    %160 = arith.addf %159, %158 : vector<128x128xf32>
    %c0_153 = arith.constant 0 : index
    %c0_154 = arith.constant 0 : index
    %161 = vector.load %arg11[%c0_153, %c0_154] : memref<128x128xf32, #tpu.memory_space<vmem>>, vector<128x128xf32>
    tpu.vector_store %arg11[%c0_153, %c0_154], %160 {strides = array<i32>} : memref<128x128xf32, #tpu.memory_space<vmem>>, vector<128x128xf32>,
    %c1_155 = arith.constant 1 : index
    %c1_156 = arith.constant 1 : index
    %c0_157 = arith.constant 0 : index
    %162 = vector.load %arg12[%c1_155, %c1_156, %c0_157] : memref<10x18x128xf32, #tpu.memory_space<vmem>>, vector<8x16x128xf32>
    %163 = vector.shape_cast %162 : vector<8x16x128xf32> to vector<128x128xf32>
    %164 = arith.truncf %163 : vector<128x128xf32> to vector<128x128xbf16>
    %c4_158 = arith.constant 4 : index
    %c0_159 = arith.constant 0 : index
    %c0_160 = arith.constant 0 : index
    %165 = vector.load %arg5[%c4_158, %c0_159, %c0_160] : memref<9x128x128xbf16, #tpu.memory_space<vmem>>, vector<1x128x128xbf16>
    %166 = vector.shape_cast %165 : vector<1x128x128xbf16> to vector<128x128xbf16>
    %cst_161 = arith.constant dense<0.000000e+00> : vector<128x128xf32>
    %167 = tpu.matmul %164, %166, %cst_161 {dimension_numbers = #tpu.dot_dimension_numbers<[1], [0], [0], [1], [0, 0, 1, 1], [], []>} : vector<128x128xbf16>, vector<128x128xbf16>, vector<128x128xf32> -> vector<128x128xf32>
    %c0_162 = arith.constant 0 : index
    %c0_163 = arith.constant 0 : index
    %168 = vector.load %arg11[%c0_162, %c0_163] : memref<128x128xf32, #tpu.memory_space<vmem>>, vector<128x128xf32>
    %169 = arith.addf %168, %167 : vector<128x128xf32>
    %c0_164 = arith.constant 0 : index
    %c0_165 = arith.constant 0 : index
    %170 = vector.load %arg11[%c0_164, %c0_165] : memref<128x128xf32, #tpu.memory_space<vmem>>, vector<128x128xf32>
    tpu.vector_store %arg11[%c0_164, %c0_165], %169 {strides = array<i32>} : memref<128x128xf32, #tpu.memory_space<vmem>>, vector<128x128xf32>,
    %c1_166 = arith.constant 1 : index
    %c2_167 = arith.constant 2 : index
    %c0_168 = arith.constant 0 : index
    %171 = vector.load %arg12[%c1_166, %c2_167, %c0_168] : memref<10x18x128xf32, #tpu.memory_space<vmem>>, vector<8x16x128xf32>
    %172 = vector.shape_cast %171 : vector<8x16x128xf32> to vector<128x128xf32>
    %173 = arith.truncf %172 : vector<128x128xf32> to vector<128x128xbf16>
    %c5_169 = arith.constant 5 : index
    %c0_170 = arith.constant 0 : index
    %c0_171 = arith.constant 0 : index
    %174 = vector.load %arg5[%c5_169, %c0_170, %c0_171] : memref<9x128x128xbf16, #tpu.memory_space<vmem>>, vector<1x128x128xbf16>
    %175 = vector.shape_cast %174 : vector<1x128x128xbf16> to vector<128x128xbf16>
    %cst_172 = arith.constant dense<0.000000e+00> : vector<128x128xf32>
    %176 = tpu.matmul %173, %175, %cst_172 {dimension_numbers = #tpu.dot_dimension_numbers<[1], [0], [0], [1], [0, 0, 1, 1], [], []>} : vector<128x128xbf16>, vector<128x128xbf16>, vector<128x128xf32> -> vector<128x128xf32>
    %c0_173 = arith.constant 0 : index
    %c0_174 = arith.constant 0 : index
    %177 = vector.load %arg11[%c0_173, %c0_174] : memref<128x128xf32, #tpu.memory_space<vmem>>, vector<128x128xf32>
    %178 = arith.addf %177, %176 : vector<128x128xf32>
    %c0_175 = arith.constant 0 : index
    %c0_176 = arith.constant 0 : index
    %179 = vector.load %arg11[%c0_175, %c0_176] : memref<128x128xf32, #tpu.memory_space<vmem>>, vector<128x128xf32>
    tpu.vector_store %arg11[%c0_175, %c0_176], %178 {strides = array<i32>} : memref<128x128xf32, #tpu.memory_space<vmem>>, vector<128x128xf32>,
    %c2_177 = arith.constant 2 : index
    %c0_178 = arith.constant 0 : index
    %c0_179 = arith.constant 0 : index
    %180 = vector.load %arg12[%c2_177, %c0_178, %c0_179] : memref<10x18x128xf32, #tpu.memory_space<vmem>>, vector<8x16x128xf32>
    %181 = vector.shape_cast %180 : vector<8x16x128xf32> to vector<128x128xf32>
    %182 = arith.truncf %181 : vector<128x128xf32> to vector<128x128xbf16>
    %c6_180 = arith.constant 6 : index
    %c0_181 = arith.constant 0 : index
    %c0_182 = arith.constant 0 : index
    %183 = vector.load %arg5[%c6_180, %c0_181, %c0_182] : memref<9x128x128xbf16, #tpu.memory_space<vmem>>, vector<1x128x128xbf16>
    %184 = vector.shape_cast %183 : vector<1x128x128xbf16> to vector<128x128xbf16>
    %cst_183 = arith.constant dense<0.000000e+00> : vector<128x128xf32>
    %185 = tpu.matmul %182, %184, %cst_183 {dimension_numbers = #tpu.dot_dimension_numbers<[1], [0], [0], [1], [0, 0, 1, 1], [], []>} : vector<128x128xbf16>, vector<128x128xbf16>, vector<128x128xf32> -> vector<128x128xf32>
    %c0_184 = arith.constant 0 : index
    %c0_185 = arith.constant 0 : index
    %186 = vector.load %arg11[%c0_184, %c0_185] : memref<128x128xf32, #tpu.memory_space<vmem>>, vector<128x128xf32>
    %187 = arith.addf %186, %185 : vector<128x128xf32>
    %c0_186 = arith.constant 0 : index
    %c0_187 = arith.constant 0 : index
    %188 = vector.load %arg11[%c0_186, %c0_187] : memref<128x128xf32, #tpu.memory_space<vmem>>, vector<128x128xf32>
    tpu.vector_store %arg11[%c0_186, %c0_187], %187 {strides = array<i32>} : memref<128x128xf32, #tpu.memory_space<vmem>>, vector<128x128xf32>,
    %c2_188 = arith.constant 2 : index
    %c1_189 = arith.constant 1 : index
    %c0_190 = arith.constant 0 : index
    %189 = vector.load %arg12[%c2_188, %c1_189, %c0_190] : memref<10x18x128xf32, #tpu.memory_space<vmem>>, vector<8x16x128xf32>
    %190 = vector.shape_cast %189 : vector<8x16x128xf32> to vector<128x128xf32>
    %191 = arith.truncf %190 : vector<128x128xf32> to vector<128x128xbf16>
    %c7_191 = arith.constant 7 : index
    %c0_192 = arith.constant 0 : index
    %c0_193 = arith.constant 0 : index
    %192 = vector.load %arg5[%c7_191, %c0_192, %c0_193] : memref<9x128x128xbf16, #tpu.memory_space<vmem>>, vector<1x128x128xbf16>
    %193 = vector.shape_cast %192 : vector<1x128x128xbf16> to vector<128x128xbf16>
    %cst_194 = arith.constant dense<0.000000e+00> : vector<128x128xf32>
    %194 = tpu.matmul %191, %193, %cst_194 {dimension_numbers = #tpu.dot_dimension_numbers<[1], [0], [0], [1], [0, 0, 1, 1], [], []>} : vector<128x128xbf16>, vector<128x128xbf16>, vector<128x128xf32> -> vector<128x128xf32>
    %c0_195 = arith.constant 0 : index
    %c0_196 = arith.constant 0 : index
    %195 = vector.load %arg11[%c0_195, %c0_196] : memref<128x128xf32, #tpu.memory_space<vmem>>, vector<128x128xf32>
    %196 = arith.addf %195, %194 : vector<128x128xf32>
    %c0_197 = arith.constant 0 : index
    %c0_198 = arith.constant 0 : index
    %197 = vector.load %arg11[%c0_197, %c0_198] : memref<128x128xf32, #tpu.memory_space<vmem>>, vector<128x128xf32>
    tpu.vector_store %arg11[%c0_197, %c0_198], %196 {strides = array<i32>} : memref<128x128xf32, #tpu.memory_space<vmem>>, vector<128x128xf32>,
    %c2_199 = arith.constant 2 : index
    %c2_200 = arith.constant 2 : index
    %c0_201 = arith.constant 0 : index
    %198 = vector.load %arg12[%c2_199, %c2_200, %c0_201] : memref<10x18x128xf32, #tpu.memory_space<vmem>>, vector<8x16x128xf32>
    %199 = vector.shape_cast %198 : vector<8x16x128xf32> to vector<128x128xf32>
    %200 = arith.truncf %199 : vector<128x128xf32> to vector<128x128xbf16>
    %c8_202 = arith.constant 8 : index
    %c0_203 = arith.constant 0 : index
    %c0_204 = arith.constant 0 : index
    %201 = vector.load %arg5[%c8_202, %c0_203, %c0_204] : memref<9x128x128xbf16, #tpu.memory_space<vmem>>, vector<1x128x128xbf16>
    %202 = vector.shape_cast %201 : vector<1x128x128xbf16> to vector<128x128xbf16>
    %cst_205 = arith.constant dense<0.000000e+00> : vector<128x128xf32>
    %203 = tpu.matmul %200, %202, %cst_205 {dimension_numbers = #tpu.dot_dimension_numbers<[1], [0], [0], [1], [0, 0, 1, 1], [], []>} : vector<128x128xbf16>, vector<128x128xbf16>, vector<128x128xf32> -> vector<128x128xf32>
    %c0_206 = arith.constant 0 : index
    %c0_207 = arith.constant 0 : index
    %204 = vector.load %arg11[%c0_206, %c0_207] : memref<128x128xf32, #tpu.memory_space<vmem>>, vector<128x128xf32>
    %205 = arith.addf %204, %203 : vector<128x128xf32>
    %c0_208 = arith.constant 0 : index
    %c0_209 = arith.constant 0 : index
    %206 = vector.load %arg11[%c0_208, %c0_209] : memref<128x128xf32, #tpu.memory_space<vmem>>, vector<128x128xf32>
    tpu.vector_store %arg11[%c0_208, %c0_209], %205 {strides = array<i32>} : memref<128x128xf32, #tpu.memory_space<vmem>>, vector<128x128xf32>,
    %c0_210 = arith.constant 0 : index
    %c0_211 = arith.constant 0 : index
    %207 = vector.load %arg11[%c0_210, %c0_211] : memref<128x128xf32, #tpu.memory_space<vmem>>, vector<128x128xf32>
    %c0_212 = arith.constant 0 : index
    %c0_213 = arith.constant 0 : index
    %208 = vector.load %arg6[%c0_212, %c0_213] : memref<2x128xf32, #tpu.memory_space<vmem>>, vector<1x128xf32>
    %209 = vector.broadcast %208 : vector<1x128xf32> to vector<128x128xf32>
    %210 = arith.mulf %207, %209 : vector<128x128xf32>
    %c1_214 = arith.constant 1 : index
    %c0_215 = arith.constant 0 : index
    %211 = vector.load %arg6[%c1_214, %c0_215] : memref<2x128xf32, #tpu.memory_space<vmem>>, vector<1x128xf32>
    %212 = vector.broadcast %211 : vector<1x128xf32> to vector<128x128xf32>
    %213 = arith.addf %210, %212 : vector<128x128xf32>
    %c2_i32_216 = arith.constant 2 : i32
    %214 = arith.addi %1, %c2_i32_216 : i32
    %c0_217 = arith.constant 0 : index
    %215 = arith.index_cast %214 : i32 to index
    %c1_218 = arith.constant 1 : index
    %c0_219 = arith.constant 0 : index
    %216 = vector.load %arg2[%c0_217, %215, %c1_218, %c0_219] : memref<1x20x18x128xf32, #tpu.memory_space<vmem>>, vector<1x8x16x128xf32>
    %217 = vector.shape_cast %216 : vector<1x8x16x128xf32> to vector<8x16x128xf32>
    %218 = vector.shape_cast %217 : vector<8x16x128xf32> to vector<128x128xf32>
    %219 = arith.truncf %218 : vector<128x128xf32> to vector<128x128xbf16>
    %c0_220 = arith.constant 0 : index
    %c0_221 = arith.constant 0 : index
    %220 = vector.load %arg7[%c0_220, %c0_221] : memref<128x128xbf16, #tpu.memory_space<vmem>>, vector<128x128xbf16>
    %cst_222 = arith.constant dense<0.000000e+00> : vector<128x128xf32>
    %221 = tpu.matmul %219, %220, %cst_222 {dimension_numbers = #tpu.dot_dimension_numbers<[1], [0], [0], [1], [0, 0, 1, 1], [], []>} : vector<128x128xbf16>, vector<128x128xbf16>, vector<128x128xf32> -> vector<128x128xf32>
    %c0_223 = arith.constant 0 : index
    %c0_224 = arith.constant 0 : index
    %222 = vector.load %arg8[%c0_223, %c0_224] : memref<2x128xf32, #tpu.memory_space<vmem>>, vector<1x128xf32>
    %223 = vector.broadcast %222 : vector<1x128xf32> to vector<128x128xf32>
    %224 = arith.mulf %221, %223 : vector<128x128xf32>
    %c1_225 = arith.constant 1 : index
    %c0_226 = arith.constant 0 : index
    %225 = vector.load %arg8[%c1_225, %c0_226] : memref<2x128xf32, #tpu.memory_space<vmem>>, vector<1x128xf32>
    %226 = vector.broadcast %225 : vector<1x128xf32> to vector<128x128xf32>
    %227 = arith.addf %224, %226 : vector<128x128xf32>
    %228 = arith.addf %213, %227 : vector<128x128xf32>
    %cst_227 = arith.constant 0.000000e+00 : f32
    %229 = vector.broadcast %cst_227 : f32 to vector<128x128xf32>
    %230 = arith.maximumf %228, %229 : vector<128x128xf32>
    %231 = vector.shape_cast %230 : vector<128x128xf32> to vector<8x16x128xf32>
    %c0_228 = arith.constant 0 : index
    %c0_229 = arith.constant 0 : index
    %c0_230 = arith.constant 0 : index
    %c0_231 = arith.constant 0 : index
    %232 = vector.load %arg9[%c0_228, %c0_229, %c0_230, %c0_231] : memref<1x8x16x128xf32, #tpu.memory_space<vmem>>, vector<1x8x16x128xf32>
    %233 = vector.shape_cast %232 : vector<1x8x16x128xf32> to vector<8x16x128xf32>
    %234 = vector.shape_cast %231 : vector<8x16x128xf32> to vector<1x8x16x128xf32>
    tpu.vector_store %arg9[%c0_228, %c0_229, %c0_230, %c0_231], %234 {strides = array<i32>} : memref<1x8x16x128xf32, #tpu.memory_space<vmem>>, vector<1x8x16x128xf32>,
    return
  }
  func.func @transform_0(%arg0: i32, %arg1: i32) -> (i32, i32, i32, i32) {
    %c0_i32 = arith.constant 0 : i32
    %c0_i32_0 = arith.constant 0 : i32
    %c0_i32_1 = arith.constant 0 : i32
    %c0_i32_2 = arith.constant 0 : i32
    return %arg0, %c0_i32, %c0_i32_0, %c0_i32_1 : i32, i32, i32, i32
  }
  func.func @transform_1(%arg0: i32, %arg1: i32) -> (i32, i32, i32) {
    %c0_i32 = arith.constant 0 : i32
    %c0_i32_0 = arith.constant 0 : i32
    %c0_i32_1 = arith.constant 0 : i32
    %c0_i32_2 = arith.constant 0 : i32
    return %c0_i32, %c0_i32_0, %c0_i32_1 : i32, i32, i32
  }
  func.func @transform_2(%arg0: i32, %arg1: i32) -> (i32, i32) {
    %c0_i32 = arith.constant 0 : i32
    %c0_i32_0 = arith.constant 0 : i32
    %c0_i32_1 = arith.constant 0 : i32
    return %c0_i32, %c0_i32_0 : i32, i32
  }
  func.func @transform_3(%arg0: i32, %arg1: i32) -> (i32, i32, i32) {
    %c0_i32 = arith.constant 0 : i32
    %c0_i32_0 = arith.constant 0 : i32
    %c0_i32_1 = arith.constant 0 : i32
    %c0_i32_2 = arith.constant 0 : i32
    return %c0_i32, %c0_i32_0, %c0_i32_1 : i32, i32, i32
  }
  func.func @transform_4(%arg0: i32, %arg1: i32) -> (i32, i32) {
    %c0_i32 = arith.constant 0 : i32
    %c0_i32_0 = arith.constant 0 : i32
    %c0_i32_1 = arith.constant 0 : i32
    return %c0_i32, %c0_i32_0 : i32, i32
  }
  func.func @transform_5(%arg0: i32, %arg1: i32) -> (i32, i32) {
    %c0_i32 = arith.constant 0 : i32
    %c0_i32_0 = arith.constant 0 : i32
    %c0_i32_1 = arith.constant 0 : i32
    return %c0_i32, %c0_i32_0 : i32, i32
  }
  func.func @transform_6(%arg0: i32, %arg1: i32) -> (i32, i32) {
    %c0_i32 = arith.constant 0 : i32
    %c0_i32_0 = arith.constant 0 : i32
    %c0_i32_1 = arith.constant 0 : i32
    return %c0_i32, %c0_i32_0 : i32, i32
  }
  func.func @transform_7(%arg0: i32, %arg1: i32) -> (i32, i32, i32, i32) {
    %c0_i32 = arith.constant 0 : i32
    %c0_i32_0 = arith.constant 0 : i32
    %c0_i32_1 = arith.constant 0 : i32
    return %arg0, %arg1, %c0_i32, %c0_i32_0 : i32, i32, i32, i32
  }
}

</mosaic_0001>

<llo_original>
// kernel: tpu_custom_call.1
$region0: #{tpu_custom_call.1}
  #allocation0 [shape = 'u32[]', space=smem, size = 0x4, offset = 0x4, fixed_abs, tag = 'smem constant byte address 0x4 - core index']
  #allocation1 [shape = 'u32[144,128]{1,0:T(1,128)}', space=vmem, size = 0x12000, scoped, tag = 'internal scratch']
  #allocation2 [shape = 'f32[160,128]{1,0:T(8,128)}', space=vmem, size = 0x14000, scoped, tag = 'scratch operand']
  #allocation3 [shape = 'f32[128,128]{1,0:T(8,128)}', space=vmem, size = 0x10000, scoped, tag = 'scratch operand']
  #allocation4 [shape = 'f32[10,18,128]{2,1,0:T(8,128)}', space=vmem, size = 0x1e000, scoped, tag = 'scratch operand']
  %s0 = inlined_call_operand.vmem [shape: f32[2,20,18,128], index: 0, kind: input, shape index: {}]
  %s1 = inlined_call_operand.vmem [shape: bf16[9,128,128], index: 1, kind: input, shape index: {}]
  %s2 = inlined_call_operand.vmem [shape: f32[2,128], index: 2, kind: input, shape index: {}]
  %s3 = inlined_call_operand.vmem [shape: bf16[9,128,128], index: 3, kind: input, shape index: {}]
  %s4 = inlined_call_operand.vmem [shape: f32[2,128], index: 4, kind: input, shape index: {}]
  %s5 = inlined_call_operand.vmem [shape: bf16[128,128], index: 5, kind: input, shape index: {}]
  %s6 = inlined_call_operand.vmem [shape: f32[2,128], index: 6, kind: input, shape index: {}]
  %s7 = inlined_call_operand.hbm [shape: f32[2,16,16,128], index: 7, kind: output, shape index: {}]
  %s8 = sld [smem:[#allocation0]]
  $region69: #{tpu_custom_call.1} parent=0
    _
  %s10 = ssub.s32 1, %s8
  %s11 = scalar_select 0, %s10, %s8
  $region1: #{tpu_custom_call.1} parent=0
    #allocation5 [shape = 'u8[131072]{0}', space=vmem, size = 0x20000, scoped, tag = 'output window, operand 0']
    #allocation6 [shape = 's32[2]{0}', space=sflag, size = 0x8, scoped, tag = 'scoped memory for tpu_custom_call.1']
    %12 = vsyncpa [#allocation6], 0
    %s13 = scalar_lea.sflag [#allocation6], 1
    %14 = vsyncpa %s13, 0
    loop: start=0, step=1, limit=6
    $region2: #{tpu_custom_call.1} parent=1 // loop_pre_header
      _
    $region3: #{tpu_custom_call.1} parent=1 // loop_header
      %s16 = sphi 0, %s20
      %p17 = scmp.ge.s32.totalorder %s16, 6
      %s23 = sphi 0, %s35
      %s24 = sphi 0, %s31
      %s25 = sphi 0, %s23
      %s26 = sphi 0, %s24
      %s27 = sphi 0, %s25
      %s28 = sphi 0, %s26
      %s38 = sphi 0, %s40
      %s41 = sphi 0, %s38
      %s42 = sphi 0, %s41
      %s58 = sphi 0, %s42
      %s62 = sphi 0, %s62
      %s64 = sphi 0, %s62
      %s65 = sphi 0, %s64
      %s79 = sphi 0, %s65
      %s83 = sphi 0, %s83
      %s85 = sphi 0, %s83
      %s86 = sphi 0, %s85
      %s100 = sphi 0, %s86
      %s104 = sphi 0, %s104
      %s106 = sphi 0, %s104
      %s107 = sphi 0, %s106
      %s121 = sphi 0, %s107
      %s125 = sphi 0, %s125
      %s127 = sphi 0, %s125
      %s128 = sphi 0, %s127
      %s142 = sphi 0, %s128
      %s146 = sphi 0, %s146
      %s148 = sphi 0, %s146
      %s149 = sphi 0, %s148
      %s163 = sphi 0, %s149
      %s167 = sphi 0, %s167
      %s169 = sphi 0, %s167
      %s170 = sphi 0, %s169
      %s184 = sphi 0, %s170
      %s192 = sphi 0, %s194
      %s195 = sphi 0, %s192
      %s196 = sphi 0, %s195
      %s212 = sphi 0, %s196
    $region4: #{tpu_custom_call.1} parent=1 // loop_header_branch
      %19 = sbr.rel (%p17) target = $region8
    $region5: #{tpu_custom_call.1} parent=1 // loop_body
      %s21 = ssub.s32 %s16, 1
      %s22 = ssub.s32 %s16, 2
      %s29 = sadd.s32 1, %s24
      %p30 = scmp.ge.s32.totalorder %s29, 2
      %s31 = scalar_select %p30, 0, %s29
      %s32 = sadd.s32 1, %s23
      %s33 = scalar_select %p30, %s32, %s23
      %p34 = scmp.ge.s32.totalorder %s33, 2
      %s35 = scalar_select %p34, 0, %s33
      %s36 = ssub.s32 %s23, %s35
      %p37 = scmp.eq.s32.totalorder %s36, 0
      %s39 = sadd.s32 %s38, 1
      %s40 = scalar_select %p37, %s38, %s39
      %p43 = pneg %p37
      %p44 = scmp.eq.s32.totalorder %s16, 3
      %p45 = por %p43, %p44
      %p46 = scmp.ne.s32.totalorder %s38, %s41
      %p47 = scmp.eq.s32.totalorder %s16, 0
      %p48 = por %p46, %p47
      %p49 = scmp.ne.s32.totalorder %s38, %s41
      %p50 = scmp.eq.s32.totalorder %s21, 3
      %p51 = por %p49, %p50
      %p52 = scmp.ne.s32.totalorder %s41, %s42
      %p53 = scmp.eq.s32.totalorder %s21, 0
      %p54 = por %p52, %p53
      %p55 = scmp.ne.s32.totalorder %s41, %s42
      %p56 = scmp.eq.s32.totalorder %s22, 3
      %p57 = por %p55, %p56
      %p59 = scmp.ne.s32.totalorder %s42, %s58
      %p60 = scmp.eq.s32.totalorder %s22, 0
      %p61 = por %p59, %p60
      %s63 = sadd.s32 %s62, 1
      %p66 = scmp.eq.s32.totalorder %s16, 3
      %p67 = scmp.ne.s32.totalorder %s62, %s64
      %p68 = scmp.eq.s32.totalorder %s16, 0
      %p69 = por %p67, %p68
      %p70 = scmp.ne.s32.totalorder %s62, %s64
      %p71 = scmp.eq.s32.totalorder %s21, 3
      %p72 = por %p70, %p71
      %p73 = scmp.ne.s32.totalorder %s64, %s65
      %p74 = scmp.eq.s32.totalorder %s21, 0
      %p75 = por %p73, %p74
      %p76 = scmp.ne.s32.totalorder %s64, %s65
      %p77 = scmp.eq.s32.totalorder %s22, 3
      %p78 = por %p76, %p77
      %p80 = scmp.ne.s32.totalorder %s65, %s79
      %p81 = scmp.eq.s32.totalorder %s22, 0
      %p82 = por %p80, %p81
      %s84 = sadd.s32 %s83, 1
      %p87 = scmp.eq.s32.totalorder %s16, 3
      %p88 = scmp.ne.s32.totalorder %s83, %s85
      %p89 = scmp.eq.s32.totalorder %s16, 0
      %p90 = por %p88, %p89
      %p91 = scmp.ne.s32.totalorder %s83, %s85
      %p92 = scmp.eq.s32.totalorder %s21, 3
      %p93 = por %p91, %p92
      %p94 = scmp.ne.s32.totalorder %s85, %s86
      %p95 = scmp.eq.s32.totalorder %s21, 0
      %p96 = por %p94, %p95
      %p97 = scmp.ne.s32.totalorder %s85, %s86
      %p98 = scmp.eq.s32.totalorder %s22, 3
      %p99 = por %p97, %p98
      %p101 = scmp.ne.s32.totalorder %s86, %s100
      %p102 = scmp.eq.s32.totalorder %s22, 0
      %p103 = por %p101, %p102
      %s105 = sadd.s32 %s104, 1
      %p108 = scmp.eq.s32.totalorder %s16, 3
      %p109 = scmp.ne.s32.totalorder %s104, %s106
      %p110 = scmp.eq.s32.totalorder %s16, 0
      %p111 = por %p109, %p110
      %p112 = scmp.ne.s32.totalorder %s104, %s106
      %p113 = scmp.eq.s32.totalorder %s21, 3
      %p114 = por %p112, %p113
      %p115 = scmp.ne.s32.totalorder %s106, %s107
      %p116 = scmp.eq.s32.totalorder %s21, 0
      %p117 = por %p115, %p116
      %p118 = scmp.ne.s32.totalorder %s106, %s107
      %p119 = scmp.eq.s32.totalorder %s22, 3
      %p120 = por %p118, %p119
      %p122 = scmp.ne.s32.totalorder %s107, %s121
      %p123 = scmp.eq.s32.totalorder %s22, 0
      %p124 = por %p122, %p123
      %s126 = sadd.s32 %s125, 1
      %p129 = scmp.eq.s32.totalorder %s16, 3
      %p130 = scmp.ne.s32.totalorder %s125, %s127
      %p131 = scmp.eq.s32.totalorder %s16, 0
      %p132 = por %p130, %p131
      %p133 = scmp.ne.s32.totalorder %s125, %s127
      %p134 = scmp.eq.s32.totalorder %s21, 3
      %p135 = por %p133, %p134
      %p136 = scmp.ne.s32.totalorder %s127, %s128
      %p137 = scmp.eq.s32.totalorder %s21, 0
      %p138 = por %p136, %p137
      %p139 = scmp.ne.s32.totalorder %s127, %s128
      %p140 = scmp.eq.s32.totalorder %s22, 3
      %p141 = por %p139, %p140
      %p143 = scmp.ne.s32.totalorder %s128, %s142
      %p144 = scmp.eq.s32.totalorder %s22, 0
      %p145 = por %p143, %p144
      %s147 = sadd.s32 %s146, 1
      %p150 = scmp.eq.s32.totalorder %s16, 3
      %p151 = scmp.ne.s32.totalorder %s146, %s148
      %p152 = scmp.eq.s32.totalorder %s16, 0
      %p153 = por %p151, %p152
      %p154 = scmp.ne.s32.totalorder %s146, %s148
      %p155 = scmp.eq.s32.totalorder %s21, 3
      %p156 = por %p154, %p155
      %p157 = scmp.ne.s32.totalorder %s148, %s149
      %p158 = scmp.eq.s32.totalorder %s21, 0
      %p159 = por %p157, %p158
      %p160 = scmp.ne.s32.totalorder %s148, %s149
      %p161 = scmp.eq.s32.totalorder %s22, 3
      %p162 = por %p160, %p161
      %p164 = scmp.ne.s32.totalorder %s149, %s163
      %p165 = scmp.eq.s32.totalorder %s22, 0
      %p166 = por %p164, %p165
      %s168 = sadd.s32 %s167, 1
      %p171 = scmp.eq.s32.totalorder %s16, 3
      %p172 = scmp.ne.s32.totalorder %s167, %s169
      %p173 = scmp.eq.s32.totalorder %s16, 0
      %p174 = por %p172, %p173
      %p175 = scmp.ne.s32.totalorder %s167, %s169
      %p176 = scmp.eq.s32.totalorder %s21, 3
      %p177 = por %p175, %p176
      %p178 = scmp.ne.s32.totalorder %s169, %s170
      %p179 = scmp.eq.s32.totalorder %s21, 0
      %p180 = por %p178, %p179
      %p181 = scmp.ne.s32.totalorder %s169, %s170
      %p182 = scmp.eq.s32.totalorder %s22, 3
      %p183 = por %p181, %p182
      %p185 = scmp.ne.s32.totalorder %s170, %s184
      %p186 = scmp.eq.s32.totalorder %s22, 0
      %p187 = por %p185, %p186
      %s188 = ssub.s32 %s23, %s35
      %s189 = ssub.s32 %s24, %s31
      %s190 = sor.u32 %s188, %s189
      %p191 = scmp.eq.s32.totalorder %s190, 0
      %s193 = sadd.s32 %s192, 1
      %s194 = scalar_select %p191, %s192, %s193
      %p197 = pneg %p191
      %p198 = scmp.eq.s32.totalorder %s16, 3
      %p199 = por %p197, %p198
      %p200 = scmp.ne.s32.totalorder %s192, %s195
      %p201 = scmp.eq.s32.totalorder %s16, 0
      %p202 = por %p200, %p201
      %p203 = scmp.ne.s32.totalorder %s192, %s195
      %p204 = scmp.eq.s32.totalorder %s21, 3
      %p205 = por %p203, %p204
      %p206 = scmp.ne.s32.totalorder %s195, %s196
      %p207 = scmp.eq.s32.totalorder %s21, 0
      %p208 = por %p206, %p207
      %p209 = scmp.ne.s32.totalorder %s195, %s196
      %p210 = scmp.eq.s32.totalorder %s22, 3
      %p211 = por %p209, %p210
      %p213 = scmp.ne.s32.totalorder %s196, %s212
      %p214 = scmp.eq.s32.totalorder %s22, 0
      %p215 = por %p213, %p214
      %p216 = scmp.le.s32.totalorder 1, %s16
      %p217 = scmp.lt.s32.totalorder %s16, 5
      %p218 = pnand %p216, %p217
      %p219 = pneg %p218
      // Predicated region
      $region9: #{tpu_custom_call.1} parent=5 // pred_check
        _
      $region10: #{tpu_custom_call.1} parent=5 // pred_check_branch
        %221 = sbr.rel (%p218) target = $region12
      $region11: #{tpu_custom_call.1} parent=5 // pred_region
        %s222 = ssub.s32 %s16, 1
        // Predicated region
        $region13: #{tpu_custom_call.1} parent=11 // pred_check
          %p223 = pneg %p75
        $region14: #{tpu_custom_call.1} parent=11 // pred_check_branch
          %225 = sbr.rel (%p223) target = $region16
        $region15: #{tpu_custom_call.1} parent=11 // pred_region
          _
        $region16: #{tpu_custom_call.1} parent=11 // pred_fallthru
          _
        // Predicated region
        $region17: #{tpu_custom_call.1} parent=11 // pred_check
          %p226 = pneg %p96
        $region18: #{tpu_custom_call.1} parent=11 // pred_check_branch
          %228 = sbr.rel (%p226) target = $region20
        $region19: #{tpu_custom_call.1} parent=11 // pred_region
          _
        $region20: #{tpu_custom_call.1} parent=11 // pred_fallthru
          _
        // Predicated region
        $region21: #{tpu_custom_call.1} parent=11 // pred_check
          %p229 = pneg %p117
        $region22: #{tpu_custom_call.1} parent=11 // pred_check_branch
          %231 = sbr.rel (%p229) target = $region24
        $region23: #{tpu_custom_call.1} parent=11 // pred_region
          _
        $region24: #{tpu_custom_call.1} parent=11 // pred_fallthru
          _
        // Predicated region
        $region25: #{tpu_custom_call.1} parent=11 // pred_check
          %p232 = pneg %p138
        $region26: #{tpu_custom_call.1} parent=11 // pred_check_branch
          %234 = sbr.rel (%p232) target = $region28
        $region27: #{tpu_custom_call.1} parent=11 // pred_region
          _
        $region28: #{tpu_custom_call.1} parent=11 // pred_fallthru
          _
        // Predicated region
        $region29: #{tpu_custom_call.1} parent=11 // pred_check
          %p235 = pneg %p159
        $region30: #{tpu_custom_call.1} parent=11 // pred_check_branch
          %237 = sbr.rel (%p235) target = $region32
        $region31: #{tpu_custom_call.1} parent=11 // pred_region
          _
        $region32: #{tpu_custom_call.1} parent=11 // pred_fallthru
          _
        // Predicated region
        $region33: #{tpu_custom_call.1} parent=11 // pred_check
          %p238 = pneg %p180
        $region34: #{tpu_custom_call.1} parent=11 // pred_check_branch
          %240 = sbr.rel (%p238) target = $region36
        $region35: #{tpu_custom_call.1} parent=11 // pred_region
          _
        $region36: #{tpu_custom_call.1} parent=11 // pred_fallthru
          _
      $region12: #{tpu_custom_call.1} parent=5 // pred_fallthru
        _
      %p241 = scmp.lt.s32.totalorder %s16, 4
      // Predicated region
      $region37: #{tpu_custom_call.1} parent=5 // pred_check
        %p242 = pneg %p241
      $region38: #{tpu_custom_call.1} parent=5 // pred_check_branch
        %244 = sbr.rel (%p242) target = $region40
      $region39: #{tpu_custom_call.1} parent=5 // pred_region
        // Predicated region
        $region41: #{tpu_custom_call.1} parent=39 // pred_check
          %p245 = pneg %p48
        $region42: #{tpu_custom_call.1} parent=39 // pred_check_branch
          %247 = sbr.rel (%p245) target = $region44
        $region43: #{tpu_custom_call.1} parent=39 // pred_region
          %p248 = scmp.lt.s32.totalorder %s23, 1
          %s249 = scalar_select %p248, %s23, 1
          %s250 = smul.addr %s249, 60
          %s251 = smul.addr %s250, 8
          %s252 = scalar_lea.vmem %s0, %s251
        $region44: #{tpu_custom_call.1} parent=39 // pred_fallthru
          _
      $region40: #{tpu_custom_call.1} parent=5 // pred_fallthru
        _
      %p253 = scmp.le.s32.totalorder 1, %s16
      %p254 = scmp.lt.s32.totalorder %s16, 5
      %p255 = pnand %p253, %p254
      %p256 = pneg %p255
      // Predicated region
      $region45: #{tpu_custom_call.1} parent=5 // pred_check
        _
      $region46: #{tpu_custom_call.1} parent=5 // pred_check_branch
        %258 = sbr.rel (%p255) target = $region48
      $region47: #{tpu_custom_call.1} parent=5 // pred_region
        %s259 = ssub.s32 %s16, 1
        %p260 = scmp.lt.s32.totalorder %s25, 1
        %s261 = scalar_select %p260, %s25, 1
        %s262 = smul.addr %s261, 60
        %s263 = smul.addr %s262, 8
        %s264 = scalar_lea.vmem %s0, %s263
        %p265 = pneg %p54
        %p266 = pneg %p51
        %p267 = pneg %p75
        %p268 = pneg %p72
        %p269 = pneg %p96
        %p270 = pneg %p93
        %p271 = pneg %p117
        %p272 = pneg %p114
        %p273 = pneg %p138
        %p274 = pneg %p135
        %p275 = pneg %p159
        %p276 = pneg %p156
        %p277 = pneg %p180
        %p278 = pneg %p177
        %p279 = pneg %p208
        %p280 = pneg %p205
        %s281 = sand.u32 %s195, 1
        %s282 = scalar_lea.sflag [#allocation6], %s281
        %s283 = sand.u32 %s195, 1
        %s284 = smul.addr %s283, 128
        %s285 = scalar_lea.vmem [#allocation5], %s284
        %p286 = scmp.lt.s32.totalorder %s25, 1
        %s287 = scalar_select %p286, %s25, 1
        %s288 = smul.addr %s287, 60
        %s289 = smul.addr %s288, 8
        %s290 = scalar_lea.vmem %s0, %s289
        %s291 = smul.u32 8, %s26
        %s293 = smul.u32 %s26, 8
        %s294 = smul.u32 %s293, 24
        %s295 = scalar_lea.vmem %s290, %s294
        %v296 = vld [vmem:[%s295] sm:$0xff]
        %v297 = vld [vmem:[%s295 + $0x8] sm:$0xff]
        %v298 = vld [vmem:[%s295 + $0x18] sm:$0xff]
        %v299 = vld [vmem:[%s295 + $0x20] sm:$0xff]
        %v300 = vld [vmem:[%s295 + $0x30] sm:$0xff]
        %v301 = vld [vmem:[%s295 + $0x38] sm:$0xff]
        %v302 = vld [vmem:[%s295 + $0x48] sm:$0xff]
        %v303 = vld [vmem:[%s295 + $0x50] sm:$0xff]
        %v304 = vld [vmem:[%s295 + $0x60] sm:$0xff]
        %v305 = vld [vmem:[%s295 + $0x68] sm:$0xff]
        %v306 = vld [vmem:[%s295 + $0x78] sm:$0xff]
        %v307 = vld [vmem:[%s295 + $0x80] sm:$0xff]
        %v308 = vld [vmem:[%s295 + $0x90] sm:$0xff]
        %v309 = vld [vmem:[%s295 + $0x98] sm:$0xff]
        %v310 = vld [vmem:[%s295 + $0xa8] sm:$0xff]
        %v311 = vld [vmem:[%s295 + $0xb0] sm:$0xff]
        %v312 = vld [vmem:[%s295 + $0xc0] sm:$0xff]
        %v313 = vld [vmem:[%s295 + $0xc8] sm:$0xff]
        %v314 = vld [vmem:[%s295 + $0xd8] sm:$0xff]
        %v315 = vld [vmem:[%s295 + $0xe0] sm:$0xff]
        %v316 = vpack.c.bf16 %v297, %v296
        %v317 = vpack.c.bf16 %v299, %v298
        %v318 = vpack.c.bf16 %v301, %v300
        %v319 = vpack.c.bf16 %v303, %v302
        %v320 = vpack.c.bf16 %v305, %v304
        %v321 = vpack.c.bf16 %v307, %v306
        %v322 = vpack.c.bf16 %v309, %v308
        %v323 = vpack.c.bf16 %v311, %v310
        %v324 = vpack.c.bf16 %v313, %v312
        %v325 = vpack.c.bf16 %v315, %v314
        %v326 = vld [vmem:[%s1] sm:$0xf]
        %v327 = vld [vmem:[%s1 + $0x4] sm:$0xf]
        %v328 = vld [vmem:[%s1 + $0x8] sm:$0xf]
        %v329 = vld [vmem:[%s1 + $0xc] sm:$0xf]
        %v330 = vld [vmem:[%s1 + $0x10] sm:$0xf]
        %v331 = vld [vmem:[%s1 + $0x14] sm:$0xf]
        %v332 = vld [vmem:[%s1 + $0x18] sm:$0xf]
        %v333 = vld [vmem:[%s1 + $0x1c] sm:$0xf]
        %v334 = vld [vmem:[%s1 + $0x20] sm:$0xf]
        %v335 = vld [vmem:[%s1 + $0x24] sm:$0xf]
        %v336 = vld [vmem:[%s1 + $0x28] sm:$0xf]
        %v337 = vld [vmem:[%s1 + $0x2c] sm:$0xf]
        %v338 = vld [vmem:[%s1 + $0x30] sm:$0xf]
        %v339 = vld [vmem:[%s1 + $0x34] sm:$0xf]
        %v340 = vld [vmem:[%s1 + $0x38] sm:$0xf]
        %v341 = vld [vmem:[%s1 + $0x3c] sm:$0xf]
        %v358 = vunpack.c.l.b16 %v326
        %v359 = vunpack.c.l.b16 %v327
        %v360 = vunpack.c.l.b16 %v328
        %v361 = vunpack.c.l.b16 %v329
        %v362 = vunpack.c.l.b16 %v330
        %v363 = vunpack.c.l.b16 %v331
        %v364 = vunpack.c.l.b16 %v332
        %v365 = vunpack.c.l.b16 %v333
        %v366 = vunpack.c.l.b16 %v334
        %v367 = vunpack.c.l.b16 %v335
        %v368 = vunpack.c.l.b16 %v336
        %v369 = vunpack.c.l.b16 %v337
        %v370 = vunpack.c.l.b16 %v338
        %v371 = vunpack.c.l.b16 %v339
        %v372 = vunpack.c.l.b16 %v340
        %v373 = vunpack.c.l.b16 %v341
        %v374 = vpack.c.b16 %v359, %v358
        %v375 = vpack.c.b16 %v361, %v360
        %v376 = vpack.c.b16 %v363, %v362
        %v377 = vpack.c.b16 %v365, %v364
        %v378 = vpack.c.b16 %v367, %v366
        %v379 = vpack.c.b16 %v369, %v368
        %v380 = vpack.c.b16 %v371, %v370
        %v381 = vpack.c.b16 %v373, %v372
        %390 = vmatprep.subr.bf16.mxu0 0
        %391 = vmatpush1.bf16.msra.mxu0 %v381
        %392 = vmatprep.subr.bf16.mxu0 0
        %393 = vmatpush1.bf16.msra.mxu0 %v380
        %394 = vmatprep.subr.bf16.mxu0 0
        %395 = vmatpush1.bf16.msra.mxu0 %v379
        %396 = vmatprep.subr.bf16.mxu0 0
        %397 = vmatpush1.bf16.msra.mxu0 %v378
        %398 = vmatprep.subr.bf16.mxu0 0
        %399 = vmatpush1.bf16.msra.mxu0 %v377
        %400 = vmatprep.subr.bf16.mxu0 0
        %401 = vmatpush1.bf16.msra.mxu0 %v376
        %402 = vmatprep.subr.bf16.mxu0 0
        %403 = vmatpush1.bf16.msra.mxu0 %v375
        %404 = vmatprep.subr.bf16.mxu0 0
        %405 = vmatpush1.bf16.msra.mxu0 %v374
        %406 = vmatprep.subr.bf16.mxu0 0
        %407 = vmatpush2.bf16.msra.mxu0 0
        %408 = vmatprep.subr.bf16.mxu0 0
        %409 = vmatpush2.bf16.msra.mxu0 0
        %410 = vmatprep.subr.bf16.mxu0 0
        %411 = vmatpush2.bf16.msra.mxu0 0
        %412 = vmatprep.subr.bf16.mxu0 0
        %413 = vmatpush2.bf16.msra.mxu0 0
        %414 = vmatprep.subr.bf16.mxu0 0
        %415 = vmatpush2.bf16.msra.mxu0 0
        %416 = vmatprep.subr.bf16.mxu0 0
        %417 = vmatpush2.bf16.msra.mxu0 0
        %418 = vmatprep.subr.bf16.mxu0 0
        %419 = vmatpush2.bf16.msra.mxu0 0
        %420 = vmatprep.subr.bf16.mxu0 0
        %421 = vmatpush2.bf16.msra.mxu0 0
        %422 = vmatprep.mubr.bf16.mxu0 0
        %423 = vmatmul.mubr.bf16.gmra.mxu0 %v316
        %v424 = vpop.f32.mrf.mxu0
        %v425 = vadd.f32 0.0, %v424
        %v426 = vpop.f32.mrf.mxu0
        %v427 = vpop.f32.mrf.mxu0
        %v428 = vadd.f32 0.0, %v427
        %v429 = vpop.f32.mrf.mxu0
        %430 = vmatprep.mubr.bf16.mxu0 0
        %431 = vmatmul.mubr.bf16.gmra.mxu0 %v317
        %v432 = vpop.f32.mrf.mxu0
        %v433 = vadd.f32 0.0, %v432
        %v434 = vpop.f32.mrf.mxu0
        %v435 = vpop.f32.mrf.mxu0
        %v436 = vadd.f32 0.0, %v435
        %v437 = vpop.f32.mrf.mxu0
        %438 = vmatprep.mubr.bf16.mxu0 0
        %439 = vmatmul.mubr.bf16.gmra.mxu0 %v318
        %v440 = vpop.f32.mrf.mxu0
        %v441 = vadd.f32 0.0, %v440
        %v442 = vpop.f32.mrf.mxu0
        %v443 = vpop.f32.mrf.mxu0
        %v444 = vadd.f32 0.0, %v443
        %v445 = vpop.f32.mrf.mxu0
        %446 = vmatprep.mubr.bf16.mxu0 0
        %447 = vmatmul.mubr.bf16.gmra.mxu0 %v319
        %v448 = vpop.f32.mrf.mxu0
        %v449 = vadd.f32 0.0, %v448
        %v450 = vpop.f32.mrf.mxu0
        %v451 = vpop.f32.mrf.mxu0
        %v452 = vadd.f32 0.0, %v451
        %v453 = vpop.f32.mrf.mxu0
        %454 = vmatprep.mubr.bf16.mxu0 0
        %455 = vmatmul.mubr.bf16.gmra.mxu0 %v320
        %v456 = vpop.f32.mrf.mxu0
        %v457 = vadd.f32 0.0, %v456
        %v458 = vpop.f32.mrf.mxu0
        %v459 = vpop.f32.mrf.mxu0
        %v460 = vadd.f32 0.0, %v459
        %v461 = vpop.f32.mrf.mxu0
        %462 = vmatprep.mubr.bf16.mxu0 0
        %463 = vmatmul.mubr.bf16.gmra.mxu0 %v321
        %v464 = vpop.f32.mrf.mxu0
        %v465 = vadd.f32 0.0, %v464
        %v466 = vpop.f32.mrf.mxu0
        %v467 = vpop.f32.mrf.mxu0
        %v468 = vadd.f32 0.0, %v467
        %v469 = vpop.f32.mrf.mxu0
        %470 = vmatprep.mubr.bf16.mxu0 0
        %471 = vmatmul.mubr.bf16.gmra.mxu0 %v322
        %v472 = vpop.f32.mrf.mxu0
        %v473 = vadd.f32 0.0, %v472
        %v474 = vpop.f32.mrf.mxu0
        %v475 = vpop.f32.mrf.mxu0
        %v476 = vadd.f32 0.0, %v475
        %v477 = vpop.f32.mrf.mxu0
        %478 = vmatprep.mubr.bf16.mxu0 0
        %479 = vmatmul.mubr.bf16.gmra.mxu0 %v323
        %v480 = vpop.f32.mrf.mxu0
        %v481 = vadd.f32 0.0, %v480
        %v482 = vpop.f32.mrf.mxu0
        %v483 = vpop.f32.mrf.mxu0
        %v484 = vadd.f32 0.0, %v483
        %v485 = vpop.f32.mrf.mxu0
        %486 = vmatprep.mubr.bf16.mxu0 0
        %487 = vmatmul.mubr.bf16.gmra.mxu0 %v324
        %v488 = vpop.f32.mrf.mxu0
        %v489 = vadd.f32 0.0, %v488
        %v490 = vpop.f32.mrf.mxu0
        %v491 = vpop.f32.mrf.mxu0
        %v492 = vadd.f32 0.0, %v491
        %v493 = vpop.f32.mrf.mxu0
        %494 = vmatprep.mubr.bf16.mxu0 0
        %495 = vmatmul.mubr.bf16.gmra.mxu0 %v325
        %v496 = vpop.f32.mrf.mxu0
        %v497 = vadd.f32 0.0, %v496
        %v498 = vpop.f32.mrf.mxu0
        %v499 = vpop.f32.mrf.mxu0
        %v500 = vadd.f32 0.0, %v499
        %v501 = vpop.f32.mrf.mxu0
        %502 = vdwg.mxu0
        %503 = vst [vmem:[#allocation2] sm:$0xff] %v425
        %504 = vst [vmem:[#allocation2 + $0x8] sm:$0xff] %v428
        %505 = vst [vmem:[#allocation2 + $0x10] sm:$0xff] %v433
        %506 = vst [vmem:[#allocation2 + $0x18] sm:$0xff] %v436
        %507 = vst [vmem:[#allocation2 + $0x20] sm:$0xff] %v441
        %508 = vst [vmem:[#allocation2 + $0x28] sm:$0xff] %v444
        %509 = vst [vmem:[#allocation2 + $0x30] sm:$0xff] %v449
        %510 = vst [vmem:[#allocation2 + $0x38] sm:$0xff] %v452
        %511 = vst [vmem:[#allocation2 + $0x40] sm:$0xff] %v457
        %512 = vst [vmem:[#allocation2 + $0x48] sm:$0xff] %v460
        %513 = vst [vmem:[#allocation2 + $0x50] sm:$0xff] %v465
        %514 = vst [vmem:[#allocation2 + $0x58] sm:$0xff] %v468
        %515 = vst [vmem:[#allocation2 + $0x60] sm:$0xff] %v473
        %516 = vst [vmem:[#allocation2 + $0x68] sm:$0xff] %v476
        %517 = vst [vmem:[#allocation2 + $0x70] sm:$0xff] %v481
        %518 = vst [vmem:[#allocation2 + $0x78] sm:$0xff] %v484
        %519 = vst [vmem:[#allocation2 + $0x80] sm:$0xff] %v489
        %520 = vst [vmem:[#allocation2 + $0x88] sm:$0xff] %v492
        %521 = vst [vmem:[#allocation2 + $0x90] sm:$0xff] %v497
        %522 = vst [vmem:[#allocation2 + $0x98] sm:$0xff] %v500
        %v523 = vld [vmem:[%s295 + $0x1] sm:$0xff]
        %v524 = vld [vmem:[%s295 + $0x9] sm:$0xff]
        %v525 = vld [vmem:[%s295 + $0x19] sm:$0xff]
        %v526 = vld [vmem:[%s295 + $0x21] sm:$0xff]
        %v527 = vld [vmem:[%s295 + $0x31] sm:$0xff]
        %v528 = vld [vmem:[%s295 + $0x39] sm:$0xff]
        %v529 = vld [vmem:[%s295 + $0x49] sm:$0xff]
        %v530 = vld [vmem:[%s295 + $0x51] sm:$0xff]
        %v531 = vld [vmem:[%s295 + $0x61] sm:$0xff]
        %v532 = vld [vmem:[%s295 + $0x69] sm:$0xff]
        %v533 = vld [vmem:[%s295 + $0x79] sm:$0xff]
        %v534 = vld [vmem:[%s295 + $0x81] sm:$0xff]
        %v535 = vld [vmem:[%s295 + $0x91] sm:$0xff]
        %v536 = vld [vmem:[%s295 + $0x99] sm:$0xff]
        %v537 = vld [vmem:[%s295 + $0xa9] sm:$0xff]
        %v538 = vld [vmem:[%s295 + $0xb1] sm:$0xff]
        %v539 = vld [vmem:[%s295 + $0xc1] sm:$0xff]
        %v540 = vld [vmem:[%s295 + $0xc9] sm:$0xff]
        %v541 = vld [vmem:[%s295 + $0xd9] sm:$0xff]
        %v542 = vld [vmem:[%s295 + $0xe1] sm:$0xff]
        %v543 = vpack.c.bf16 %v524, %v523
        %v544 = vpack.c.bf16 %v526, %v525
        %v545 = vpack.c.bf16 %v528, %v527
        %v546 = vpack.c.bf16 %v530, %v529
        %v547 = vpack.c.bf16 %v532, %v531
        %v548 = vpack.c.bf16 %v534, %v533
        %v549 = vpack.c.bf16 %v536, %v535
        %v550 = vpack.c.bf16 %v538, %v537
        %v551 = vpack.c.bf16 %v540, %v539
        %v552 = vpack.c.bf16 %v542, %v541
        %s553 = scalar_lea.vmem %s1, 64
        %v554 = vld [vmem:[%s553] sm:$0xf]
        %v555 = vld [vmem:[%s553 + $0x4] sm:$0xf]
        %v556 = vld [vmem:[%s553 + $0x8] sm:$0xf]
        %v557 = vld [vmem:[%s553 + $0xc] sm:$0xf]
        %v558 = vld [vmem:[%s553 + $0x10] sm:$0xf]
        %v559 = vld [vmem:[%s553 + $0x14] sm:$0xf]
        %v560 = vld [vmem:[%s553 + $0x18] sm:$0xf]
        %v561 = vld [vmem:[%s553 + $0x1c] sm:$0xf]
        %v562 = vld [vmem:[%s553 + $0x20] sm:$0xf]
        %v563 = vld [vmem:[%s553 + $0x24] sm:$0xf]
        %v564 = vld [vmem:[%s553 + $0x28] sm:$0xf]
        %v565 = vld [vmem:[%s553 + $0x2c] sm:$0xf]
        %v566 = vld [vmem:[%s553 + $0x30] sm:$0xf]
        %v567 = vld [vmem:[%s553 + $0x34] sm:$0xf]
        %v568 = vld [vmem:[%s553 + $0x38] sm:$0xf]
        %v569 = vld [vmem:[%s553 + $0x3c] sm:$0xf]
        %v586 = vunpack.c.l.b16 %v554
        %v587 = vunpack.c.l.b16 %v555
        %v588 = vunpack.c.l.b16 %v556
        %v589 = vunpack.c.l.b16 %v557
        %v590 = vunpack.c.l.b16 %v558
        %v591 = vunpack.c.l.b16 %v559
        %v592 = vunpack.c.l.b16 %v560
        %v593 = vunpack.c.l.b16 %v561
        %v594 = vunpack.c.l.b16 %v562
        %v595 = vunpack.c.l.b16 %v563
        %v596 = vunpack.c.l.b16 %v564
        %v597 = vunpack.c.l.b16 %v565
        %v598 = vunpack.c.l.b16 %v566
        %v599 = vunpack.c.l.b16 %v567
        %v600 = vunpack.c.l.b16 %v568
        %v601 = vunpack.c.l.b16 %v569
        %v602 = vpack.c.b16 %v587, %v586
        %v603 = vpack.c.b16 %v589, %v588
        %v604 = vpack.c.b16 %v591, %v590
        %v605 = vpack.c.b16 %v593, %v592
        %v606 = vpack.c.b16 %v595, %v594
        %v607 = vpack.c.b16 %v597, %v596
        %v608 = vpack.c.b16 %v599, %v598
        %v609 = vpack.c.b16 %v601, %v600
        %618 = vmatprep.subr.bf16.mxu0 0
        %619 = vmatpush1.bf16.msra.mxu0 %v609
        %620 = vmatprep.subr.bf16.mxu0 0
        %621 = vmatpush1.bf16.msra.mxu0 %v608
        %622 = vmatprep.subr.bf16.mxu0 0
        %623 = vmatpush1.bf16.msra.mxu0 %v607
        %624 = vmatprep.subr.bf16.mxu0 0
        %625 = vmatpush1.bf16.msra.mxu0 %v606
        %626 = vmatprep.subr.bf16.mxu0 0
        %627 = vmatpush1.bf16.msra.mxu0 %v605
        %628 = vmatprep.subr.bf16.mxu0 0
        %629 = vmatpush1.bf16.msra.mxu0 %v604
        %630 = vmatprep.subr.bf16.mxu0 0
        %631 = vmatpush1.bf16.msra.mxu0 %v603
        %632 = vmatprep.subr.bf16.mxu0 0
        %633 = vmatpush1.bf16.msra.mxu0 %v602
        %634 = vmatprep.subr.bf16.mxu0 0
        %635 = vmatpush2.bf16.msra.mxu0 0
        %636 = vmatprep.subr.bf16.mxu0 0
        %637 = vmatpush2.bf16.msra.mxu0 0
        %638 = vmatprep.subr.bf16.mxu0 0
        %639 = vmatpush2.bf16.msra.mxu0 0
        %640 = vmatprep.subr.bf16.mxu0 0
        %641 = vmatpush2.bf16.msra.mxu0 0
        %642 = vmatprep.subr.bf16.mxu0 0
        %643 = vmatpush2.bf16.msra.mxu0 0
        %644 = vmatprep.subr.bf16.mxu0 0
        %645 = vmatpush2.bf16.msra.mxu0 0
        %646 = vmatprep.subr.bf16.mxu0 0
        %647 = vmatpush2.bf16.msra.mxu0 0
        %648 = vmatprep.subr.bf16.mxu0 0
        %649 = vmatpush2.bf16.msra.mxu0 0
        %650 = vmatprep.mubr.bf16.mxu0 0
        %651 = vmatmul.mubr.bf16.gmra.mxu0 %v543
        %v652 = vpop.f32.mrf.mxu0
        %v653 = vadd.f32 0.0, %v652
        %v654 = vpop.f32.mrf.mxu0
        %v655 = vpop.f32.mrf.mxu0
        %v656 = vadd.f32 0.0, %v655
        %v657 = vpop.f32.mrf.mxu0
        %658 = vmatprep.mubr.bf16.mxu0 0
        %659 = vmatmul.mubr.bf16.gmra.mxu0 %v544
        %v660 = vpop.f32.mrf.mxu0
        %v661 = vadd.f32 0.0, %v660
        %v662 = vpop.f32.mrf.mxu0
        %v663 = vpop.f32.mrf.mxu0
        %v664 = vadd.f32 0.0, %v663
        %v665 = vpop.f32.mrf.mxu0
        %666 = vmatprep.mubr.bf16.mxu0 0
        %667 = vmatmul.mubr.bf16.gmra.mxu0 %v545
        %v668 = vpop.f32.mrf.mxu0
        %v669 = vadd.f32 0.0, %v668
        %v670 = vpop.f32.mrf.mxu0
        %v671 = vpop.f32.mrf.mxu0
        %v672 = vadd.f32 0.0, %v671
        %v673 = vpop.f32.mrf.mxu0
        %674 = vmatprep.mubr.bf16.mxu0 0
        %675 = vmatmul.mubr.bf16.gmra.mxu0 %v546
        %v676 = vpop.f32.mrf.mxu0
        %v677 = vadd.f32 0.0, %v676
        %v678 = vpop.f32.mrf.mxu0
        %v679 = vpop.f32.mrf.mxu0
        %v680 = vadd.f32 0.0, %v679
        %v681 = vpop.f32.mrf.mxu0
        %682 = vmatprep.mubr.bf16.mxu0 0
        %683 = vmatmul.mubr.bf16.gmra.mxu0 %v547
        %v684 = vpop.f32.mrf.mxu0
        %v685 = vadd.f32 0.0, %v684
        %v686 = vpop.f32.mrf.mxu0
        %v687 = vpop.f32.mrf.mxu0
        %v688 = vadd.f32 0.0, %v687
        %v689 = vpop.f32.mrf.mxu0
        %690 = vmatprep.mubr.bf16.mxu0 0
        %691 = vmatmul.mubr.bf16.gmra.mxu0 %v548
        %v692 = vpop.f32.mrf.mxu0
        %v693 = vadd.f32 0.0, %v692
        %v694 = vpop.f32.mrf.mxu0
        %v695 = vpop.f32.mrf.mxu0
        %v696 = vadd.f32 0.0, %v695
        %v697 = vpop.f32.mrf.mxu0
        %698 = vmatprep.mubr.bf16.mxu0 0
        %699 = vmatmul.mubr.bf16.gmra.mxu0 %v549
        %v700 = vpop.f32.mrf.mxu0
        %v701 = vadd.f32 0.0, %v700
        %v702 = vpop.f32.mrf.mxu0
        %v703 = vpop.f32.mrf.mxu0
        %v704 = vadd.f32 0.0, %v703
        %v705 = vpop.f32.mrf.mxu0
        %706 = vmatprep.mubr.bf16.mxu0 0
        %707 = vmatmul.mubr.bf16.gmra.mxu0 %v550
        %v708 = vpop.f32.mrf.mxu0
        %v709 = vadd.f32 0.0, %v708
        %v710 = vpop.f32.mrf.mxu0
        %v711 = vpop.f32.mrf.mxu0
        %v712 = vadd.f32 0.0, %v711
        %v713 = vpop.f32.mrf.mxu0
        %714 = vmatprep.mubr.bf16.mxu0 0
        %715 = vmatmul.mubr.bf16.gmra.mxu0 %v551
        %v716 = vpop.f32.mrf.mxu0
        %v717 = vadd.f32 0.0, %v716
        %v718 = vpop.f32.mrf.mxu0
        %v719 = vpop.f32.mrf.mxu0
        %v720 = vadd.f32 0.0, %v719
        %v721 = vpop.f32.mrf.mxu0
        %722 = vmatprep.mubr.bf16.mxu0 0
        %723 = vmatmul.mubr.bf16.gmra.mxu0 %v552
        %v724 = vpop.f32.mrf.mxu0
        %v725 = vadd.f32 0.0, %v724
        %v726 = vpop.f32.mrf.mxu0
        %v727 = vpop.f32.mrf.mxu0
        %v728 = vadd.f32 0.0, %v727
        %v729 = vpop.f32.mrf.mxu0
        %730 = vdwg.mxu0
        %v731 = vld [vmem:[#allocation2] sm:$0xff]
        %v732 = vld [vmem:[#allocation2 + $0x8] sm:$0xff]
        %v733 = vld [vmem:[#allocation2 + $0x10] sm:$0xff]
        %v734 = vld [vmem:[#allocation2 + $0x18] sm:$0xff]
        %v735 = vld [vmem:[#allocation2 + $0x20] sm:$0xff]
        %v736 = vld [vmem:[#allocation2 + $0x28] sm:$0xff]
        %v737 = vld [vmem:[#allocation2 + $0x30] sm:$0xff]
        %v738 = vld [vmem:[#allocation2 + $0x38] sm:$0xff]
        %v739 = vld [vmem:[#allocation2 + $0x40] sm:$0xff]
        %v740 = vld [vmem:[#allocation2 + $0x48] sm:$0xff]
        %v741 = vld [vmem:[#allocation2 + $0x50] sm:$0xff]
        %v742 = vld [vmem:[#allocation2 + $0x58] sm:$0xff]
        %v743 = vld [vmem:[#allocation2 + $0x60] sm:$0xff]
        %v744 = vld [vmem:[#allocation2 + $0x68] sm:$0xff]
        %v745 = vld [vmem:[#allocation2 + $0x70] sm:$0xff]
        %v746 = vld [vmem:[#allocation2 + $0x78] sm:$0xff]
        %v747 = vld [vmem:[#allocation2 + $0x80] sm:$0xff]
        %v748 = vld [vmem:[#allocation2 + $0x88] sm:$0xff]
        %v749 = vld [vmem:[#allocation2 + $0x90] sm:$0xff]
        %v750 = vld [vmem:[#allocation2 + $0x98] sm:$0xff]
        %v751 = vadd.f32 %v731, %v653
        %v752 = vadd.f32 %v732, %v656
        %v753 = vadd.f32 %v733, %v661
        %v754 = vadd.f32 %v734, %v664
        %v755 = vadd.f32 %v735, %v669
        %v756 = vadd.f32 %v736, %v672
        %v757 = vadd.f32 %v737, %v677
        %v758 = vadd.f32 %v738, %v680
        %v759 = vadd.f32 %v739, %v685
        %v760 = vadd.f32 %v740, %v688
        %v761 = vadd.f32 %v741, %v693
        %v762 = vadd.f32 %v742, %v696
        %v763 = vadd.f32 %v743, %v701
        %v764 = vadd.f32 %v744, %v704
        %v765 = vadd.f32 %v745, %v709
        %v766 = vadd.f32 %v746, %v712
        %v767 = vadd.f32 %v747, %v717
        %v768 = vadd.f32 %v748, %v720
        %v769 = vadd.f32 %v749, %v725
        %v770 = vadd.f32 %v750, %v728
        %771 = vst [vmem:[#allocation2] sm:$0xff] %v751
        %772 = vst [vmem:[#allocation2 + $0x8] sm:$0xff] %v752
        %773 = vst [vmem:[#allocation2 + $0x10] sm:$0xff] %v753
        %774 = vst [vmem:[#allocation2 + $0x18] sm:$0xff] %v754
        %775 = vst [vmem:[#allocation2 + $0x20] sm:$0xff] %v755
        %776 = vst [vmem:[#allocation2 + $0x28] sm:$0xff] %v756
        %777 = vst [vmem:[#allocation2 + $0x30] sm:$0xff] %v757
        %778 = vst [vmem:[#allocation2 + $0x38] sm:$0xff] %v758
        %779 = vst [vmem:[#allocation2 + $0x40] sm:$0xff] %v759
        %780 = vst [vmem:[#allocation2 + $0x48] sm:$0xff] %v760
        %781 = vst [vmem:[#allocation2 + $0x50] sm:$0xff] %v761
        %782 = vst [vmem:[#allocation2 + $0x58] sm:$0xff] %v762
        %783 = vst [vmem:[#allocation2 + $0x60] sm:$0xff] %v763
        %784 = vst [vmem:[#allocation2 + $0x68] sm:$0xff] %v764
        %785 = vst [vmem:[#allocation2 + $0x70] sm:$0xff] %v765
        %786 = vst [vmem:[#allocation2 + $0x78] sm:$0xff] %v766
        %787 = vst [vmem:[#allocation2 + $0x80] sm:$0xff] %v767
        %788 = vst [vmem:[#allocation2 + $0x88] sm:$0xff] %v768
        %789 = vst [vmem:[#allocation2 + $0x90] sm:$0xff] %v769
        %790 = vst [vmem:[#allocation2 + $0x98] sm:$0xff] %v770
        %v791 = vld [vmem:[%s295 + $0x2] sm:$0xff]
        %v792 = vld [vmem:[%s295 + $0xa] sm:$0xff]
        %v793 = vld [vmem:[%s295 + $0x1a] sm:$0xff]
        %v794 = vld [vmem:[%s295 + $0x22] sm:$0xff]
        %v795 = vld [vmem:[%s295 + $0x32] sm:$0xff]
        %v796 = vld [vmem:[%s295 + $0x3a] sm:$0xff]
        %v797 = vld [vmem:[%s295 + $0x4a] sm:$0xff]
        %v798 = vld [vmem:[%s295 + $0x52] sm:$0xff]
        %v799 = vld [vmem:[%s295 + $0x62] sm:$0xff]
        %v800 = vld [vmem:[%s295 + $0x6a] sm:$0xff]
        %v801 = vld [vmem:[%s295 + $0x7a] sm:$0xff]
        %v802 = vld [vmem:[%s295 + $0x82] sm:$0xff]
        %v803 = vld [vmem:[%s295 + $0x92] sm:$0xff]
        %v804 = vld [vmem:[%s295 + $0x9a] sm:$0xff]
        %v805 = vld [vmem:[%s295 + $0xaa] sm:$0xff]
        %v806 = vld [vmem:[%s295 + $0xb2] sm:$0xff]
        %v807 = vld [vmem:[%s295 + $0xc2] sm:$0xff]
        %v808 = vld [vmem:[%s295 + $0xca] sm:$0xff]
        %v809 = vld [vmem:[%s295 + $0xda] sm:$0xff]
        %v810 = vld [vmem:[%s295 + $0xe2] sm:$0xff]
        %v811 = vpack.c.bf16 %v792, %v791
        %v812 = vpack.c.bf16 %v794, %v793
        %v813 = vpack.c.bf16 %v796, %v795
        %v814 = vpack.c.bf16 %v798, %v797
        %v815 = vpack.c.bf16 %v800, %v799
        %v816 = vpack.c.bf16 %v802, %v801
        %v817 = vpack.c.bf16 %v804, %v803
        %v818 = vpack.c.bf16 %v806, %v805
        %v819 = vpack.c.bf16 %v808, %v807
        %v820 = vpack.c.bf16 %v810, %v809
        %s821 = scalar_lea.vmem %s1, 128
        %v822 = vld [vmem:[%s821] sm:$0xf]
        %v823 = vld [vmem:[%s821 + $0x4] sm:$0xf]
        %v824 = vld [vmem:[%s821 + $0x8] sm:$0xf]
        %v825 = vld [vmem:[%s821 + $0xc] sm:$0xf]
        %v826 = vld [vmem:[%s821 + $0x10] sm:$0xf]
        %v827 = vld [vmem:[%s821 + $0x14] sm:$0xf]
        %v828 = vld [vmem:[%s821 + $0x18] sm:$0xf]
        %v829 = vld [vmem:[%s821 + $0x1c] sm:$0xf]
        %v830 = vld [vmem:[%s821 + $0x20] sm:$0xf]
        %v831 = vld [vmem:[%s821 + $0x24] sm:$0xf]
        %v832 = vld [vmem:[%s821 + $0x28] sm:$0xf]
        %v833 = vld [vmem:[%s821 + $0x2c] sm:$0xf]
        %v834 = vld [vmem:[%s821 + $0x30] sm:$0xf]
        %v835 = vld [vmem:[%s821 + $0x34] sm:$0xf]
        %v836 = vld [vmem:[%s821 + $0x38] sm:$0xf]
        %v837 = vld [vmem:[%s821 + $0x3c] sm:$0xf]
        %v854 = vunpack.c.l.b16 %v822
        %v855 = vunpack.c.l.b16 %v823
        %v856 = vunpack.c.l.b16 %v824
        %v857 = vunpack.c.l.b16 %v825
        %v858 = vunpack.c.l.b16 %v826
        %v859 = vunpack.c.l.b16 %v827
        %v860 = vunpack.c.l.b16 %v828
        %v861 = vunpack.c.l.b16 %v829
        %v862 = vunpack.c.l.b16 %v830
        %v863 = vunpack.c.l.b16 %v831
        %v864 = vunpack.c.l.b16 %v832
        %v865 = vunpack.c.l.b16 %v833
        %v866 = vunpack.c.l.b16 %v834
        %v867 = vunpack.c.l.b16 %v835
        %v868 = vunpack.c.l.b16 %v836
        %v869 = vunpack.c.l.b16 %v837
        %v870 = vpack.c.b16 %v855, %v854
        %v871 = vpack.c.b16 %v857, %v856
        %v872 = vpack.c.b16 %v859, %v858
        %v873 = vpack.c.b16 %v861, %v860
        %v874 = vpack.c.b16 %v863, %v862
        %v875 = vpack.c.b16 %v865, %v864
        %v876 = vpack.c.b16 %v867, %v866
        %v877 = vpack.c.b16 %v869, %v868
        %886 = vmatprep.subr.bf16.mxu0 0
        %887 = vmatpush1.bf16.msra.mxu0 %v877
        %888 = vmatprep.subr.bf16.mxu0 0
        %889 = vmatpush1.bf16.msra.mxu0 %v876
        %890 = vmatprep.subr.bf16.mxu0 0
        %891 = vmatpush1.bf16.msra.mxu0 %v875
        %892 = vmatprep.subr.bf16.mxu0 0
        %893 = vmatpush1.bf16.msra.mxu0 %v874
        %894 = vmatprep.subr.bf16.mxu0 0
        %895 = vmatpush1.bf16.msra.mxu0 %v873
        %896 = vmatprep.subr.bf16.mxu0 0
        %897 = vmatpush1.bf16.msra.mxu0 %v872
        %898 = vmatprep.subr.bf16.mxu0 0
        %899 = vmatpush1.bf16.msra.mxu0 %v871
        %900 = vmatprep.subr.bf16.mxu0 0
        %901 = vmatpush1.bf16.msra.mxu0 %v870
        %902 = vmatprep.subr.bf16.mxu0 0
        %903 = vmatpush2.bf16.msra.mxu0 0
        %904 = vmatprep.subr.bf16.mxu0 0
        %905 = vmatpush2.bf16.msra.mxu0 0
        %906 = vmatprep.subr.bf16.mxu0 0
        %907 = vmatpush2.bf16.msra.mxu0 0
        %908 = vmatprep.subr.bf16.mxu0 0
        %909 = vmatpush2.bf16.msra.mxu0 0
        %910 = vmatprep.subr.bf16.mxu0 0
        %911 = vmatpush2.bf16.msra.mxu0 0
        %912 = vmatprep.subr.bf16.mxu0 0
        %913 = vmatpush2.bf16.msra.mxu0 0
        %914 = vmatprep.subr.bf16.mxu0 0
        %915 = vmatpush2.bf16.msra.mxu0 0
        %916 = vmatprep.subr.bf16.mxu0 0
        %917 = vmatpush2.bf16.msra.mxu0 0
        %918 = vmatprep.mubr.bf16.mxu0 0
        %919 = vmatmul.mubr.bf16.gmra.mxu0 %v811
        %v920 = vpop.f32.mrf.mxu0
        %v921 = vadd.f32 0.0, %v920
        %v922 = vpop.f32.mrf.mxu0
        %v923 = vpop.f32.mrf.mxu0
        %v924 = vadd.f32 0.0, %v923
        %v925 = vpop.f32.mrf.mxu0
        %926 = vmatprep.mubr.bf16.mxu0 0
        %927 = vmatmul.mubr.bf16.gmra.mxu0 %v812
        %v928 = vpop.f32.mrf.mxu0
        %v929 = vadd.f32 0.0, %v928
        %v930 = vpop.f32.mrf.mxu0
        %v931 = vpop.f32.mrf.mxu0
        %v932 = vadd.f32 0.0, %v931
        %v933 = vpop.f32.mrf.mxu0
        %934 = vmatprep.mubr.bf16.mxu0 0
        %935 = vmatmul.mubr.bf16.gmra.mxu0 %v813
        %v936 = vpop.f32.mrf.mxu0
        %v937 = vadd.f32 0.0, %v936
        %v938 = vpop.f32.mrf.mxu0
        %v939 = vpop.f32.mrf.mxu0
        %v940 = vadd.f32 0.0, %v939
        %v941 = vpop.f32.mrf.mxu0
        %942 = vmatprep.mubr.bf16.mxu0 0
        %943 = vmatmul.mubr.bf16.gmra.mxu0 %v814
        %v944 = vpop.f32.mrf.mxu0
        %v945 = vadd.f32 0.0, %v944
        %v946 = vpop.f32.mrf.mxu0
        %v947 = vpop.f32.mrf.mxu0
        %v948 = vadd.f32 0.0, %v947
        %v949 = vpop.f32.mrf.mxu0
        %950 = vmatprep.mubr.bf16.mxu0 0
        %951 = vmatmul.mubr.bf16.gmra.mxu0 %v815
        %v952 = vpop.f32.mrf.mxu0
        %v953 = vadd.f32 0.0, %v952
        %v954 = vpop.f32.mrf.mxu0
        %v955 = vpop.f32.mrf.mxu0
        %v956 = vadd.f32 0.0, %v955
        %v957 = vpop.f32.mrf.mxu0
        %958 = vmatprep.mubr.bf16.mxu0 0
        %959 = vmatmul.mubr.bf16.gmra.mxu0 %v816
        %v960 = vpop.f32.mrf.mxu0
        %v961 = vadd.f32 0.0, %v960
        %v962 = vpop.f32.mrf.mxu0
        %v963 = vpop.f32.mrf.mxu0
        %v964 = vadd.f32 0.0, %v963
        %v965 = vpop.f32.mrf.mxu0
        %966 = vmatprep.mubr.bf16.mxu0 0
        %967 = vmatmul.mubr.bf16.gmra.mxu0 %v817
        %v968 = vpop.f32.mrf.mxu0
        %v969 = vadd.f32 0.0, %v968
        %v970 = vpop.f32.mrf.mxu0
        %v971 = vpop.f32.mrf.mxu0
        %v972 = vadd.f32 0.0, %v971
        %v973 = vpop.f32.mrf.mxu0
        %974 = vmatprep.mubr.bf16.mxu0 0
        %975 = vmatmul.mubr.bf16.gmra.mxu0 %v818
        %v976 = vpop.f32.mrf.mxu0
        %v977 = vadd.f32 0.0, %v976
        %v978 = vpop.f32.mrf.mxu0
        %v979 = vpop.f32.mrf.mxu0
        %v980 = vadd.f32 0.0, %v979
        %v981 = vpop.f32.mrf.mxu0
        %982 = vmatprep.mubr.bf16.mxu0 0
        %983 = vmatmul.mubr.bf16.gmra.mxu0 %v819
        %v984 = vpop.f32.mrf.mxu0
        %v985 = vadd.f32 0.0, %v984
        %v986 = vpop.f32.mrf.mxu0
        %v987 = vpop.f32.mrf.mxu0
        %v988 = vadd.f32 0.0, %v987
        %v989 = vpop.f32.mrf.mxu0
        %990 = vmatprep.mubr.bf16.mxu0 0
        %991 = vmatmul.mubr.bf16.gmra.mxu0 %v820
        %v992 = vpop.f32.mrf.mxu0
        %v993 = vadd.f32 0.0, %v992
        %v994 = vpop.f32.mrf.mxu0
        %v995 = vpop.f32.mrf.mxu0
        %v996 = vadd.f32 0.0, %v995
        %v997 = vpop.f32.mrf.mxu0
        %998 = vdwg.mxu0
        %v999 = vld [vmem:[#allocation2] sm:$0xff]
        %v1000 = vld [vmem:[#allocation2 + $0x8] sm:$0xff]
        %v1001 = vld [vmem:[#allocation2 + $0x10] sm:$0xff]
        %v1002 = vld [vmem:[#allocation2 + $0x18] sm:$0xff]
        %v1003 = vld [vmem:[#allocation2 + $0x20] sm:$0xff]
        %v1004 = vld [vmem:[#allocation2 + $0x28] sm:$0xff]
        %v1005 = vld [vmem:[#allocation2 + $0x30] sm:$0xff]
        %v1006 = vld [vmem:[#allocation2 + $0x38] sm:$0xff]
        %v1007 = vld [vmem:[#allocation2 + $0x40] sm:$0xff]
        %v1008 = vld [vmem:[#allocation2 + $0x48] sm:$0xff]
        %v1009 = vld [vmem:[#allocation2 + $0x50] sm:$0xff]
        %v1010 = vld [vmem:[#allocation2 + $0x58] sm:$0xff]
        %v1011 = vld [vmem:[#allocation2 + $0x60] sm:$0xff]
        %v1012 = vld [vmem:[#allocation2 + $0x68] sm:$0xff]
        %v1013 = vld [vmem:[#allocation2 + $0x70] sm:$0xff]
        %v1014 = vld [vmem:[#allocation2 + $0x78] sm:$0xff]
        %v1015 = vld [vmem:[#allocation2 + $0x80] sm:$0xff]
        %v1016 = vld [vmem:[#allocation2 + $0x88] sm:$0xff]
        %v1017 = vld [vmem:[#allocation2 + $0x90] sm:$0xff]
        %v1018 = vld [vmem:[#allocation2 + $0x98] sm:$0xff]
        %v1019 = vadd.f32 %v999, %v921
        %v1020 = vadd.f32 %v1000, %v924
        %v1021 = vadd.f32 %v1001, %v929
        %v1022 = vadd.f32 %v1002, %v932
        %v1023 = vadd.f32 %v1003, %v937
        %v1024 = vadd.f32 %v1004, %v940
        %v1025 = vadd.f32 %v1005, %v945
        %v1026 = vadd.f32 %v1006, %v948
        %v1027 = vadd.f32 %v1007, %v953
        %v1028 = vadd.f32 %v1008, %v956
        %v1029 = vadd.f32 %v1009, %v961
        %v1030 = vadd.f32 %v1010, %v964
        %v1031 = vadd.f32 %v1011, %v969
        %v1032 = vadd.f32 %v1012, %v972
        %v1033 = vadd.f32 %v1013, %v977
        %v1034 = vadd.f32 %v1014, %v980
        %v1035 = vadd.f32 %v1015, %v985
        %v1036 = vadd.f32 %v1016, %v988
        %v1037 = vadd.f32 %v1017, %v993
        %v1038 = vadd.f32 %v1018, %v996
        %1039 = vst [vmem:[#allocation2] sm:$0xff] %v1019
        %1040 = vst [vmem:[#allocation2 + $0x8] sm:$0xff] %v1020
        %1041 = vst [vmem:[#allocation2 + $0x10] sm:$0xff] %v1021
        %1042 = vst [vmem:[#allocation2 + $0x18] sm:$0xff] %v1022
        %1043 = vst [vmem:[#allocation2 + $0x20] sm:$0xff] %v1023
        %1044 = vst [vmem:[#allocation2 + $0x28] sm:$0xff] %v1024
        %1045 = vst [vmem:[#allocation2 + $0x30] sm:$0xff] %v1025
        %1046 = vst [vmem:[#allocation2 + $0x38] sm:$0xff] %v1026
        %1047 = vst [vmem:[#allocation2 + $0x40] sm:$0xff] %v1027
        %1048 = vst [vmem:[#allocation2 + $0x48] sm:$0xff] %v1028
        %1049 = vst [vmem:[#allocation2 + $0x50] sm:$0xff] %v1029
        %1050 = vst [vmem:[#allocation2 + $0x58] sm:$0xff] %v1030
        %1051 = vst [vmem:[#allocation2 + $0x60] sm:$0xff] %v1031
        %1052 = vst [vmem:[#allocation2 + $0x68] sm:$0xff] %v1032
        %1053 = vst [vmem:[#allocation2 + $0x70] sm:$0xff] %v1033
        %1054 = vst [vmem:[#allocation2 + $0x78] sm:$0xff] %v1034
        %1055 = vst [vmem:[#allocation2 + $0x80] sm:$0xff] %v1035
        %1056 = vst [vmem:[#allocation2 + $0x88] sm:$0xff] %v1036
        %1057 = vst [vmem:[#allocation2 + $0x90] sm:$0xff] %v1037
        %1058 = vst [vmem:[#allocation2 + $0x98] sm:$0xff] %v1038
        %s1059 = sadd.s32 %s293, 1
        %s1060 = smul.u32 %s1059, 24
        %s1061 = scalar_lea.vmem %s290, %s1060
        %v1062 = vld [vmem:[%s1061] sm:$0xff]
        %v1063 = vld [vmem:[%s1061 + $0x8] sm:$0xff]
        %v1064 = vld [vmem:[%s1061 + $0x18] sm:$0xff]
        %v1065 = vld [vmem:[%s1061 + $0x20] sm:$0xff]
        %v1066 = vld [vmem:[%s1061 + $0x30] sm:$0xff]
        %v1067 = vld [vmem:[%s1061 + $0x38] sm:$0xff]
        %v1068 = vld [vmem:[%s1061 + $0x48] sm:$0xff]
        %v1069 = vld [vmem:[%s1061 + $0x50] sm:$0xff]
        %v1070 = vld [vmem:[%s1061 + $0x60] sm:$0xff]
        %v1071 = vld [vmem:[%s1061 + $0x68] sm:$0xff]
        %v1072 = vld [vmem:[%s1061 + $0x78] sm:$0xff]
        %v1073 = vld [vmem:[%s1061 + $0x80] sm:$0xff]
        %v1074 = vld [vmem:[%s1061 + $0x90] sm:$0xff]
        %v1075 = vld [vmem:[%s1061 + $0x98] sm:$0xff]
        %v1076 = vld [vmem:[%s1061 + $0xa8] sm:$0xff]
        %v1077 = vld [vmem:[%s1061 + $0xb0] sm:$0xff]
        %v1078 = vld [vmem:[%s1061 + $0xc0] sm:$0xff]
        %v1079 = vld [vmem:[%s1061 + $0xc8] sm:$0xff]
        %v1080 = vld [vmem:[%s1061 + $0xd8] sm:$0xff]
        %v1081 = vld [vmem:[%s1061 + $0xe0] sm:$0xff]
        %v1082 = vpack.c.bf16 %v1063, %v1062
        %v1083 = vpack.c.bf16 %v1065, %v1064
        %v1084 = vpack.c.bf16 %v1067, %v1066
        %v1085 = vpack.c.bf16 %v1069, %v1068
        %v1086 = vpack.c.bf16 %v1071, %v1070
        %v1087 = vpack.c.bf16 %v1073, %v1072
        %v1088 = vpack.c.bf16 %v1075, %v1074
        %v1089 = vpack.c.bf16 %v1077, %v1076
        %v1090 = vpack.c.bf16 %v1079, %v1078
        %v1091 = vpack.c.bf16 %v1081, %v1080
        %s1092 = scalar_lea.vmem %s1, 192
        %v1093 = vld [vmem:[%s1092] sm:$0xf]
        %v1094 = vld [vmem:[%s1092 + $0x4] sm:$0xf]
        %v1095 = vld [vmem:[%s1092 + $0x8] sm:$0xf]
        %v1096 = vld [vmem:[%s1092 + $0xc] sm:$0xf]
        %v1097 = vld [vmem:[%s1092 + $0x10] sm:$0xf]
        %v1098 = vld [vmem:[%s1092 + $0x14] sm:$0xf]
        %v1099 = vld [vmem:[%s1092 + $0x18] sm:$0xf]
        %v1100 = vld [vmem:[%s1092 + $0x1c] sm:$0xf]
        %v1101 = vld [vmem:[%s1092 + $0x20] sm:$0xf]
        %v1102 = vld [vmem:[%s1092 + $0x24] sm:$0xf]
        %v1103 = vld [vmem:[%s1092 + $0x28] sm:$0xf]
        %v1104 = vld [vmem:[%s1092 + $0x2c] sm:$0xf]
        %v1105 = vld [vmem:[%s1092 + $0x30] sm:$0xf]
        %v1106 = vld [vmem:[%s1092 + $0x34] sm:$0xf]
        %v1107 = vld [vmem:[%s1092 + $0x38] sm:$0xf]
        %v1108 = vld [vmem:[%s1092 + $0x3c] sm:$0xf]
        %v1125 = vunpack.c.l.b16 %v1093
        %v1126 = vunpack.c.l.b16 %v1094
        %v1127 = vunpack.c.l.b16 %v1095
        %v1128 = vunpack.c.l.b16 %v1096
        %v1129 = vunpack.c.l.b16 %v1097
        %v1130 = vunpack.c.l.b16 %v1098
        %v1131 = vunpack.c.l.b16 %v1099
        %v1132 = vunpack.c.l.b16 %v1100
        %v1133 = vunpack.c.l.b16 %v1101
        %v1134 = vunpack.c.l.b16 %v1102
        %v1135 = vunpack.c.l.b16 %v1103
        %v1136 = vunpack.c.l.b16 %v1104
        %v1137 = vunpack.c.l.b16 %v1105
        %v1138 = vunpack.c.l.b16 %v1106
        %v1139 = vunpack.c.l.b16 %v1107
        %v1140 = vunpack.c.l.b16 %v1108
        %v1141 = vpack.c.b16 %v1126, %v1125
        %v1142 = vpack.c.b16 %v1128, %v1127
        %v1143 = vpack.c.b16 %v1130, %v1129
        %v1144 = vpack.c.b16 %v1132, %v1131
        %v1145 = vpack.c.b16 %v1134, %v1133
        %v1146 = vpack.c.b16 %v1136, %v1135
        %v1147 = vpack.c.b16 %v1138, %v1137
        %v1148 = vpack.c.b16 %v1140, %v1139
        %1157 = vmatprep.subr.bf16.mxu0 0
        %1158 = vmatpush1.bf16.msra.mxu0 %v1148
        %1159 = vmatprep.subr.bf16.mxu0 0
        %1160 = vmatpush1.bf16.msra.mxu0 %v1147
        %1161 = vmatprep.subr.bf16.mxu0 0
        %1162 = vmatpush1.bf16.msra.mxu0 %v1146
        %1163 = vmatprep.subr.bf16.mxu0 0
        %1164 = vmatpush1.bf16.msra.mxu0 %v1145
        %1165 = vmatprep.subr.bf16.mxu0 0
        %1166 = vmatpush1.bf16.msra.mxu0 %v1144
        %1167 = vmatprep.subr.bf16.mxu0 0
        %1168 = vmatpush1.bf16.msra.mxu0 %v1143
        %1169 = vmatprep.subr.bf16.mxu0 0
        %1170 = vmatpush1.bf16.msra.mxu0 %v1142
        %1171 = vmatprep.subr.bf16.mxu0 0
        %1172 = vmatpush1.bf16.msra.mxu0 %v1141
        %1173 = vmatprep.subr.bf16.mxu0 0
        %1174 = vmatpush2.bf16.msra.mxu0 0
        %1175 = vmatprep.subr.bf16.mxu0 0
        %1176 = vmatpush2.bf16.msra.mxu0 0
        %1177 = vmatprep.subr.bf16.mxu0 0
        %1178 = vmatpush2.bf16.msra.mxu0 0
        %1179 = vmatprep.subr.bf16.mxu0 0
        %1180 = vmatpush2.bf16.msra.mxu0 0
        %1181 = vmatprep.subr.bf16.mxu0 0
        %1182 = vmatpush2.bf16.msra.mxu0 0
        %1183 = vmatprep.subr.bf16.mxu0 0
        %1184 = vmatpush2.bf16.msra.mxu0 0
        %1185 = vmatprep.subr.bf16.mxu0 0
        %1186 = vmatpush2.bf16.msra.mxu0 0
        %1187 = vmatprep.subr.bf16.mxu0 0
        %1188 = vmatpush2.bf16.msra.mxu0 0
        %1189 = vmatprep.mubr.bf16.mxu0 0
        %1190 = vmatmul.mubr.bf16.gmra.mxu0 %v1082
        %v1191 = vpop.f32.mrf.mxu0
        %v1192 = vadd.f32 0.0, %v1191
        %v1193 = vpop.f32.mrf.mxu0
        %v1194 = vpop.f32.mrf.mxu0
        %v1195 = vadd.f32 0.0, %v1194
        %v1196 = vpop.f32.mrf.mxu0
        %1197 = vmatprep.mubr.bf16.mxu0 0
        %1198 = vmatmul.mubr.bf16.gmra.mxu0 %v1083
        %v1199 = vpop.f32.mrf.mxu0
        %v1200 = vadd.f32 0.0, %v1199
        %v1201 = vpop.f32.mrf.mxu0
        %v1202 = vpop.f32.mrf.mxu0
        %v1203 = vadd.f32 0.0, %v1202
        %v1204 = vpop.f32.mrf.mxu0
        %1205 = vmatprep.mubr.bf16.mxu0 0
        %1206 = vmatmul.mubr.bf16.gmra.mxu0 %v1084
        %v1207 = vpop.f32.mrf.mxu0
        %v1208 = vadd.f32 0.0, %v1207
        %v1209 = vpop.f32.mrf.mxu0
        %v1210 = vpop.f32.mrf.mxu0
        %v1211 = vadd.f32 0.0, %v1210
        %v1212 = vpop.f32.mrf.mxu0
        %1213 = vmatprep.mubr.bf16.mxu0 0
        %1214 = vmatmul.mubr.bf16.gmra.mxu0 %v1085
        %v1215 = vpop.f32.mrf.mxu0
        %v1216 = vadd.f32 0.0, %v1215
        %v1217 = vpop.f32.mrf.mxu0
        %v1218 = vpop.f32.mrf.mxu0
        %v1219 = vadd.f32 0.0, %v1218
        %v1220 = vpop.f32.mrf.mxu0
        %1221 = vmatprep.mubr.bf16.mxu0 0
        %1222 = vmatmul.mubr.bf16.gmra.mxu0 %v1086
        %v1223 = vpop.f32.mrf.mxu0
        %v1224 = vadd.f32 0.0, %v1223
        %v1225 = vpop.f32.mrf.mxu0
        %v1226 = vpop.f32.mrf.mxu0
        %v1227 = vadd.f32 0.0, %v1226
        %v1228 = vpop.f32.mrf.mxu0
        %1229 = vmatprep.mubr.bf16.mxu0 0
        %1230 = vmatmul.mubr.bf16.gmra.mxu0 %v1087
        %v1231 = vpop.f32.mrf.mxu0
        %v1232 = vadd.f32 0.0, %v1231
        %v1233 = vpop.f32.mrf.mxu0
        %v1234 = vpop.f32.mrf.mxu0
        %v1235 = vadd.f32 0.0, %v1234
        %v1236 = vpop.f32.mrf.mxu0
        %1237 = vmatprep.mubr.bf16.mxu0 0
        %1238 = vmatmul.mubr.bf16.gmra.mxu0 %v1088
        %v1239 = vpop.f32.mrf.mxu0
        %v1240 = vadd.f32 0.0, %v1239
        %v1241 = vpop.f32.mrf.mxu0
        %v1242 = vpop.f32.mrf.mxu0
        %v1243 = vadd.f32 0.0, %v1242
        %v1244 = vpop.f32.mrf.mxu0
        %1245 = vmatprep.mubr.bf16.mxu0 0
        %1246 = vmatmul.mubr.bf16.gmra.mxu0 %v1089
        %v1247 = vpop.f32.mrf.mxu0
        %v1248 = vadd.f32 0.0, %v1247
        %v1249 = vpop.f32.mrf.mxu0
        %v1250 = vpop.f32.mrf.mxu0
        %v1251 = vadd.f32 0.0, %v1250
        %v1252 = vpop.f32.mrf.mxu0
        %1253 = vmatprep.mubr.bf16.mxu0 0
        %1254 = vmatmul.mubr.bf16.gmra.mxu0 %v1090
        %v1255 = vpop.f32.mrf.mxu0
        %v1256 = vadd.f32 0.0, %v1255
        %v1257 = vpop.f32.mrf.mxu0
        %v1258 = vpop.f32.mrf.mxu0
        %v1259 = vadd.f32 0.0, %v1258
        %v1260 = vpop.f32.mrf.mxu0
        %1261 = vmatprep.mubr.bf16.mxu0 0
        %1262 = vmatmul.mubr.bf16.gmra.mxu0 %v1091
        %v1263 = vpop.f32.mrf.mxu0
        %v1264 = vadd.f32 0.0, %v1263
        %v1265 = vpop.f32.mrf.mxu0
        %v1266 = vpop.f32.mrf.mxu0
        %v1267 = vadd.f32 0.0, %v1266
        %v1268 = vpop.f32.mrf.mxu0
        %1269 = vdwg.mxu0
        %v1270 = vld [vmem:[#allocation2] sm:$0xff]
        %v1271 = vld [vmem:[#allocation2 + $0x8] sm:$0xff]
        %v1272 = vld [vmem:[#allocation2 + $0x10] sm:$0xff]
        %v1273 = vld [vmem:[#allocation2 + $0x18] sm:$0xff]
        %v1274 = vld [vmem:[#allocation2 + $0x20] sm:$0xff]
        %v1275 = vld [vmem:[#allocation2 + $0x28] sm:$0xff]
        %v1276 = vld [vmem:[#allocation2 + $0x30] sm:$0xff]
        %v1277 = vld [vmem:[#allocation2 + $0x38] sm:$0xff]
        %v1278 = vld [vmem:[#allocation2 + $0x40] sm:$0xff]
        %v1279 = vld [vmem:[#allocation2 + $0x48] sm:$0xff]
        %v1280 = vld [vmem:[#allocation2 + $0x50] sm:$0xff]
        %v1281 = vld [vmem:[#allocation2 + $0x58] sm:$0xff]
        %v1282 = vld [vmem:[#allocation2 + $0x60] sm:$0xff]
        %v1283 = vld [vmem:[#allocation2 + $0x68] sm:$0xff]
        %v1284 = vld [vmem:[#allocation2 + $0x70] sm:$0xff]
        %v1285 = vld [vmem:[#allocation2 + $0x78] sm:$0xff]
        %v1286 = vld [vmem:[#allocation2 + $0x80] sm:$0xff]
        %v1287 = vld [vmem:[#allocation2 + $0x88] sm:$0xff]
        %v1288 = vld [vmem:[#allocation2 + $0x90] sm:$0xff]
        %v1289 = vld [vmem:[#allocation2 + $0x98] sm:$0xff]
        %v1290 = vadd.f32 %v1270, %v1192
        %v1291 = vadd.f32 %v1271, %v1195
        %v1292 = vadd.f32 %v1272, %v1200
        %v1293 = vadd.f32 %v1273, %v1203
        %v1294 = vadd.f32 %v1274, %v1208
        %v1295 = vadd.f32 %v1275, %v1211
        %v1296 = vadd.f32 %v1276, %v1216
        %v1297 = vadd.f32 %v1277, %v1219
        %v1298 = vadd.f32 %v1278, %v1224
        %v1299 = vadd.f32 %v1279, %v1227
        %v1300 = vadd.f32 %v1280, %v1232
        %v1301 = vadd.f32 %v1281, %v1235
        %v1302 = vadd.f32 %v1282, %v1240
        %v1303 = vadd.f32 %v1283, %v1243
        %v1304 = vadd.f32 %v1284, %v1248
        %v1305 = vadd.f32 %v1285, %v1251
        %v1306 = vadd.f32 %v1286, %v1256
        %v1307 = vadd.f32 %v1287, %v1259
        %v1308 = vadd.f32 %v1288, %v1264
        %v1309 = vadd.f32 %v1289, %v1267
        %1310 = vst [vmem:[#allocation2] sm:$0xff] %v1290
        %1311 = vst [vmem:[#allocation2 + $0x8] sm:$0xff] %v1291
        %1312 = vst [vmem:[#allocation2 + $0x10] sm:$0xff] %v1292
        %1313 = vst [vmem:[#allocation2 + $0x18] sm:$0xff] %v1293
        %1314 = vst [vmem:[#allocation2 + $0x20] sm:$0xff] %v1294
        %1315 = vst [vmem:[#allocation2 + $0x28] sm:$0xff] %v1295
        %1316 = vst [vmem:[#allocation2 + $0x30] sm:$0xff] %v1296
        %1317 = vst [vmem:[#allocation2 + $0x38] sm:$0xff] %v1297
        %1318 = vst [vmem:[#allocation2 + $0x40] sm:$0xff] %v1298
        %1319 = vst [vmem:[#allocation2 + $0x48] sm:$0xff] %v1299
        %1320 = vst [vmem:[#allocation2 + $0x50] sm:$0xff] %v1300
        %1321 = vst [vmem:[#allocation2 + $0x58] sm:$0xff] %v1301
        %1322 = vst [vmem:[#allocation2 + $0x60] sm:$0xff] %v1302
        %1323 = vst [vmem:[#allocation2 + $0x68] sm:$0xff] %v1303
        %1324 = vst [vmem:[#allocation2 + $0x70] sm:$0xff] %v1304
        %1325 = vst [vmem:[#allocation2 + $0x78] sm:$0xff] %v1305
        %1326 = vst [vmem:[#allocation2 + $0x80] sm:$0xff] %v1306
        %1327 = vst [vmem:[#allocation2 + $0x88] sm:$0xff] %v1307
        %1328 = vst [vmem:[#allocation2 + $0x90] sm:$0xff] %v1308
        %1329 = vst [vmem:[#allocation2 + $0x98] sm:$0xff] %v1309
        %v1330 = vld [vmem:[%s1061 + $0x1] sm:$0xff]
        %v1331 = vld [vmem:[%s1061 + $0x9] sm:$0xff]
        %v1332 = vld [vmem:[%s1061 + $0x19] sm:$0xff]
        %v1333 = vld [vmem:[%s1061 + $0x21] sm:$0xff]
        %v1334 = vld [vmem:[%s1061 + $0x31] sm:$0xff]
        %v1335 = vld [vmem:[%s1061 + $0x39] sm:$0xff]
        %v1336 = vld [vmem:[%s1061 + $0x49] sm:$0xff]
        %v1337 = vld [vmem:[%s1061 + $0x51] sm:$0xff]
        %v1338 = vld [vmem:[%s1061 + $0x61] sm:$0xff]
        %v1339 = vld [vmem:[%s1061 + $0x69] sm:$0xff]
        %v1340 = vld [vmem:[%s1061 + $0x79] sm:$0xff]
        %v1341 = vld [vmem:[%s1061 + $0x81] sm:$0xff]
        %v1342 = vld [vmem:[%s1061 + $0x91] sm:$0xff]
        %v1343 = vld [vmem:[%s1061 + $0x99] sm:$0xff]
        %v1344 = vld [vmem:[%s1061 + $0xa9] sm:$0xff]
        %v1345 = vld [vmem:[%s1061 + $0xb1] sm:$0xff]
        %v1346 = vld [vmem:[%s1061 + $0xc1] sm:$0xff]
        %v1347 = vld [vmem:[%s1061 + $0xc9] sm:$0xff]
        %v1348 = vld [vmem:[%s1061 + $0xd9] sm:$0xff]
        %v1349 = vld [vmem:[%s1061 + $0xe1] sm:$0xff]
        %v1350 = vpack.c.bf16 %v1331, %v1330
        %v1351 = vpack.c.bf16 %v1333, %v1332
        %v1352 = vpack.c.bf16 %v1335, %v1334
        %v1353 = vpack.c.bf16 %v1337, %v1336
        %v1354 = vpack.c.bf16 %v1339, %v1338
        %v1355 = vpack.c.bf16 %v1341, %v1340
        %v1356 = vpack.c.bf16 %v1343, %v1342
        %v1357 = vpack.c.bf16 %v1345, %v1344
        %v1358 = vpack.c.bf16 %v1347, %v1346
        %v1359 = vpack.c.bf16 %v1349, %v1348
        %s1360 = scalar_lea.vmem %s1, 256
        %v1361 = vld [vmem:[%s1360] sm:$0xf]
        %v1362 = vld [vmem:[%s1360 + $0x4] sm:$0xf]
        %v1363 = vld [vmem:[%s1360 + $0x8] sm:$0xf]
        %v1364 = vld [vmem:[%s1360 + $0xc] sm:$0xf]
        %v1365 = vld [vmem:[%s1360 + $0x10] sm:$0xf]
        %v1366 = vld [vmem:[%s1360 + $0x14] sm:$0xf]
        %v1367 = vld [vmem:[%s1360 + $0x18] sm:$0xf]
        %v1368 = vld [vmem:[%s1360 + $0x1c] sm:$0xf]
        %v1369 = vld [vmem:[%s1360 + $0x20] sm:$0xf]
        %v1370 = vld [vmem:[%s1360 + $0x24] sm:$0xf]
        %v1371 = vld [vmem:[%s1360 + $0x28] sm:$0xf]
        %v1372 = vld [vmem:[%s1360 + $0x2c] sm:$0xf]
        %v1373 = vld [vmem:[%s1360 + $0x30] sm:$0xf]
        %v1374 = vld [vmem:[%s1360 + $0x34] sm:$0xf]
        %v1375 = vld [vmem:[%s1360 + $0x38] sm:$0xf]
        %v1376 = vld [vmem:[%s1360 + $0x3c] sm:$0xf]
        %v1393 = vunpack.c.l.b16 %v1361
        %v1394 = vunpack.c.l.b16 %v1362
        %v1395 = vunpack.c.l.b16 %v1363
        %v1396 = vunpack.c.l.b16 %v1364
        %v1397 = vunpack.c.l.b16 %v1365
        %v1398 = vunpack.c.l.b16 %v1366
        %v1399 = vunpack.c.l.b16 %v1367
        %v1400 = vunpack.c.l.b16 %v1368
        %v1401 = vunpack.c.l.b16 %v1369
        %v1402 = vunpack.c.l.b16 %v1370
        %v1403 = vunpack.c.l.b16 %v1371
        %v1404 = vunpack.c.l.b16 %v1372
        %v1405 = vunpack.c.l.b16 %v1373
        %v1406 = vunpack.c.l.b16 %v1374
        %v1407 = vunpack.c.l.b16 %v1375
        %v1408 = vunpack.c.l.b16 %v1376
        %v1409 = vpack.c.b16 %v1394, %v1393
        %v1410 = vpack.c.b16 %v1396, %v1395
        %v1411 = vpack.c.b16 %v1398, %v1397
        %v1412 = vpack.c.b16 %v1400, %v1399
        %v1413 = vpack.c.b16 %v1402, %v1401
        %v1414 = vpack.c.b16 %v1404, %v1403
        %v1415 = vpack.c.b16 %v1406, %v1405
        %v1416 = vpack.c.b16 %v1408, %v1407
        %1425 = vmatprep.subr.bf16.mxu0 0
        %1426 = vmatpush1.bf16.msra.mxu0 %v1416
        %1427 = vmatprep.subr.bf16.mxu0 0
        %1428 = vmatpush1.bf16.msra.mxu0 %v1415
        %1429 = vmatprep.subr.bf16.mxu0 0
        %1430 = vmatpush1.bf16.msra.mxu0 %v1414
        %1431 = vmatprep.subr.bf16.mxu0 0
        %1432 = vmatpush1.bf16.msra.mxu0 %v1413
        %1433 = vmatprep.subr.bf16.mxu0 0
        %1434 = vmatpush1.bf16.msra.mxu0 %v1412
        %1435 = vmatprep.subr.bf16.mxu0 0
        %1436 = vmatpush1.bf16.msra.mxu0 %v1411
        %1437 = vmatprep.subr.bf16.mxu0 0
        %1438 = vmatpush1.bf16.msra.mxu0 %v1410
        %1439 = vmatprep.subr.bf16.mxu0 0
        %1440 = vmatpush1.bf16.msra.mxu0 %v1409
        %1441 = vmatprep.subr.bf16.mxu0 0
        %1442 = vmatpush2.bf16.msra.mxu0 0
        %1443 = vmatprep.subr.bf16.mxu0 0
        %1444 = vmatpush2.bf16.msra.mxu0 0
        %1445 = vmatprep.subr.bf16.mxu0 0
        %1446 = vmatpush2.bf16.msra.mxu0 0
        %1447 = vmatprep.subr.bf16.mxu0 0
        %1448 = vmatpush2.bf16.msra.mxu0 0
        %1449 = vmatprep.subr.bf16.mxu0 0
        %1450 = vmatpush2.bf16.msra.mxu0 0
        %1451 = vmatprep.subr.bf16.mxu0 0
        %1452 = vmatpush2.bf16.msra.mxu0 0
        %1453 = vmatprep.subr.bf16.mxu0 0
        %1454 = vmatpush2.bf16.msra.mxu0 0
        %1455 = vmatprep.subr.bf16.mxu0 0
        %1456 = vmatpush2.bf16.msra.mxu0 0
        %1457 = vmatprep.mubr.bf16.mxu0 0
        %1458 = vmatmul.mubr.bf16.gmra.mxu0 %v1350
        %v1459 = vpop.f32.mrf.mxu0
        %v1460 = vadd.f32 0.0, %v1459
        %v1461 = vpop.f32.mrf.mxu0
        %v1462 = vpop.f32.mrf.mxu0
        %v1463 = vadd.f32 0.0, %v1462
        %v1464 = vpop.f32.mrf.mxu0
        %1465 = vmatprep.mubr.bf16.mxu0 0
        %1466 = vmatmul.mubr.bf16.gmra.mxu0 %v1351
        %v1467 = vpop.f32.mrf.mxu0
        %v1468 = vadd.f32 0.0, %v1467
        %v1469 = vpop.f32.mrf.mxu0
        %v1470 = vpop.f32.mrf.mxu0
        %v1471 = vadd.f32 0.0, %v1470
        %v1472 = vpop.f32.mrf.mxu0
        %1473 = vmatprep.mubr.bf16.mxu0 0
        %1474 = vmatmul.mubr.bf16.gmra.mxu0 %v1352
        %v1475 = vpop.f32.mrf.mxu0
        %v1476 = vadd.f32 0.0, %v1475
        %v1477 = vpop.f32.mrf.mxu0
        %v1478 = vpop.f32.mrf.mxu0
        %v1479 = vadd.f32 0.0, %v1478
        %v1480 = vpop.f32.mrf.mxu0
        %1481 = vmatprep.mubr.bf16.mxu0 0
        %1482 = vmatmul.mubr.bf16.gmra.mxu0 %v1353
        %v1483 = vpop.f32.mrf.mxu0
        %v1484 = vadd.f32 0.0, %v1483
        %v1485 = vpop.f32.mrf.mxu0
        %v1486 = vpop.f32.mrf.mxu0
        %v1487 = vadd.f32 0.0, %v1486
        %v1488 = vpop.f32.mrf.mxu0
        %1489 = vmatprep.mubr.bf16.mxu0 0
        %1490 = vmatmul.mubr.bf16.gmra.mxu0 %v1354
        %v1491 = vpop.f32.mrf.mxu0
        %v1492 = vadd.f32 0.0, %v1491
        %v1493 = vpop.f32.mrf.mxu0
        %v1494 = vpop.f32.mrf.mxu0
        %v1495 = vadd.f32 0.0, %v1494
        %v1496 = vpop.f32.mrf.mxu0
        %1497 = vmatprep.mubr.bf16.mxu0 0
        %1498 = vmatmul.mubr.bf16.gmra.mxu0 %v1355
        %v1499 = vpop.f32.mrf.mxu0
        %v1500 = vadd.f32 0.0, %v1499
        %v1501 = vpop.f32.mrf.mxu0
        %v1502 = vpop.f32.mrf.mxu0
        %v1503 = vadd.f32 0.0, %v1502
        %v1504 = vpop.f32.mrf.mxu0
        %1505 = vmatprep.mubr.bf16.mxu0 0
        %1506 = vmatmul.mubr.bf16.gmra.mxu0 %v1356
        %v1507 = vpop.f32.mrf.mxu0
        %v1508 = vadd.f32 0.0, %v1507
        %v1509 = vpop.f32.mrf.mxu0
        %v1510 = vpop.f32.mrf.mxu0
        %v1511 = vadd.f32 0.0, %v1510
        %v1512 = vpop.f32.mrf.mxu0
        %1513 = vmatprep.mubr.bf16.mxu0 0
        %1514 = vmatmul.mubr.bf16.gmra.mxu0 %v1357
        %v1515 = vpop.f32.mrf.mxu0
        %v1516 = vadd.f32 0.0, %v1515
        %v1517 = vpop.f32.mrf.mxu0
        %v1518 = vpop.f32.mrf.mxu0
        %v1519 = vadd.f32 0.0, %v1518
        %v1520 = vpop.f32.mrf.mxu0
        %1521 = vmatprep.mubr.bf16.mxu0 0
        %1522 = vmatmul.mubr.bf16.gmra.mxu0 %v1358
        %v1523 = vpop.f32.mrf.mxu0
        %v1524 = vadd.f32 0.0, %v1523
        %v1525 = vpop.f32.mrf.mxu0
        %v1526 = vpop.f32.mrf.mxu0
        %v1527 = vadd.f32 0.0, %v1526
        %v1528 = vpop.f32.mrf.mxu0
        %1529 = vmatprep.mubr.bf16.mxu0 0
        %1530 = vmatmul.mubr.bf16.gmra.mxu0 %v1359
        %v1531 = vpop.f32.mrf.mxu0
        %v1532 = vadd.f32 0.0, %v1531
        %v1533 = vpop.f32.mrf.mxu0
        %v1534 = vpop.f32.mrf.mxu0
        %v1535 = vadd.f32 0.0, %v1534
        %v1536 = vpop.f32.mrf.mxu0
        %1537 = vdwg.mxu0
        %v1538 = vld [vmem:[#allocation2] sm:$0xff]
        %v1539 = vld [vmem:[#allocation2 + $0x8] sm:$0xff]
        %v1540 = vld [vmem:[#allocation2 + $0x10] sm:$0xff]
        %v1541 = vld [vmem:[#allocation2 + $0x18] sm:$0xff]
        %v1542 = vld [vmem:[#allocation2 + $0x20] sm:$0xff]
        %v1543 = vld [vmem:[#allocation2 + $0x28] sm:$0xff]
        %v1544 = vld [vmem:[#allocation2 + $0x30] sm:$0xff]
        %v1545 = vld [vmem:[#allocation2 + $0x38] sm:$0xff]
        %v1546 = vld [vmem:[#allocation2 + $0x40] sm:$0xff]
        %v1547 = vld [vmem:[#allocation2 + $0x48] sm:$0xff]
        %v1548 = vld [vmem:[#allocation2 + $0x50] sm:$0xff]
        %v1549 = vld [vmem:[#allocation2 + $0x58] sm:$0xff]
        %v1550 = vld [vmem:[#allocation2 + $0x60] sm:$0xff]
        %v1551 = vld [vmem:[#allocation2 + $0x68] sm:$0xff]
        %v1552 = vld [vmem:[#allocation2 + $0x70] sm:$0xff]
        %v1553 = vld [vmem:[#allocation2 + $0x78] sm:$0xff]
        %v1554 = vld [vmem:[#allocation2 + $0x80] sm:$0xff]
        %v1555 = vld [vmem:[#allocation2 + $0x88] sm:$0xff]
        %v1556 = vld [vmem:[#allocation2 + $0x90] sm:$0xff]
        %v1557 = vld [vmem:[#allocation2 + $0x98] sm:$0xff]
        %v1558 = vadd.f32 %v1538, %v1460
        %v1559 = vadd.f32 %v1539, %v1463
        %v1560 = vadd.f32 %v1540, %v1468
        %v1561 = vadd.f32 %v1541, %v1471
        %v1562 = vadd.f32 %v1542, %v1476
        %v1563 = vadd.f32 %v1543, %v1479
        %v1564 = vadd.f32 %v1544, %v1484
        %v1565 = vadd.f32 %v1545, %v1487
        %v1566 = vadd.f32 %v1546, %v1492
        %v1567 = vadd.f32 %v1547, %v1495
        %v1568 = vadd.f32 %v1548, %v1500
        %v1569 = vadd.f32 %v1549, %v1503
        %v1570 = vadd.f32 %v1550, %v1508
        %v1571 = vadd.f32 %v1551, %v1511
        %v1572 = vadd.f32 %v1552, %v1516
        %v1573 = vadd.f32 %v1553, %v1519
        %v1574 = vadd.f32 %v1554, %v1524
        %v1575 = vadd.f32 %v1555, %v1527
        %v1576 = vadd.f32 %v1556, %v1532
        %v1577 = vadd.f32 %v1557, %v1535
        %1578 = vst [vmem:[#allocation2] sm:$0xff] %v1558
        %1579 = vst [vmem:[#allocation2 + $0x8] sm:$0xff] %v1559
        %1580 = vst [vmem:[#allocation2 + $0x10] sm:$0xff] %v1560
        %1581 = vst [vmem:[#allocation2 + $0x18] sm:$0xff] %v1561
        %1582 = vst [vmem:[#allocation2 + $0x20] sm:$0xff] %v1562
        %1583 = vst [vmem:[#allocation2 + $0x28] sm:$0xff] %v1563
        %1584 = vst [vmem:[#allocation2 + $0x30] sm:$0xff] %v1564
        %1585 = vst [vmem:[#allocation2 + $0x38] sm:$0xff] %v1565
        %1586 = vst [vmem:[#allocation2 + $0x40] sm:$0xff] %v1566
        %1587 = vst [vmem:[#allocation2 + $0x48] sm:$0xff] %v1567
        %1588 = vst [vmem:[#allocation2 + $0x50] sm:$0xff] %v1568
        %1589 = vst [vmem:[#allocation2 + $0x58] sm:$0xff] %v1569
        %1590 = vst [vmem:[#allocation2 + $0x60] sm:$0xff] %v1570
        %1591 = vst [vmem:[#allocation2 + $0x68] sm:$0xff] %v1571
        %1592 = vst [vmem:[#allocation2 + $0x70] sm:$0xff] %v1572
        %1593 = vst [vmem:[#allocation2 + $0x78] sm:$0xff] %v1573
        %1594 = vst [vmem:[#allocation2 + $0x80] sm:$0xff] %v1574
        %1595 = vst [vmem:[#allocation2 + $0x88] sm:$0xff] %v1575
        %1596 = vst [vmem:[#allocation2 + $0x90] sm:$0xff] %v1576
        %1597 = vst [vmem:[#allocation2 + $0x98] sm:$0xff] %v1577
        %v1598 = vld [vmem:[%s1061 + $0x2] sm:$0xff]
        %v1599 = vld [vmem:[%s1061 + $0xa] sm:$0xff]
        %v1600 = vld [vmem:[%s1061 + $0x1a] sm:$0xff]
        %v1601 = vld [vmem:[%s1061 + $0x22] sm:$0xff]
        %v1602 = vld [vmem:[%s1061 + $0x32] sm:$0xff]
        %v1603 = vld [vmem:[%s1061 + $0x3a] sm:$0xff]
        %v1604 = vld [vmem:[%s1061 + $0x4a] sm:$0xff]
        %v1605 = vld [vmem:[%s1061 + $0x52] sm:$0xff]
        %v1606 = vld [vmem:[%s1061 + $0x62] sm:$0xff]
        %v1607 = vld [vmem:[%s1061 + $0x6a] sm:$0xff]
        %v1608 = vld [vmem:[%s1061 + $0x7a] sm:$0xff]
        %v1609 = vld [vmem:[%s1061 + $0x82] sm:$0xff]
        %v1610 = vld [vmem:[%s1061 + $0x92] sm:$0xff]
        %v1611 = vld [vmem:[%s1061 + $0x9a] sm:$0xff]
        %v1612 = vld [vmem:[%s1061 + $0xaa] sm:$0xff]
        %v1613 = vld [vmem:[%s1061 + $0xb2] sm:$0xff]
        %v1614 = vld [vmem:[%s1061 + $0xc2] sm:$0xff]
        %v1615 = vld [vmem:[%s1061 + $0xca] sm:$0xff]
        %v1616 = vld [vmem:[%s1061 + $0xda] sm:$0xff]
        %v1617 = vld [vmem:[%s1061 + $0xe2] sm:$0xff]
        %v1618 = vpack.c.bf16 %v1599, %v1598
        %v1619 = vpack.c.bf16 %v1601, %v1600
        %v1620 = vpack.c.bf16 %v1603, %v1602
        %v1621 = vpack.c.bf16 %v1605, %v1604
        %v1622 = vpack.c.bf16 %v1607, %v1606
        %v1623 = vpack.c.bf16 %v1609, %v1608
        %v1624 = vpack.c.bf16 %v1611, %v1610
        %v1625 = vpack.c.bf16 %v1613, %v1612
        %v1626 = vpack.c.bf16 %v1615, %v1614
        %v1627 = vpack.c.bf16 %v1617, %v1616
        %s1628 = scalar_lea.vmem %s1, 320
        %v1629 = vld [vmem:[%s1628] sm:$0xf]
        %v1630 = vld [vmem:[%s1628 + $0x4] sm:$0xf]
        %v1631 = vld [vmem:[%s1628 + $0x8] sm:$0xf]
        %v1632 = vld [vmem:[%s1628 + $0xc] sm:$0xf]
        %v1633 = vld [vmem:[%s1628 + $0x10] sm:$0xf]
        %v1634 = vld [vmem:[%s1628 + $0x14] sm:$0xf]
        %v1635 = vld [vmem:[%s1628 + $0x18] sm:$0xf]
        %v1636 = vld [vmem:[%s1628 + $0x1c] sm:$0xf]
        %v1637 = vld [vmem:[%s1628 + $0x20] sm:$0xf]
        %v1638 = vld [vmem:[%s1628 + $0x24] sm:$0xf]
        %v1639 = vld [vmem:[%s1628 + $0x28] sm:$0xf]
        %v1640 = vld [vmem:[%s1628 + $0x2c] sm:$0xf]
        %v1641 = vld [vmem:[%s1628 + $0x30] sm:$0xf]
        %v1642 = vld [vmem:[%s1628 + $0x34] sm:$0xf]
        %v1643 = vld [vmem:[%s1628 + $0x38] sm:$0xf]
        %v1644 = vld [vmem:[%s1628 + $0x3c] sm:$0xf]
        %v1661 = vunpack.c.l.b16 %v1629
        %v1662 = vunpack.c.l.b16 %v1630
        %v1663 = vunpack.c.l.b16 %v1631
        %v1664 = vunpack.c.l.b16 %v1632
        %v1665 = vunpack.c.l.b16 %v1633
        %v1666 = vunpack.c.l.b16 %v1634
        %v1667 = vunpack.c.l.b16 %v1635
        %v1668 = vunpack.c.l.b16 %v1636
        %v1669 = vunpack.c.l.b16 %v1637
        %v1670 = vunpack.c.l.b16 %v1638
        %v1671 = vunpack.c.l.b16 %v1639
        %v1672 = vunpack.c.l.b16 %v1640
        %v1673 = vunpack.c.l.b16 %v1641
        %v1674 = vunpack.c.l.b16 %v1642
        %v1675 = vunpack.c.l.b16 %v1643
        %v1676 = vunpack.c.l.b16 %v1644
        %v1677 = vpack.c.b16 %v1662, %v1661
        %v1678 = vpack.c.b16 %v1664, %v1663
        %v1679 = vpack.c.b16 %v1666, %v1665
        %v1680 = vpack.c.b16 %v1668, %v1667
        %v1681 = vpack.c.b16 %v1670, %v1669
        %v1682 = vpack.c.b16 %v1672, %v1671
        %v1683 = vpack.c.b16 %v1674, %v1673
        %v1684 = vpack.c.b16 %v1676, %v1675
        %1693 = vmatprep.subr.bf16.mxu0 0
        %1694 = vmatpush1.bf16.msra.mxu0 %v1684
        %1695 = vmatprep.subr.bf16.mxu0 0
        %1696 = vmatpush1.bf16.msra.mxu0 %v1683
        %1697 = vmatprep.subr.bf16.mxu0 0
        %1698 = vmatpush1.bf16.msra.mxu0 %v1682
        %1699 = vmatprep.subr.bf16.mxu0 0
        %1700 = vmatpush1.bf16.msra.mxu0 %v1681
        %1701 = vmatprep.subr.bf16.mxu0 0
        %1702 = vmatpush1.bf16.msra.mxu0 %v1680
        %1703 = vmatprep.subr.bf16.mxu0 0
        %1704 = vmatpush1.bf16.msra.mxu0 %v1679
        %1705 = vmatprep.subr.bf16.mxu0 0
        %1706 = vmatpush1.bf16.msra.mxu0 %v1678
        %1707 = vmatprep.subr.bf16.mxu0 0
        %1708 = vmatpush1.bf16.msra.mxu0 %v1677
        %1709 = vmatprep.subr.bf16.mxu0 0
        %1710 = vmatpush2.bf16.msra.mxu0 0
        %1711 = vmatprep.subr.bf16.mxu0 0
        %1712 = vmatpush2.bf16.msra.mxu0 0
        %1713 = vmatprep.subr.bf16.mxu0 0
        %1714 = vmatpush2.bf16.msra.mxu0 0
        %1715 = vmatprep.subr.bf16.mxu0 0
        %1716 = vmatpush2.bf16.msra.mxu0 0
        %1717 = vmatprep.subr.bf16.mxu0 0
        %1718 = vmatpush2.bf16.msra.mxu0 0
        %1719 = vmatprep.subr.bf16.mxu0 0
        %1720 = vmatpush2.bf16.msra.mxu0 0
        %1721 = vmatprep.subr.bf16.mxu0 0
        %1722 = vmatpush2.bf16.msra.mxu0 0
        %1723 = vmatprep.subr.bf16.mxu0 0
        %1724 = vmatpush2.bf16.msra.mxu0 0
        %1725 = vmatprep.mubr.bf16.mxu0 0
        %1726 = vmatmul.mubr.bf16.gmra.mxu0 %v1618
        %v1727 = vpop.f32.mrf.mxu0
        %v1728 = vadd.f32 0.0, %v1727
        %v1729 = vpop.f32.mrf.mxu0
        %v1730 = vpop.f32.mrf.mxu0
        %v1731 = vadd.f32 0.0, %v1730
        %v1732 = vpop.f32.mrf.mxu0
        %1733 = vmatprep.mubr.bf16.mxu0 0
        %1734 = vmatmul.mubr.bf16.gmra.mxu0 %v1619
        %v1735 = vpop.f32.mrf.mxu0
        %v1736 = vadd.f32 0.0, %v1735
        %v1737 = vpop.f32.mrf.mxu0
        %v1738 = vpop.f32.mrf.mxu0
        %v1739 = vadd.f32 0.0, %v1738
        %v1740 = vpop.f32.mrf.mxu0
        %1741 = vmatprep.mubr.bf16.mxu0 0
        %1742 = vmatmul.mubr.bf16.gmra.mxu0 %v1620
        %v1743 = vpop.f32.mrf.mxu0
        %v1744 = vadd.f32 0.0, %v1743
        %v1745 = vpop.f32.mrf.mxu0
        %v1746 = vpop.f32.mrf.mxu0
        %v1747 = vadd.f32 0.0, %v1746
        %v1748 = vpop.f32.mrf.mxu0
        %1749 = vmatprep.mubr.bf16.mxu0 0
        %1750 = vmatmul.mubr.bf16.gmra.mxu0 %v1621
        %v1751 = vpop.f32.mrf.mxu0
        %v1752 = vadd.f32 0.0, %v1751
        %v1753 = vpop.f32.mrf.mxu0
        %v1754 = vpop.f32.mrf.mxu0
        %v1755 = vadd.f32 0.0, %v1754
        %v1756 = vpop.f32.mrf.mxu0
        %1757 = vmatprep.mubr.bf16.mxu0 0
        %1758 = vmatmul.mubr.bf16.gmra.mxu0 %v1622
        %v1759 = vpop.f32.mrf.mxu0
        %v1760 = vadd.f32 0.0, %v1759
        %v1761 = vpop.f32.mrf.mxu0
        %v1762 = vpop.f32.mrf.mxu0
        %v1763 = vadd.f32 0.0, %v1762
        %v1764 = vpop.f32.mrf.mxu0
        %1765 = vmatprep.mubr.bf16.mxu0 0
        %1766 = vmatmul.mubr.bf16.gmra.mxu0 %v1623
        %v1767 = vpop.f32.mrf.mxu0
        %v1768 = vadd.f32 0.0, %v1767
        %v1769 = vpop.f32.mrf.mxu0
        %v1770 = vpop.f32.mrf.mxu0
        %v1771 = vadd.f32 0.0, %v1770
        %v1772 = vpop.f32.mrf.mxu0
        %1773 = vmatprep.mubr.bf16.mxu0 0
        %1774 = vmatmul.mubr.bf16.gmra.mxu0 %v1624
        %v1775 = vpop.f32.mrf.mxu0
        %v1776 = vadd.f32 0.0, %v1775
        %v1777 = vpop.f32.mrf.mxu0
        %v1778 = vpop.f32.mrf.mxu0
        %v1779 = vadd.f32 0.0, %v1778
        %v1780 = vpop.f32.mrf.mxu0
        %1781 = vmatprep.mubr.bf16.mxu0 0
        %1782 = vmatmul.mubr.bf16.gmra.mxu0 %v1625
        %v1783 = vpop.f32.mrf.mxu0
        %v1784 = vadd.f32 0.0, %v1783
        %v1785 = vpop.f32.mrf.mxu0
        %v1786 = vpop.f32.mrf.mxu0
        %v1787 = vadd.f32 0.0, %v1786
        %v1788 = vpop.f32.mrf.mxu0
        %1789 = vmatprep.mubr.bf16.mxu0 0
        %1790 = vmatmul.mubr.bf16.gmra.mxu0 %v1626
        %v1791 = vpop.f32.mrf.mxu0
        %v1792 = vadd.f32 0.0, %v1791
        %v1793 = vpop.f32.mrf.mxu0
        %v1794 = vpop.f32.mrf.mxu0
        %v1795 = vadd.f32 0.0, %v1794
        %v1796 = vpop.f32.mrf.mxu0
        %1797 = vmatprep.mubr.bf16.mxu0 0
        %1798 = vmatmul.mubr.bf16.gmra.mxu0 %v1627
        %v1799 = vpop.f32.mrf.mxu0
        %v1800 = vadd.f32 0.0, %v1799
        %v1801 = vpop.f32.mrf.mxu0
        %v1802 = vpop.f32.mrf.mxu0
        %v1803 = vadd.f32 0.0, %v1802
        %v1804 = vpop.f32.mrf.mxu0
        %1805 = vdwg.mxu0
        %v1806 = vld [vmem:[#allocation2] sm:$0xff]
        %v1807 = vld [vmem:[#allocation2 + $0x8] sm:$0xff]
        %v1808 = vld [vmem:[#allocation2 + $0x10] sm:$0xff]
        %v1809 = vld [vmem:[#allocation2 + $0x18] sm:$0xff]
        %v1810 = vld [vmem:[#allocation2 + $0x20] sm:$0xff]
        %v1811 = vld [vmem:[#allocation2 + $0x28] sm:$0xff]
        %v1812 = vld [vmem:[#allocation2 + $0x30] sm:$0xff]
        %v1813 = vld [vmem:[#allocation2 + $0x38] sm:$0xff]
        %v1814 = vld [vmem:[#allocation2 + $0x40] sm:$0xff]
        %v1815 = vld [vmem:[#allocation2 + $0x48] sm:$0xff]
        %v1816 = vld [vmem:[#allocation2 + $0x50] sm:$0xff]
        %v1817 = vld [vmem:[#allocation2 + $0x58] sm:$0xff]
        %v1818 = vld [vmem:[#allocation2 + $0x60] sm:$0xff]
        %v1819 = vld [vmem:[#allocation2 + $0x68] sm:$0xff]
        %v1820 = vld [vmem:[#allocation2 + $0x70] sm:$0xff]
        %v1821 = vld [vmem:[#allocation2 + $0x78] sm:$0xff]
        %v1822 = vld [vmem:[#allocation2 + $0x80] sm:$0xff]
        %v1823 = vld [vmem:[#allocation2 + $0x88] sm:$0xff]
        %v1824 = vld [vmem:[#allocation2 + $0x90] sm:$0xff]
        %v1825 = vld [vmem:[#allocation2 + $0x98] sm:$0xff]
        %v1826 = vadd.f32 %v1806, %v1728
        %v1827 = vadd.f32 %v1807, %v1731
        %v1828 = vadd.f32 %v1808, %v1736
        %v1829 = vadd.f32 %v1809, %v1739
        %v1830 = vadd.f32 %v1810, %v1744
        %v1831 = vadd.f32 %v1811, %v1747
        %v1832 = vadd.f32 %v1812, %v1752
        %v1833 = vadd.f32 %v1813, %v1755
        %v1834 = vadd.f32 %v1814, %v1760
        %v1835 = vadd.f32 %v1815, %v1763
        %v1836 = vadd.f32 %v1816, %v1768
        %v1837 = vadd.f32 %v1817, %v1771
        %v1838 = vadd.f32 %v1818, %v1776
        %v1839 = vadd.f32 %v1819, %v1779
        %v1840 = vadd.f32 %v1820, %v1784
        %v1841 = vadd.f32 %v1821, %v1787
        %v1842 = vadd.f32 %v1822, %v1792
        %v1843 = vadd.f32 %v1823, %v1795
        %v1844 = vadd.f32 %v1824, %v1800
        %v1845 = vadd.f32 %v1825, %v1803
        %1846 = vst [vmem:[#allocation2] sm:$0xff] %v1826
        %1847 = vst [vmem:[#allocation2 + $0x8] sm:$0xff] %v1827
        %1848 = vst [vmem:[#allocation2 + $0x10] sm:$0xff] %v1828
        %1849 = vst [vmem:[#allocation2 + $0x18] sm:$0xff] %v1829
        %1850 = vst [vmem:[#allocation2 + $0x20] sm:$0xff] %v1830
        %1851 = vst [vmem:[#allocation2 + $0x28] sm:$0xff] %v1831
        %1852 = vst [vmem:[#allocation2 + $0x30] sm:$0xff] %v1832
        %1853 = vst [vmem:[#allocation2 + $0x38] sm:$0xff] %v1833
        %1854 = vst [vmem:[#allocation2 + $0x40] sm:$0xff] %v1834
        %1855 = vst [vmem:[#allocation2 + $0x48] sm:$0xff] %v1835
        %1856 = vst [vmem:[#allocation2 + $0x50] sm:$0xff] %v1836
        %1857 = vst [vmem:[#allocation2 + $0x58] sm:$0xff] %v1837
        %1858 = vst [vmem:[#allocation2 + $0x60] sm:$0xff] %v1838
        %1859 = vst [vmem:[#allocation2 + $0x68] sm:$0xff] %v1839
        %1860 = vst [vmem:[#allocation2 + $0x70] sm:$0xff] %v1840
        %1861 = vst [vmem:[#allocation2 + $0x78] sm:$0xff] %v1841
        %1862 = vst [vmem:[#allocation2 + $0x80] sm:$0xff] %v1842
        %1863 = vst [vmem:[#allocation2 + $0x88] sm:$0xff] %v1843
        %1864 = vst [vmem:[#allocation2 + $0x90] sm:$0xff] %v1844
        %1865 = vst [vmem:[#allocation2 + $0x98] sm:$0xff] %v1845
        %s1866 = sadd.s32 %s293, 2
        %s1867 = smul.u32 %s1866, 24
        %s1868 = scalar_lea.vmem %s290, %s1867
        %v1869 = vld [vmem:[%s1868] sm:$0xff]
        %v1870 = vld [vmem:[%s1868 + $0x8] sm:$0xff]
        %v1871 = vld [vmem:[%s1868 + $0x18] sm:$0xff]
        %v1872 = vld [vmem:[%s1868 + $0x20] sm:$0xff]
        %v1873 = vld [vmem:[%s1868 + $0x30] sm:$0xff]
        %v1874 = vld [vmem:[%s1868 + $0x38] sm:$0xff]
        %v1875 = vld [vmem:[%s1868 + $0x48] sm:$0xff]
        %v1876 = vld [vmem:[%s1868 + $0x50] sm:$0xff]
        %v1877 = vld [vmem:[%s1868 + $0x60] sm:$0xff]
        %v1878 = vld [vmem:[%s1868 + $0x68] sm:$0xff]
        %v1879 = vld [vmem:[%s1868 + $0x78] sm:$0xff]
        %v1880 = vld [vmem:[%s1868 + $0x80] sm:$0xff]
        %v1881 = vld [vmem:[%s1868 + $0x90] sm:$0xff]
        %v1882 = vld [vmem:[%s1868 + $0x98] sm:$0xff]
        %v1883 = vld [vmem:[%s1868 + $0xa8] sm:$0xff]
        %v1884 = vld [vmem:[%s1868 + $0xb0] sm:$0xff]
        %v1885 = vld [vmem:[%s1868 + $0xc0] sm:$0xff]
        %v1886 = vld [vmem:[%s1868 + $0xc8] sm:$0xff]
        %v1887 = vld [vmem:[%s1868 + $0xd8] sm:$0xff]
        %v1888 = vld [vmem:[%s1868 + $0xe0] sm:$0xff]
        %v1889 = vpack.c.bf16 %v1870, %v1869
        %v1890 = vpack.c.bf16 %v1872, %v1871
        %v1891 = vpack.c.bf16 %v1874, %v1873
        %v1892 = vpack.c.bf16 %v1876, %v1875
        %v1893 = vpack.c.bf16 %v1878, %v1877
        %v1894 = vpack.c.bf16 %v1880, %v1879
        %v1895 = vpack.c.bf16 %v1882, %v1881
        %v1896 = vpack.c.bf16 %v1884, %v1883
        %v1897 = vpack.c.bf16 %v1886, %v1885
        %v1898 = vpack.c.bf16 %v1888, %v1887
        %s1899 = scalar_lea.vmem %s1, 384
        %v1900 = vld [vmem:[%s1899] sm:$0xf]
        %v1901 = vld [vmem:[%s1899 + $0x4] sm:$0xf]
        %v1902 = vld [vmem:[%s1899 + $0x8] sm:$0xf]
        %v1903 = vld [vmem:[%s1899 + $0xc] sm:$0xf]
        %v1904 = vld [vmem:[%s1899 + $0x10] sm:$0xf]
        %v1905 = vld [vmem:[%s1899 + $0x14] sm:$0xf]
        %v1906 = vld [vmem:[%s1899 + $0x18] sm:$0xf]
        %v1907 = vld [vmem:[%s1899 + $0x1c] sm:$0xf]
        %v1908 = vld [vmem:[%s1899 + $0x20] sm:$0xf]
        %v1909 = vld [vmem:[%s1899 + $0x24] sm:$0xf]
        %v1910 = vld [vmem:[%s1899 + $0x28] sm:$0xf]
        %v1911 = vld [vmem:[%s1899 + $0x2c] sm:$0xf]
        %v1912 = vld [vmem:[%s1899 + $0x30] sm:$0xf]
        %v1913 = vld [vmem:[%s1899 + $0x34] sm:$0xf]
        %v1914 = vld [vmem:[%s1899 + $0x38] sm:$0xf]
        %v1915 = vld [vmem:[%s1899 + $0x3c] sm:$0xf]
        %v1932 = vunpack.c.l.b16 %v1900
        %v1933 = vunpack.c.l.b16 %v1901
        %v1934 = vunpack.c.l.b16 %v1902
        %v1935 = vunpack.c.l.b16 %v1903
        %v1936 = vunpack.c.l.b16 %v1904
        %v1937 = vunpack.c.l.b16 %v1905
        %v1938 = vunpack.c.l.b16 %v1906
        %v1939 = vunpack.c.l.b16 %v1907
        %v1940 = vunpack.c.l.b16 %v1908
        %v1941 = vunpack.c.l.b16 %v1909
        %v1942 = vunpack.c.l.b16 %v1910
        %v1943 = vunpack.c.l.b16 %v1911
        %v1944 = vunpack.c.l.b16 %v1912
        %v1945 = vunpack.c.l.b16 %v1913
        %v1946 = vunpack.c.l.b16 %v1914
        %v1947 = vunpack.c.l.b16 %v1915
        %v1948 = vpack.c.b16 %v1933, %v1932
        %v1949 = vpack.c.b16 %v1935, %v1934
        %v1950 = vpack.c.b16 %v1937, %v1936
        %v1951 = vpack.c.b16 %v1939, %v1938
        %v1952 = vpack.c.b16 %v1941, %v1940
        %v1953 = vpack.c.b16 %v1943, %v1942
        %v1954 = vpack.c.b16 %v1945, %v1944
        %v1955 = vpack.c.b16 %v1947, %v1946
        %1964 = vmatprep.subr.bf16.mxu0 0
        %1965 = vmatpush1.bf16.msra.mxu0 %v1955
        %1966 = vmatprep.subr.bf16.mxu0 0
        %1967 = vmatpush1.bf16.msra.mxu0 %v1954
        %1968 = vmatprep.subr.bf16.mxu0 0
        %1969 = vmatpush1.bf16.msra.mxu0 %v1953
        %1970 = vmatprep.subr.bf16.mxu0 0
        %1971 = vmatpush1.bf16.msra.mxu0 %v1952
        %1972 = vmatprep.subr.bf16.mxu0 0
        %1973 = vmatpush1.bf16.msra.mxu0 %v1951
        %1974 = vmatprep.subr.bf16.mxu0 0
        %1975 = vmatpush1.bf16.msra.mxu0 %v1950
        %1976 = vmatprep.subr.bf16.mxu0 0
        %1977 = vmatpush1.bf16.msra.mxu0 %v1949
        %1978 = vmatprep.subr.bf16.mxu0 0
        %1979 = vmatpush1.bf16.msra.mxu0 %v1948
        %1980 = vmatprep.subr.bf16.mxu0 0
        %1981 = vmatpush2.bf16.msra.mxu0 0
        %1982 = vmatprep.subr.bf16.mxu0 0
        %1983 = vmatpush2.bf16.msra.mxu0 0
        %1984 = vmatprep.subr.bf16.mxu0 0
        %1985 = vmatpush2.bf16.msra.mxu0 0
        %1986 = vmatprep.subr.bf16.mxu0 0
        %1987 = vmatpush2.bf16.msra.mxu0 0
        %1988 = vmatprep.subr.bf16.mxu0 0
        %1989 = vmatpush2.bf16.msra.mxu0 0
        %1990 = vmatprep.subr.bf16.mxu0 0
        %1991 = vmatpush2.bf16.msra.mxu0 0
        %1992 = vmatprep.subr.bf16.mxu0 0
        %1993 = vmatpush2.bf16.msra.mxu0 0
        %1994 = vmatprep.subr.bf16.mxu0 0
        %1995 = vmatpush2.bf16.msra.mxu0 0
        %1996 = vmatprep.mubr.bf16.mxu0 0
        %1997 = vmatmul.mubr.bf16.gmra.mxu0 %v1889
        %v1998 = vpop.f32.mrf.mxu0
        %v1999 = vadd.f32 0.0, %v1998
        %v2000 = vpop.f32.mrf.mxu0
        %v2001 = vpop.f32.mrf.mxu0
        %v2002 = vadd.f32 0.0, %v2001
        %v2003 = vpop.f32.mrf.mxu0
        %2004 = vmatprep.mubr.bf16.mxu0 0
        %2005 = vmatmul.mubr.bf16.gmra.mxu0 %v1890
        %v2006 = vpop.f32.mrf.mxu0
        %v2007 = vadd.f32 0.0, %v2006
        %v2008 = vpop.f32.mrf.mxu0
        %v2009 = vpop.f32.mrf.mxu0
        %v2010 = vadd.f32 0.0, %v2009
        %v2011 = vpop.f32.mrf.mxu0
        %2012 = vmatprep.mubr.bf16.mxu0 0
        %2013 = vmatmul.mubr.bf16.gmra.mxu0 %v1891
        %v2014 = vpop.f32.mrf.mxu0
        %v2015 = vadd.f32 0.0, %v2014
        %v2016 = vpop.f32.mrf.mxu0
        %v2017 = vpop.f32.mrf.mxu0
        %v2018 = vadd.f32 0.0, %v2017
        %v2019 = vpop.f32.mrf.mxu0
        %2020 = vmatprep.mubr.bf16.mxu0 0
        %2021 = vmatmul.mubr.bf16.gmra.mxu0 %v1892
        %v2022 = vpop.f32.mrf.mxu0
        %v2023 = vadd.f32 0.0, %v2022
        %v2024 = vpop.f32.mrf.mxu0
        %v2025 = vpop.f32.mrf.mxu0
        %v2026 = vadd.f32 0.0, %v2025
        %v2027 = vpop.f32.mrf.mxu0
        %2028 = vmatprep.mubr.bf16.mxu0 0
        %2029 = vmatmul.mubr.bf16.gmra.mxu0 %v1893
        %v2030 = vpop.f32.mrf.mxu0
        %v2031 = vadd.f32 0.0, %v2030
        %v2032 = vpop.f32.mrf.mxu0
        %v2033 = vpop.f32.mrf.mxu0
        %v2034 = vadd.f32 0.0, %v2033
        %v2035 = vpop.f32.mrf.mxu0
        %2036 = vmatprep.mubr.bf16.mxu0 0
        %2037 = vmatmul.mubr.bf16.gmra.mxu0 %v1894
        %v2038 = vpop.f32.mrf.mxu0
        %v2039 = vadd.f32 0.0, %v2038
        %v2040 = vpop.f32.mrf.mxu0
        %v2041 = vpop.f32.mrf.mxu0
        %v2042 = vadd.f32 0.0, %v2041
        %v2043 = vpop.f32.mrf.mxu0
        %2044 = vmatprep.mubr.bf16.mxu0 0
        %2045 = vmatmul.mubr.bf16.gmra.mxu0 %v1895
        %v2046 = vpop.f32.mrf.mxu0
        %v2047 = vadd.f32 0.0, %v2046
        %v2048 = vpop.f32.mrf.mxu0
        %v2049 = vpop.f32.mrf.mxu0
        %v2050 = vadd.f32 0.0, %v2049
        %v2051 = vpop.f32.mrf.mxu0
        %2052 = vmatprep.mubr.bf16.mxu0 0
        %2053 = vmatmul.mubr.bf16.gmra.mxu0 %v1896
        %v2054 = vpop.f32.mrf.mxu0
        %v2055 = vadd.f32 0.0, %v2054
        %v2056 = vpop.f32.mrf.mxu0
        %v2057 = vpop.f32.mrf.mxu0
        %v2058 = vadd.f32 0.0, %v2057
        %v2059 = vpop.f32.mrf.mxu0
        %2060 = vmatprep.mubr.bf16.mxu0 0
        %2061 = vmatmul.mubr.bf16.gmra.mxu0 %v1897
        %v2062 = vpop.f32.mrf.mxu0
        %v2063 = vadd.f32 0.0, %v2062
        %v2064 = vpop.f32.mrf.mxu0
        %v2065 = vpop.f32.mrf.mxu0
        %v2066 = vadd.f32 0.0, %v2065
        %v2067 = vpop.f32.mrf.mxu0
        %2068 = vmatprep.mubr.bf16.mxu0 0
        %2069 = vmatmul.mubr.bf16.gmra.mxu0 %v1898
        %v2070 = vpop.f32.mrf.mxu0
        %v2071 = vadd.f32 0.0, %v2070
        %v2072 = vpop.f32.mrf.mxu0
        %v2073 = vpop.f32.mrf.mxu0
        %v2074 = vadd.f32 0.0, %v2073
        %v2075 = vpop.f32.mrf.mxu0
        %2076 = vdwg.mxu0
        %v2077 = vld [vmem:[#allocation2] sm:$0xff]
        %v2078 = vld [vmem:[#allocation2 + $0x8] sm:$0xff]
        %v2079 = vld [vmem:[#allocation2 + $0x10] sm:$0xff]
        %v2080 = vld [vmem:[#allocation2 + $0x18] sm:$0xff]
        %v2081 = vld [vmem:[#allocation2 + $0x20] sm:$0xff]
        %v2082 = vld [vmem:[#allocation2 + $0x28] sm:$0xff]
        %v2083 = vld [vmem:[#allocation2 + $0x30] sm:$0xff]
        %v2084 = vld [vmem:[#allocation2 + $0x38] sm:$0xff]
        %v2085 = vld [vmem:[#allocation2 + $0x40] sm:$0xff]
        %v2086 = vld [vmem:[#allocation2 + $0x48] sm:$0xff]
        %v2087 = vld [vmem:[#allocation2 + $0x50] sm:$0xff]
        %v2088 = vld [vmem:[#allocation2 + $0x58] sm:$0xff]
        %v2089 = vld [vmem:[#allocation2 + $0x60] sm:$0xff]
        %v2090 = vld [vmem:[#allocation2 + $0x68] sm:$0xff]
        %v2091 = vld [vmem:[#allocation2 + $0x70] sm:$0xff]
        %v2092 = vld [vmem:[#allocation2 + $0x78] sm:$0xff]
        %v2093 = vld [vmem:[#allocation2 + $0x80] sm:$0xff]
        %v2094 = vld [vmem:[#allocation2 + $0x88] sm:$0xff]
        %v2095 = vld [vmem:[#allocation2 + $0x90] sm:$0xff]
        %v2096 = vld [vmem:[#allocation2 + $0x98] sm:$0xff]
        %v2097 = vadd.f32 %v2077, %v1999
        %v2098 = vadd.f32 %v2078, %v2002
        %v2099 = vadd.f32 %v2079, %v2007
        %v2100 = vadd.f32 %v2080, %v2010
        %v2101 = vadd.f32 %v2081, %v2015
        %v2102 = vadd.f32 %v2082, %v2018
        %v2103 = vadd.f32 %v2083, %v2023
        %v2104 = vadd.f32 %v2084, %v2026
        %v2105 = vadd.f32 %v2085, %v2031
        %v2106 = vadd.f32 %v2086, %v2034
        %v2107 = vadd.f32 %v2087, %v2039
        %v2108 = vadd.f32 %v2088, %v2042
        %v2109 = vadd.f32 %v2089, %v2047
        %v2110 = vadd.f32 %v2090, %v2050
        %v2111 = vadd.f32 %v2091, %v2055
        %v2112 = vadd.f32 %v2092, %v2058
        %v2113 = vadd.f32 %v2093, %v2063
        %v2114 = vadd.f32 %v2094, %v2066
        %v2115 = vadd.f32 %v2095, %v2071
        %v2116 = vadd.f32 %v2096, %v2074
        %2117 = vst [vmem:[#allocation2] sm:$0xff] %v2097
        %2118 = vst [vmem:[#allocation2 + $0x8] sm:$0xff] %v2098
        %2119 = vst [vmem:[#allocation2 + $0x10] sm:$0xff] %v2099
        %2120 = vst [vmem:[#allocation2 + $0x18] sm:$0xff] %v2100
        %2121 = vst [vmem:[#allocation2 + $0x20] sm:$0xff] %v2101
        %2122 = vst [vmem:[#allocation2 + $0x28] sm:$0xff] %v2102
        %2123 = vst [vmem:[#allocation2 + $0x30] sm:$0xff] %v2103
        %2124 = vst [vmem:[#allocation2 + $0x38] sm:$0xff] %v2104
        %2125 = vst [vmem:[#allocation2 + $0x40] sm:$0xff] %v2105
        %2126 = vst [vmem:[#allocation2 + $0x48] sm:$0xff] %v2106
        %2127 = vst [vmem:[#allocation2 + $0x50] sm:$0xff] %v2107
        %2128 = vst [vmem:[#allocation2 + $0x58] sm:$0xff] %v2108
        %2129 = vst [vmem:[#allocation2 + $0x60] sm:$0xff] %v2109
        %2130 = vst [vmem:[#allocation2 + $0x68] sm:$0xff] %v2110
        %2131 = vst [vmem:[#allocation2 + $0x70] sm:$0xff] %v2111
        %2132 = vst [vmem:[#allocation2 + $0x78] sm:$0xff] %v2112
        %2133 = vst [vmem:[#allocation2 + $0x80] sm:$0xff] %v2113
        %2134 = vst [vmem:[#allocation2 + $0x88] sm:$0xff] %v2114
        %2135 = vst [vmem:[#allocation2 + $0x90] sm:$0xff] %v2115
        %2136 = vst [vmem:[#allocation2 + $0x98] sm:$0xff] %v2116
        %v2137 = vld [vmem:[%s1868 + $0x1] sm:$0xff]
        %v2138 = vld [vmem:[%s1868 + $0x9] sm:$0xff]
        %v2139 = vld [vmem:[%s1868 + $0x19] sm:$0xff]
        %v2140 = vld [vmem:[%s1868 + $0x21] sm:$0xff]
        %v2141 = vld [vmem:[%s1868 + $0x31] sm:$0xff]
        %v2142 = vld [vmem:[%s1868 + $0x39] sm:$0xff]
        %v2143 = vld [vmem:[%s1868 + $0x49] sm:$0xff]
        %v2144 = vld [vmem:[%s1868 + $0x51] sm:$0xff]
        %v2145 = vld [vmem:[%s1868 + $0x61] sm:$0xff]
        %v2146 = vld [vmem:[%s1868 + $0x69] sm:$0xff]
        %v2147 = vld [vmem:[%s1868 + $0x79] sm:$0xff]
        %v2148 = vld [vmem:[%s1868 + $0x81] sm:$0xff]
        %v2149 = vld [vmem:[%s1868 + $0x91] sm:$0xff]
        %v2150 = vld [vmem:[%s1868 + $0x99] sm:$0xff]
        %v2151 = vld [vmem:[%s1868 + $0xa9] sm:$0xff]
        %v2152 = vld [vmem:[%s1868 + $0xb1] sm:$0xff]
        %v2153 = vld [vmem:[%s1868 + $0xc1] sm:$0xff]
        %v2154 = vld [vmem:[%s1868 + $0xc9] sm:$0xff]
        %v2155 = vld [vmem:[%s1868 + $0xd9] sm:$0xff]
        %v2156 = vld [vmem:[%s1868 + $0xe1] sm:$0xff]
        %v2157 = vpack.c.bf16 %v2138, %v2137
        %v2158 = vpack.c.bf16 %v2140, %v2139
        %v2159 = vpack.c.bf16 %v2142, %v2141
        %v2160 = vpack.c.bf16 %v2144, %v2143
        %v2161 = vpack.c.bf16 %v2146, %v2145
        %v2162 = vpack.c.bf16 %v2148, %v2147
        %v2163 = vpack.c.bf16 %v2150, %v2149
        %v2164 = vpack.c.bf16 %v2152, %v2151
        %v2165 = vpack.c.bf16 %v2154, %v2153
        %v2166 = vpack.c.bf16 %v2156, %v2155
        %s2167 = scalar_lea.vmem %s1, 448
        %v2168 = vld [vmem:[%s2167] sm:$0xf]
        %v2169 = vld [vmem:[%s2167 + $0x4] sm:$0xf]
        %v2170 = vld [vmem:[%s2167 + $0x8] sm:$0xf]
        %v2171 = vld [vmem:[%s2167 + $0xc] sm:$0xf]
        %v2172 = vld [vmem:[%s2167 + $0x10] sm:$0xf]
        %v2173 = vld [vmem:[%s2167 + $0x14] sm:$0xf]
        %v2174 = vld [vmem:[%s2167 + $0x18] sm:$0xf]
        %v2175 = vld [vmem:[%s2167 + $0x1c] sm:$0xf]
        %v2176 = vld [vmem:[%s2167 + $0x20] sm:$0xf]
        %v2177 = vld [vmem:[%s2167 + $0x24] sm:$0xf]
        %v2178 = vld [vmem:[%s2167 + $0x28] sm:$0xf]
        %v2179 = vld [vmem:[%s2167 + $0x2c] sm:$0xf]
        %v2180 = vld [vmem:[%s2167 + $0x30] sm:$0xf]
        %v2181 = vld [vmem:[%s2167 + $0x34] sm:$0xf]
        %v2182 = vld [vmem:[%s2167 + $0x38] sm:$0xf]
        %v2183 = vld [vmem:[%s2167 + $0x3c] sm:$0xf]
        %v2200 = vunpack.c.l.b16 %v2168
        %v2201 = vunpack.c.l.b16 %v2169
        %v2202 = vunpack.c.l.b16 %v2170
        %v2203 = vunpack.c.l.b16 %v2171
        %v2204 = vunpack.c.l.b16 %v2172
        %v2205 = vunpack.c.l.b16 %v2173
        %v2206 = vunpack.c.l.b16 %v2174
        %v2207 = vunpack.c.l.b16 %v2175
        %v2208 = vunpack.c.l.b16 %v2176
        %v2209 = vunpack.c.l.b16 %v2177
        %v2210 = vunpack.c.l.b16 %v2178
        %v2211 = vunpack.c.l.b16 %v2179
        %v2212 = vunpack.c.l.b16 %v2180
        %v2213 = vunpack.c.l.b16 %v2181
        %v2214 = vunpack.c.l.b16 %v2182
        %v2215 = vunpack.c.l.b16 %v2183
        %v2216 = vpack.c.b16 %v2201, %v2200
        %v2217 = vpack.c.b16 %v2203, %v2202
        %v2218 = vpack.c.b16 %v2205, %v2204
        %v2219 = vpack.c.b16 %v2207, %v2206
        %v2220 = vpack.c.b16 %v2209, %v2208
        %v2221 = vpack.c.b16 %v2211, %v2210
        %v2222 = vpack.c.b16 %v2213, %v2212
        %v2223 = vpack.c.b16 %v2215, %v2214
        %2232 = vmatprep.subr.bf16.mxu0 0
        %2233 = vmatpush1.bf16.msra.mxu0 %v2223
        %2234 = vmatprep.subr.bf16.mxu0 0
        %2235 = vmatpush1.bf16.msra.mxu0 %v2222
        %2236 = vmatprep.subr.bf16.mxu0 0
        %2237 = vmatpush1.bf16.msra.mxu0 %v2221
        %2238 = vmatprep.subr.bf16.mxu0 0
        %2239 = vmatpush1.bf16.msra.mxu0 %v2220
        %2240 = vmatprep.subr.bf16.mxu0 0
        %2241 = vmatpush1.bf16.msra.mxu0 %v2219
        %2242 = vmatprep.subr.bf16.mxu0 0
        %2243 = vmatpush1.bf16.msra.mxu0 %v2218
        %2244 = vmatprep.subr.bf16.mxu0 0
        %2245 = vmatpush1.bf16.msra.mxu0 %v2217
        %2246 = vmatprep.subr.bf16.mxu0 0
        %2247 = vmatpush1.bf16.msra.mxu0 %v2216
        %2248 = vmatprep.subr.bf16.mxu0 0
        %2249 = vmatpush2.bf16.msra.mxu0 0
        %2250 = vmatprep.subr.bf16.mxu0 0
        %2251 = vmatpush2.bf16.msra.mxu0 0
        %2252 = vmatprep.subr.bf16.mxu0 0
        %2253 = vmatpush2.bf16.msra.mxu0 0
        %2254 = vmatprep.subr.bf16.mxu0 0
        %2255 = vmatpush2.bf16.msra.mxu0 0
        %2256 = vmatprep.subr.bf16.mxu0 0
        %2257 = vmatpush2.bf16.msra.mxu0 0
        %2258 = vmatprep.subr.bf16.mxu0 0
        %2259 = vmatpush2.bf16.msra.mxu0 0
        %2260 = vmatprep.subr.bf16.mxu0 0
        %2261 = vmatpush2.bf16.msra.mxu0 0
        %2262 = vmatprep.subr.bf16.mxu0 0
        %2263 = vmatpush2.bf16.msra.mxu0 0
        %2264 = vmatprep.mubr.bf16.mxu0 0
        %2265 = vmatmul.mubr.bf16.gmra.mxu0 %v2157
        %v2266 = vpop.f32.mrf.mxu0
        %v2267 = vadd.f32 0.0, %v2266
        %v2268 = vpop.f32.mrf.mxu0
        %v2269 = vpop.f32.mrf.mxu0
        %v2270 = vadd.f32 0.0, %v2269
        %v2271 = vpop.f32.mrf.mxu0
        %2272 = vmatprep.mubr.bf16.mxu0 0
        %2273 = vmatmul.mubr.bf16.gmra.mxu0 %v2158
        %v2274 = vpop.f32.mrf.mxu0
        %v2275 = vadd.f32 0.0, %v2274
        %v2276 = vpop.f32.mrf.mxu0
        %v2277 = vpop.f32.mrf.mxu0
        %v2278 = vadd.f32 0.0, %v2277
        %v2279 = vpop.f32.mrf.mxu0
        %2280 = vmatprep.mubr.bf16.mxu0 0
        %2281 = vmatmul.mubr.bf16.gmra.mxu0 %v2159
        %v2282 = vpop.f32.mrf.mxu0
        %v2283 = vadd.f32 0.0, %v2282
        %v2284 = vpop.f32.mrf.mxu0
        %v2285 = vpop.f32.mrf.mxu0
        %v2286 = vadd.f32 0.0, %v2285
        %v2287 = vpop.f32.mrf.mxu0
        %2288 = vmatprep.mubr.bf16.mxu0 0
        %2289 = vmatmul.mubr.bf16.gmra.mxu0 %v2160
        %v2290 = vpop.f32.mrf.mxu0
        %v2291 = vadd.f32 0.0, %v2290
        %v2292 = vpop.f32.mrf.mxu0
        %v2293 = vpop.f32.mrf.mxu0
        %v2294 = vadd.f32 0.0, %v2293
        %v2295 = vpop.f32.mrf.mxu0
        %2296 = vmatprep.mubr.bf16.mxu0 0
        %2297 = vmatmul.mubr.bf16.gmra.mxu0 %v2161
        %v2298 = vpop.f32.mrf.mxu0
        %v2299 = vadd.f32 0.0, %v2298
        %v2300 = vpop.f32.mrf.mxu0
        %v2301 = vpop.f32.mrf.mxu0
        %v2302 = vadd.f32 0.0, %v2301
        %v2303 = vpop.f32.mrf.mxu0
        %2304 = vmatprep.mubr.bf16.mxu0 0
        %2305 = vmatmul.mubr.bf16.gmra.mxu0 %v2162
        %v2306 = vpop.f32.mrf.mxu0
        %v2307 = vadd.f32 0.0, %v2306
        %v2308 = vpop.f32.mrf.mxu0
        %v2309 = vpop.f32.mrf.mxu0
        %v2310 = vadd.f32 0.0, %v2309
        %v2311 = vpop.f32.mrf.mxu0
        %2312 = vmatprep.mubr.bf16.mxu0 0
        %2313 = vmatmul.mubr.bf16.gmra.mxu0 %v2163
        %v2314 = vpop.f32.mrf.mxu0
        %v2315 = vadd.f32 0.0, %v2314
        %v2316 = vpop.f32.mrf.mxu0
        %v2317 = vpop.f32.mrf.mxu0
        %v2318 = vadd.f32 0.0, %v2317
        %v2319 = vpop.f32.mrf.mxu0
        %2320 = vmatprep.mubr.bf16.mxu0 0
        %2321 = vmatmul.mubr.bf16.gmra.mxu0 %v2164
        %v2322 = vpop.f32.mrf.mxu0
        %v2323 = vadd.f32 0.0, %v2322
        %v2324 = vpop.f32.mrf.mxu0
        %v2325 = vpop.f32.mrf.mxu0
        %v2326 = vadd.f32 0.0, %v2325
        %v2327 = vpop.f32.mrf.mxu0
        %2328 = vmatprep.mubr.bf16.mxu0 0
        %2329 = vmatmul.mubr.bf16.gmra.mxu0 %v2165
        %v2330 = vpop.f32.mrf.mxu0
        %v2331 = vadd.f32 0.0, %v2330
        %v2332 = vpop.f32.mrf.mxu0
        %v2333 = vpop.f32.mrf.mxu0
        %v2334 = vadd.f32 0.0, %v2333
        %v2335 = vpop.f32.mrf.mxu0
        %2336 = vmatprep.mubr.bf16.mxu0 0
        %2337 = vmatmul.mubr.bf16.gmra.mxu0 %v2166
        %v2338 = vpop.f32.mrf.mxu0
        %v2339 = vadd.f32 0.0, %v2338
        %v2340 = vpop.f32.mrf.mxu0
        %v2341 = vpop.f32.mrf.mxu0
        %v2342 = vadd.f32 0.0, %v2341
        %v2343 = vpop.f32.mrf.mxu0
        %2344 = vdwg.mxu0
        %v2345 = vld [vmem:[#allocation2] sm:$0xff]
        %v2346 = vld [vmem:[#allocation2 + $0x8] sm:$0xff]
        %v2347 = vld [vmem:[#allocation2 + $0x10] sm:$0xff]
        %v2348 = vld [vmem:[#allocation2 + $0x18] sm:$0xff]
        %v2349 = vld [vmem:[#allocation2 + $0x20] sm:$0xff]
        %v2350 = vld [vmem:[#allocation2 + $0x28] sm:$0xff]
        %v2351 = vld [vmem:[#allocation2 + $0x30] sm:$0xff]
        %v2352 = vld [vmem:[#allocation2 + $0x38] sm:$0xff]
        %v2353 = vld [vmem:[#allocation2 + $0x40] sm:$0xff]
        %v2354 = vld [vmem:[#allocation2 + $0x48] sm:$0xff]
        %v2355 = vld [vmem:[#allocation2 + $0x50] sm:$0xff]
        %v2356 = vld [vmem:[#allocation2 + $0x58] sm:$0xff]
        %v2357 = vld [vmem:[#allocation2 + $0x60] sm:$0xff]
        %v2358 = vld [vmem:[#allocation2 + $0x68] sm:$0xff]
        %v2359 = vld [vmem:[#allocation2 + $0x70] sm:$0xff]
        %v2360 = vld [vmem:[#allocation2 + $0x78] sm:$0xff]
        %v2361 = vld [vmem:[#allocation2 + $0x80] sm:$0xff]
        %v2362 = vld [vmem:[#allocation2 + $0x88] sm:$0xff]
        %v2363 = vld [vmem:[#allocation2 + $0x90] sm:$0xff]
        %v2364 = vld [vmem:[#allocation2 + $0x98] sm:$0xff]
        %v2365 = vadd.f32 %v2345, %v2267
        %v2366 = vadd.f32 %v2346, %v2270
        %v2367 = vadd.f32 %v2347, %v2275
        %v2368 = vadd.f32 %v2348, %v2278
        %v2369 = vadd.f32 %v2349, %v2283
        %v2370 = vadd.f32 %v2350, %v2286
        %v2371 = vadd.f32 %v2351, %v2291
        %v2372 = vadd.f32 %v2352, %v2294
        %v2373 = vadd.f32 %v2353, %v2299
        %v2374 = vadd.f32 %v2354, %v2302
        %v2375 = vadd.f32 %v2355, %v2307
        %v2376 = vadd.f32 %v2356, %v2310
        %v2377 = vadd.f32 %v2357, %v2315
        %v2378 = vadd.f32 %v2358, %v2318
        %v2379 = vadd.f32 %v2359, %v2323
        %v2380 = vadd.f32 %v2360, %v2326
        %v2381 = vadd.f32 %v2361, %v2331
        %v2382 = vadd.f32 %v2362, %v2334
        %v2383 = vadd.f32 %v2363, %v2339
        %v2384 = vadd.f32 %v2364, %v2342
        %2385 = vst [vmem:[#allocation2] sm:$0xff] %v2365
        %2386 = vst [vmem:[#allocation2 + $0x8] sm:$0xff] %v2366
        %2387 = vst [vmem:[#allocation2 + $0x10] sm:$0xff] %v2367
        %2388 = vst [vmem:[#allocation2 + $0x18] sm:$0xff] %v2368
        %2389 = vst [vmem:[#allocation2 + $0x20] sm:$0xff] %v2369
        %2390 = vst [vmem:[#allocation2 + $0x28] sm:$0xff] %v2370
        %2391 = vst [vmem:[#allocation2 + $0x30] sm:$0xff] %v2371
        %2392 = vst [vmem:[#allocation2 + $0x38] sm:$0xff] %v2372
        %2393 = vst [vmem:[#allocation2 + $0x40] sm:$0xff] %v2373
        %2394 = vst [vmem:[#allocation2 + $0x48] sm:$0xff] %v2374
        %2395 = vst [vmem:[#allocation2 + $0x50] sm:$0xff] %v2375
        %2396 = vst [vmem:[#allocation2 + $0x58] sm:$0xff] %v2376
        %2397 = vst [vmem:[#allocation2 + $0x60] sm:$0xff] %v2377
        %2398 = vst [vmem:[#allocation2 + $0x68] sm:$0xff] %v2378
        %2399 = vst [vmem:[#allocation2 + $0x70] sm:$0xff] %v2379
        %2400 = vst [vmem:[#allocation2 + $0x78] sm:$0xff] %v2380
        %2401 = vst [vmem:[#allocation2 + $0x80] sm:$0xff] %v2381
        %2402 = vst [vmem:[#allocation2 + $0x88] sm:$0xff] %v2382
        %2403 = vst [vmem:[#allocation2 + $0x90] sm:$0xff] %v2383
        %2404 = vst [vmem:[#allocation2 + $0x98] sm:$0xff] %v2384
        %v2405 = vld [vmem:[%s1868 + $0x2] sm:$0xff]
        %v2406 = vld [vmem:[%s1868 + $0xa] sm:$0xff]
        %v2407 = vld [vmem:[%s1868 + $0x1a] sm:$0xff]
        %v2408 = vld [vmem:[%s1868 + $0x22] sm:$0xff]
        %v2409 = vld [vmem:[%s1868 + $0x32] sm:$0xff]
        %v2410 = vld [vmem:[%s1868 + $0x3a] sm:$0xff]
        %v2411 = vld [vmem:[%s1868 + $0x4a] sm:$0xff]
        %v2412 = vld [vmem:[%s1868 + $0x52] sm:$0xff]
        %v2413 = vld [vmem:[%s1868 + $0x62] sm:$0xff]
        %v2414 = vld [vmem:[%s1868 + $0x6a] sm:$0xff]
        %v2415 = vld [vmem:[%s1868 + $0x7a] sm:$0xff]
        %v2416 = vld [vmem:[%s1868 + $0x82] sm:$0xff]
        %v2417 = vld [vmem:[%s1868 + $0x92] sm:$0xff]
        %v2418 = vld [vmem:[%s1868 + $0x9a] sm:$0xff]
        %v2419 = vld [vmem:[%s1868 + $0xaa] sm:$0xff]
        %v2420 = vld [vmem:[%s1868 + $0xb2] sm:$0xff]
        %v2421 = vld [vmem:[%s1868 + $0xc2] sm:$0xff]
        %v2422 = vld [vmem:[%s1868 + $0xca] sm:$0xff]
        %v2423 = vld [vmem:[%s1868 + $0xda] sm:$0xff]
        %v2424 = vld [vmem:[%s1868 + $0xe2] sm:$0xff]
        %v2425 = vpack.c.bf16 %v2406, %v2405
        %v2426 = vpack.c.bf16 %v2408, %v2407
        %v2427 = vpack.c.bf16 %v2410, %v2409
        %v2428 = vpack.c.bf16 %v2412, %v2411
        %v2429 = vpack.c.bf16 %v2414, %v2413
        %v2430 = vpack.c.bf16 %v2416, %v2415
        %v2431 = vpack.c.bf16 %v2418, %v2417
        %v2432 = vpack.c.bf16 %v2420, %v2419
        %v2433 = vpack.c.bf16 %v2422, %v2421
        %v2434 = vpack.c.bf16 %v2424, %v2423
        %s2435 = scalar_lea.vmem %s1, 512
        %v2436 = vld [vmem:[%s2435] sm:$0xf]
        %v2437 = vld [vmem:[%s2435 + $0x4] sm:$0xf]
        %v2438 = vld [vmem:[%s2435 + $0x8] sm:$0xf]
        %v2439 = vld [vmem:[%s2435 + $0xc] sm:$0xf]
        %v2440 = vld [vmem:[%s2435 + $0x10] sm:$0xf]
        %v2441 = vld [vmem:[%s2435 + $0x14] sm:$0xf]
        %v2442 = vld [vmem:[%s2435 + $0x18] sm:$0xf]
        %v2443 = vld [vmem:[%s2435 + $0x1c] sm:$0xf]
        %v2444 = vld [vmem:[%s2435 + $0x20] sm:$0xf]
        %v2445 = vld [vmem:[%s2435 + $0x24] sm:$0xf]
        %v2446 = vld [vmem:[%s2435 + $0x28] sm:$0xf]
        %v2447 = vld [vmem:[%s2435 + $0x2c] sm:$0xf]
        %v2448 = vld [vmem:[%s2435 + $0x30] sm:$0xf]
        %v2449 = vld [vmem:[%s2435 + $0x34] sm:$0xf]
        %v2450 = vld [vmem:[%s2435 + $0x38] sm:$0xf]
        %v2451 = vld [vmem:[%s2435 + $0x3c] sm:$0xf]
        %v2468 = vunpack.c.l.b16 %v2436
        %v2469 = vunpack.c.l.b16 %v2437
        %v2470 = vunpack.c.l.b16 %v2438
        %v2471 = vunpack.c.l.b16 %v2439
        %v2472 = vunpack.c.l.b16 %v2440
        %v2473 = vunpack.c.l.b16 %v2441
        %v2474 = vunpack.c.l.b16 %v2442
        %v2475 = vunpack.c.l.b16 %v2443
        %v2476 = vunpack.c.l.b16 %v2444
        %v2477 = vunpack.c.l.b16 %v2445
        %v2478 = vunpack.c.l.b16 %v2446
        %v2479 = vunpack.c.l.b16 %v2447
        %v2480 = vunpack.c.l.b16 %v2448
        %v2481 = vunpack.c.l.b16 %v2449
        %v2482 = vunpack.c.l.b16 %v2450
        %v2483 = vunpack.c.l.b16 %v2451
        %v2484 = vpack.c.b16 %v2469, %v2468
        %v2485 = vpack.c.b16 %v2471, %v2470
        %v2486 = vpack.c.b16 %v2473, %v2472
        %v2487 = vpack.c.b16 %v2475, %v2474
        %v2488 = vpack.c.b16 %v2477, %v2476
        %v2489 = vpack.c.b16 %v2479, %v2478
        %v2490 = vpack.c.b16 %v2481, %v2480
        %v2491 = vpack.c.b16 %v2483, %v2482
        %2500 = vmatprep.subr.bf16.mxu0 0
        %2501 = vmatpush1.bf16.msra.mxu0 %v2491
        %2502 = vmatprep.subr.bf16.mxu0 0
        %2503 = vmatpush1.bf16.msra.mxu0 %v2490
        %2504 = vmatprep.subr.bf16.mxu0 0
        %2505 = vmatpush1.bf16.msra.mxu0 %v2489
        %2506 = vmatprep.subr.bf16.mxu0 0
        %2507 = vmatpush1.bf16.msra.mxu0 %v2488
        %2508 = vmatprep.subr.bf16.mxu0 0
        %2509 = vmatpush1.bf16.msra.mxu0 %v2487
        %2510 = vmatprep.subr.bf16.mxu0 0
        %2511 = vmatpush1.bf16.msra.mxu0 %v2486
        %2512 = vmatprep.subr.bf16.mxu0 0
        %2513 = vmatpush1.bf16.msra.mxu0 %v2485
        %2514 = vmatprep.subr.bf16.mxu0 0
        %2515 = vmatpush1.bf16.msra.mxu0 %v2484
        %2516 = vmatprep.subr.bf16.mxu0 0
        %2517 = vmatpush2.bf16.msra.mxu0 0
        %2518 = vmatprep.subr.bf16.mxu0 0
        %2519 = vmatpush2.bf16.msra.mxu0 0
        %2520 = vmatprep.subr.bf16.mxu0 0
        %2521 = vmatpush2.bf16.msra.mxu0 0
        %2522 = vmatprep.subr.bf16.mxu0 0
        %2523 = vmatpush2.bf16.msra.mxu0 0
        %2524 = vmatprep.subr.bf16.mxu0 0
        %2525 = vmatpush2.bf16.msra.mxu0 0
        %2526 = vmatprep.subr.bf16.mxu0 0
        %2527 = vmatpush2.bf16.msra.mxu0 0
        %2528 = vmatprep.subr.bf16.mxu0 0
        %2529 = vmatpush2.bf16.msra.mxu0 0
        %2530 = vmatprep.subr.bf16.mxu0 0
        %2531 = vmatpush2.bf16.msra.mxu0 0
        %2532 = vmatprep.mubr.bf16.mxu0 0
        %2533 = vmatmul.mubr.bf16.gmra.mxu0 %v2425
        %v2534 = vpop.f32.mrf.mxu0
        %v2535 = vadd.f32 0.0, %v2534
        %v2536 = vpop.f32.mrf.mxu0
        %v2537 = vpop.f32.mrf.mxu0
        %v2538 = vadd.f32 0.0, %v2537
        %v2539 = vpop.f32.mrf.mxu0
        %2540 = vmatprep.mubr.bf16.mxu0 0
        %2541 = vmatmul.mubr.bf16.gmra.mxu0 %v2426
        %v2542 = vpop.f32.mrf.mxu0
        %v2543 = vadd.f32 0.0, %v2542
        %v2544 = vpop.f32.mrf.mxu0
        %v2545 = vpop.f32.mrf.mxu0
        %v2546 = vadd.f32 0.0, %v2545
        %v2547 = vpop.f32.mrf.mxu0
        %2548 = vmatprep.mubr.bf16.mxu0 0
        %2549 = vmatmul.mubr.bf16.gmra.mxu0 %v2427
        %v2550 = vpop.f32.mrf.mxu0
        %v2551 = vadd.f32 0.0, %v2550
        %v2552 = vpop.f32.mrf.mxu0
        %v2553 = vpop.f32.mrf.mxu0
        %v2554 = vadd.f32 0.0, %v2553
        %v2555 = vpop.f32.mrf.mxu0
        %2556 = vmatprep.mubr.bf16.mxu0 0
        %2557 = vmatmul.mubr.bf16.gmra.mxu0 %v2428
        %v2558 = vpop.f32.mrf.mxu0
        %v2559 = vadd.f32 0.0, %v2558
        %v2560 = vpop.f32.mrf.mxu0
        %v2561 = vpop.f32.mrf.mxu0
        %v2562 = vadd.f32 0.0, %v2561
        %v2563 = vpop.f32.mrf.mxu0
        %2564 = vmatprep.mubr.bf16.mxu0 0
        %2565 = vmatmul.mubr.bf16.gmra.mxu0 %v2429
        %v2566 = vpop.f32.mrf.mxu0
        %v2567 = vadd.f32 0.0, %v2566
        %v2568 = vpop.f32.mrf.mxu0
        %v2569 = vpop.f32.mrf.mxu0
        %v2570 = vadd.f32 0.0, %v2569
        %v2571 = vpop.f32.mrf.mxu0
        %2572 = vmatprep.mubr.bf16.mxu0 0
        %2573 = vmatmul.mubr.bf16.gmra.mxu0 %v2430
        %v2574 = vpop.f32.mrf.mxu0
        %v2575 = vadd.f32 0.0, %v2574
        %v2576 = vpop.f32.mrf.mxu0
        %v2577 = vpop.f32.mrf.mxu0
        %v2578 = vadd.f32 0.0, %v2577
        %v2579 = vpop.f32.mrf.mxu0
        %2580 = vmatprep.mubr.bf16.mxu0 0
        %2581 = vmatmul.mubr.bf16.gmra.mxu0 %v2431
        %v2582 = vpop.f32.mrf.mxu0
        %v2583 = vadd.f32 0.0, %v2582
        %v2584 = vpop.f32.mrf.mxu0
        %v2585 = vpop.f32.mrf.mxu0
        %v2586 = vadd.f32 0.0, %v2585
        %v2587 = vpop.f32.mrf.mxu0
        %2588 = vmatprep.mubr.bf16.mxu0 0
        %2589 = vmatmul.mubr.bf16.gmra.mxu0 %v2432
        %v2590 = vpop.f32.mrf.mxu0
        %v2591 = vadd.f32 0.0, %v2590
        %v2592 = vpop.f32.mrf.mxu0
        %v2593 = vpop.f32.mrf.mxu0
        %v2594 = vadd.f32 0.0, %v2593
        %v2595 = vpop.f32.mrf.mxu0
        %2596 = vmatprep.mubr.bf16.mxu0 0
        %2597 = vmatmul.mubr.bf16.gmra.mxu0 %v2433
        %v2598 = vpop.f32.mrf.mxu0
        %v2599 = vadd.f32 0.0, %v2598
        %v2600 = vpop.f32.mrf.mxu0
        %v2601 = vpop.f32.mrf.mxu0
        %v2602 = vadd.f32 0.0, %v2601
        %v2603 = vpop.f32.mrf.mxu0
        %2604 = vmatprep.mubr.bf16.mxu0 0
        %2605 = vmatmul.mubr.bf16.gmra.mxu0 %v2434
        %v2606 = vpop.f32.mrf.mxu0
        %v2607 = vadd.f32 0.0, %v2606
        %v2608 = vpop.f32.mrf.mxu0
        %v2609 = vpop.f32.mrf.mxu0
        %v2610 = vadd.f32 0.0, %v2609
        %v2611 = vpop.f32.mrf.mxu0
        %2612 = vdwg.mxu0
        %v2613 = vld [vmem:[#allocation2] sm:$0xff]
        %v2614 = vld [vmem:[#allocation2 + $0x8] sm:$0xff]
        %v2615 = vld [vmem:[#allocation2 + $0x10] sm:$0xff]
        %v2616 = vld [vmem:[#allocation2 + $0x18] sm:$0xff]
        %v2617 = vld [vmem:[#allocation2 + $0x20] sm:$0xff]
        %v2618 = vld [vmem:[#allocation2 + $0x28] sm:$0xff]
        %v2619 = vld [vmem:[#allocation2 + $0x30] sm:$0xff]
        %v2620 = vld [vmem:[#allocation2 + $0x38] sm:$0xff]
        %v2621 = vld [vmem:[#allocation2 + $0x40] sm:$0xff]
        %v2622 = vld [vmem:[#allocation2 + $0x48] sm:$0xff]
        %v2623 = vld [vmem:[#allocation2 + $0x50] sm:$0xff]
        %v2624 = vld [vmem:[#allocation2 + $0x58] sm:$0xff]
        %v2625 = vld [vmem:[#allocation2 + $0x60] sm:$0xff]
        %v2626 = vld [vmem:[#allocation2 + $0x68] sm:$0xff]
        %v2627 = vld [vmem:[#allocation2 + $0x70] sm:$0xff]
        %v2628 = vld [vmem:[#allocation2 + $0x78] sm:$0xff]
        %v2629 = vld [vmem:[#allocation2 + $0x80] sm:$0xff]
        %v2630 = vld [vmem:[#allocation2 + $0x88] sm:$0xff]
        %v2631 = vld [vmem:[#allocation2 + $0x90] sm:$0xff]
        %v2632 = vld [vmem:[#allocation2 + $0x98] sm:$0xff]
        %v2633 = vadd.f32 %v2613, %v2535
        %v2634 = vadd.f32 %v2614, %v2538
        %v2635 = vadd.f32 %v2615, %v2543
        %v2636 = vadd.f32 %v2616, %v2546
        %v2637 = vadd.f32 %v2617, %v2551
        %v2638 = vadd.f32 %v2618, %v2554
        %v2639 = vadd.f32 %v2619, %v2559
        %v2640 = vadd.f32 %v2620, %v2562
        %v2641 = vadd.f32 %v2621, %v2567
        %v2642 = vadd.f32 %v2622, %v2570
        %v2643 = vadd.f32 %v2623, %v2575
        %v2644 = vadd.f32 %v2624, %v2578
        %v2645 = vadd.f32 %v2625, %v2583
        %v2646 = vadd.f32 %v2626, %v2586
        %v2647 = vadd.f32 %v2627, %v2591
        %v2648 = vadd.f32 %v2628, %v2594
        %v2649 = vadd.f32 %v2629, %v2599
        %v2650 = vadd.f32 %v2630, %v2602
        %v2651 = vadd.f32 %v2631, %v2607
        %v2652 = vadd.f32 %v2632, %v2610
        %2653 = vst [vmem:[#allocation2] sm:$0xff] %v2633
        %2654 = vst [vmem:[#allocation2 + $0x8] sm:$0xff] %v2634
        %2655 = vst [vmem:[#allocation2 + $0x10] sm:$0xff] %v2635
        %2656 = vst [vmem:[#allocation2 + $0x18] sm:$0xff] %v2636
        %2657 = vst [vmem:[#allocation2 + $0x20] sm:$0xff] %v2637
        %2658 = vst [vmem:[#allocation2 + $0x28] sm:$0xff] %v2638
        %2659 = vst [vmem:[#allocation2 + $0x30] sm:$0xff] %v2639
        %2660 = vst [vmem:[#allocation2 + $0x38] sm:$0xff] %v2640
        %2661 = vst [vmem:[#allocation2 + $0x40] sm:$0xff] %v2641
        %2662 = vst [vmem:[#allocation2 + $0x48] sm:$0xff] %v2642
        %2663 = vst [vmem:[#allocation2 + $0x50] sm:$0xff] %v2643
        %2664 = vst [vmem:[#allocation2 + $0x58] sm:$0xff] %v2644
        %2665 = vst [vmem:[#allocation2 + $0x60] sm:$0xff] %v2645
        %2666 = vst [vmem:[#allocation2 + $0x68] sm:$0xff] %v2646
        %2667 = vst [vmem:[#allocation2 + $0x70] sm:$0xff] %v2647
        %2668 = vst [vmem:[#allocation2 + $0x78] sm:$0xff] %v2648
        %2669 = vst [vmem:[#allocation2 + $0x80] sm:$0xff] %v2649
        %2670 = vst [vmem:[#allocation2 + $0x88] sm:$0xff] %v2650
        %2671 = vst [vmem:[#allocation2 + $0x90] sm:$0xff] %v2651
        %2672 = vst [vmem:[#allocation2 + $0x98] sm:$0xff] %v2652
        %v2673 = vld [vmem:[#allocation2] sm:$0xff]
        %v2674 = vld [vmem:[#allocation2 + $0x8] sm:$0xff]
        %v2675 = vld [vmem:[#allocation2 + $0x10] sm:$0xff]
        %v2676 = vld [vmem:[#allocation2 + $0x18] sm:$0xff]
        %v2677 = vld [vmem:[#allocation2 + $0x20] sm:$0xff]
        %v2678 = vld [vmem:[#allocation2 + $0x28] sm:$0xff]
        %v2679 = vld [vmem:[#allocation2 + $0x30] sm:$0xff]
        %v2680 = vld [vmem:[#allocation2 + $0x38] sm:$0xff]
        %v2681 = vld [vmem:[#allocation2 + $0x40] sm:$0xff]
        %v2682 = vld [vmem:[#allocation2 + $0x48] sm:$0xff]
        %v2683 = vld [vmem:[#allocation2 + $0x50] sm:$0xff]
        %v2684 = vld [vmem:[#allocation2 + $0x58] sm:$0xff]
        %v2685 = vld [vmem:[#allocation2 + $0x60] sm:$0xff]
        %v2686 = vld [vmem:[#allocation2 + $0x68] sm:$0xff]
        %v2687 = vld [vmem:[#allocation2 + $0x70] sm:$0xff]
        %v2688 = vld [vmem:[#allocation2 + $0x78] sm:$0xff]
        %v2689 = vld [vmem:[#allocation2 + $0x80] sm:$0xff]
        %v2690 = vld [vmem:[#allocation2 + $0x88] sm:$0xff]
        %v2691 = vld [vmem:[#allocation2 + $0x90] sm:$0xff]
        %v2692 = vld [vmem:[#allocation2 + $0x98] sm:$0xff]
        %v2693 = vld [vmem:[%s2] sm:$0x1]
        %v2694 = vlaneseq
        %v2695 = vshrl.u32 %v2694, 7
        %v2696 = vsub.s32 0, %v2695
        %v2697 = vrot.slane %v2693, %v2696
        %v2698 = vmul.f32 %v2673, %v2697
        %v2699 = vmul.f32 %v2674, %v2697
        %v2700 = vmul.f32 %v2675, %v2697
        %v2701 = vmul.f32 %v2676, %v2697
        %v2702 = vmul.f32 %v2677, %v2697
        %v2703 = vmul.f32 %v2678, %v2697
        %v2704 = vmul.f32 %v2679, %v2697
        %v2705 = vmul.f32 %v2680, %v2697
        %v2706 = vmul.f32 %v2681, %v2697
        %v2707 = vmul.f32 %v2682, %v2697
        %v2708 = vmul.f32 %v2683, %v2697
        %v2709 = vmul.f32 %v2684, %v2697
        %v2710 = vmul.f32 %v2685, %v2697
        %v2711 = vmul.f32 %v2686, %v2697
        %v2712 = vmul.f32 %v2687, %v2697
        %v2713 = vmul.f32 %v2688, %v2697
        %v2714 = vmul.f32 %v2689, %v2697
        %v2715 = vmul.f32 %v2690, %v2697
        %v2716 = vmul.f32 %v2691, %v2697
        %v2717 = vmul.f32 %v2692, %v2697
        %v2718 = vld [vmem:[%s2 + $0x1] sm:$0x1]
        %v2719 = vlaneseq
        %v2720 = vshrl.u32 %v2719, 7
        %v2721 = vsub.s32 0, %v2720
        %v2722 = vrot.slane %v2718, %v2721
        %v2723 = vadd.f32 %v2698, %v2722
        %v2724 = vadd.f32 %v2699, %v2722
        %v2725 = vadd.f32 %v2700, %v2722
        %v2726 = vadd.f32 %v2701, %v2722
        %v2727 = vadd.f32 %v2702, %v2722
        %v2728 = vadd.f32 %v2703, %v2722
        %v2729 = vadd.f32 %v2704, %v2722
        %v2730 = vadd.f32 %v2705, %v2722
        %v2731 = vadd.f32 %v2706, %v2722
        %v2732 = vadd.f32 %v2707, %v2722
        %v2733 = vadd.f32 %v2708, %v2722
        %v2734 = vadd.f32 %v2709, %v2722
        %v2735 = vadd.f32 %v2710, %v2722
        %v2736 = vadd.f32 %v2711, %v2722
        %v2737 = vadd.f32 %v2712, %v2722
        %v2738 = vadd.f32 %v2713, %v2722
        %v2739 = vadd.f32 %v2714, %v2722
        %v2740 = vadd.f32 %v2715, %v2722
        %v2741 = vadd.f32 %v2716, %v2722
        %v2742 = vadd.f32 %v2717, %v2722
        %v2743 = vmax.f32 %v2723, 0.0
        %v2744 = vmax.f32 %v2724, 0.0
        %v2745 = vmax.f32 %v2725, 0.0
        %v2746 = vmax.f32 %v2726, 0.0
        %v2747 = vmax.f32 %v2727, 0.0
        %v2748 = vmax.f32 %v2728, 0.0
        %v2749 = vmax.f32 %v2729, 0.0
        %v2750 = vmax.f32 %v2730, 0.0
        %v2751 = vmax.f32 %v2731, 0.0
        %v2752 = vmax.f32 %v2732, 0.0
        %v2753 = vmax.f32 %v2733, 0.0
        %v2754 = vmax.f32 %v2734, 0.0
        %v2755 = vmax.f32 %v2735, 0.0
        %v2756 = vmax.f32 %v2736, 0.0
        %v2757 = vmax.f32 %v2737, 0.0
        %v2758 = vmax.f32 %v2738, 0.0
        %v2759 = vmax.f32 %v2739, 0.0
        %v2760 = vmax.f32 %v2740, 0.0
        %v2761 = vmax.f32 %v2741, 0.0
        %v2762 = vmax.f32 %v2742, 0.0
        %2763 = vst [vmem:[#allocation4 + $0x1] sm:$0xff] %v2743
        %2764 = vst [vmem:[#allocation4 + $0x9] sm:$0xff] %v2744
        %2765 = vst [vmem:[#allocation4 + $0x19] sm:$0xff] %v2745
        %2766 = vst [vmem:[#allocation4 + $0x21] sm:$0xff] %v2746
        %2767 = vst [vmem:[#allocation4 + $0x31] sm:$0xff] %v2747
        %2768 = vst [vmem:[#allocation4 + $0x39] sm:$0xff] %v2748
        %2769 = vst [vmem:[#allocation4 + $0x49] sm:$0xff] %v2749
        %2770 = vst [vmem:[#allocation4 + $0x51] sm:$0xff] %v2750
        %2771 = vst [vmem:[#allocation4 + $0x61] sm:$0xff] %v2751
        %2772 = vst [vmem:[#allocation4 + $0x69] sm:$0xff] %v2752
        %2773 = vst [vmem:[#allocation4 + $0x79] sm:$0xff] %v2753
        %2774 = vst [vmem:[#allocation4 + $0x81] sm:$0xff] %v2754
        %2775 = vst [vmem:[#allocation4 + $0x91] sm:$0xff] %v2755
        %2776 = vst [vmem:[#allocation4 + $0x99] sm:$0xff] %v2756
        %2777 = vst [vmem:[#allocation4 + $0xa9] sm:$0xff] %v2757
        %2778 = vst [vmem:[#allocation4 + $0xb1] sm:$0xff] %v2758
        %2779 = vst [vmem:[#allocation4 + $0xc1] sm:$0xff] %v2759
        %2780 = vst [vmem:[#allocation4 + $0xc9] sm:$0xff] %v2760
        %2781 = vst [vmem:[#allocation4 + $0xd9] sm:$0xff] %v2761
        %2782 = vst [vmem:[#allocation4 + $0xe1] sm:$0xff] %v2762
        %2783 = vst [vmem:[#allocation4] sm:$0x1] 0.0
        %2784 = vst [vmem:[#allocation4 + $0x18] sm:$0x1] 0.0
        %2785 = vst [vmem:[#allocation4 + $0x30] sm:$0x1] 0.0
        %2786 = vst [vmem:[#allocation4 + $0x48] sm:$0x1] 0.0
        %2787 = vst [vmem:[#allocation4 + $0x60] sm:$0x1] 0.0
        %2788 = vst [vmem:[#allocation4 + $0x78] sm:$0x1] 0.0
        %2789 = vst [vmem:[#allocation4 + $0x90] sm:$0x1] 0.0
        %2790 = vst [vmem:[#allocation4 + $0xa8] sm:$0x1] 0.0
        %2791 = vst [vmem:[#allocation4 + $0xc0] sm:$0x1] 0.0
        %2792 = vst [vmem:[#allocation4 + $0xd8] sm:$0x1] 0.0
        %2793 = vst [vmem:[#allocation4 + $0x11] sm:$0x1] 0.0
        %2794 = vst [vmem:[#allocation4 + $0x29] sm:$0x1] 0.0
        %2795 = vst [vmem:[#allocation4 + $0x41] sm:$0x1] 0.0
        %2796 = vst [vmem:[#allocation4 + $0x59] sm:$0x1] 0.0
        %2797 = vst [vmem:[#allocation4 + $0x71] sm:$0x1] 0.0
        %2798 = vst [vmem:[#allocation4 + $0x89] sm:$0x1] 0.0
        %2799 = vst [vmem:[#allocation4 + $0xa1] sm:$0x1] 0.0
        %2800 = vst [vmem:[#allocation4 + $0xb9] sm:$0x1] 0.0
        %2801 = vst [vmem:[#allocation4 + $0xd1] sm:$0x1] 0.0
        %2802 = vst [vmem:[#allocation4 + $0xe9] sm:$0x1] 0.0
        %p2803 = scmp.eq.s32.totalorder %s26, 0
        // Predicated region
        $region49: #{tpu_custom_call.1} parent=47 // pred_check
          %p2804 = pneg %p2803
        $region50: #{tpu_custom_call.1} parent=47 // pred_check_branch
          %2806 = sbr.rel (%p2804) target = $region52
        $region51: #{tpu_custom_call.1} parent=47 // pred_region
          %2807 = vst [vmem:[#allocation4] sm:$0xff] 0.0
          %2808 = vst [vmem:[#allocation4 + $0x8] sm:$0xff] 0.0
          %2809 = vst [vmem:[#allocation4 + $0x10] sm:$0x3] 0.0
        $region52: #{tpu_custom_call.1} parent=47 // pred_fallthru
          _
        %p2810 = scmp.eq.s32.totalorder %s26, 1
        // Predicated region
        $region53: #{tpu_custom_call.1} parent=47 // pred_check
          %p2811 = pneg %p2810
        $region54: #{tpu_custom_call.1} parent=47 // pred_check_branch
          %2813 = sbr.rel (%p2811) target = $region56
        $region55: #{tpu_custom_call.1} parent=47 // pred_region
          %s2814 = scalar_lea.vmem [#allocation4], 216
          %2815 = vst [vmem:[%s2814] sm:$0xff] 0.0
          %2816 = vst [vmem:[%s2814 + $0x8] sm:$0xff] 0.0
          %2817 = vst [vmem:[%s2814 + $0x10] sm:$0x3] 0.0
        $region56: #{tpu_custom_call.1} parent=47 // pred_fallthru
          _
        %v2818 = vld [vmem:[#allocation4] sm:$0xff]
        %v2819 = vld [vmem:[#allocation4 + $0x8] sm:$0xff]
        %v2820 = vld [vmem:[#allocation4 + $0x18] sm:$0xff]
        %v2821 = vld [vmem:[#allocation4 + $0x20] sm:$0xff]
        %v2822 = vld [vmem:[#allocation4 + $0x30] sm:$0xff]
        %v2823 = vld [vmem:[#allocation4 + $0x38] sm:$0xff]
        %v2824 = vld [vmem:[#allocation4 + $0x48] sm:$0xff]
        %v2825 = vld [vmem:[#allocation4 + $0x50] sm:$0xff]
        %v2826 = vld [vmem:[#allocation4 + $0x60] sm:$0xff]
        %v2827 = vld [vmem:[#allocation4 + $0x68] sm:$0xff]
        %v2828 = vld [vmem:[#allocation4 + $0x78] sm:$0xff]
        %v2829 = vld [vmem:[#allocation4 + $0x80] sm:$0xff]
        %v2830 = vld [vmem:[#allocation4 + $0x90] sm:$0xff]
        %v2831 = vld [vmem:[#allocation4 + $0x98] sm:$0xff]
        %v2832 = vld [vmem:[#allocation4 + $0xa8] sm:$0xff]
        %v2833 = vld [vmem:[#allocation4 + $0xb0] sm:$0xff]
        %v2834 = vpack.c.bf16 %v2819, %v2818
        %v2835 = vpack.c.bf16 %v2821, %v2820
        %v2836 = vpack.c.bf16 %v2823, %v2822
        %v2837 = vpack.c.bf16 %v2825, %v2824
        %v2838 = vpack.c.bf16 %v2827, %v2826
        %v2839 = vpack.c.bf16 %v2829, %v2828
        %v2840 = vpack.c.bf16 %v2831, %v2830
        %v2841 = vpack.c.bf16 %v2833, %v2832
        %v2842 = vld [vmem:[%s3] sm:$0xf]
        %v2843 = vld [vmem:[%s3 + $0x4] sm:$0xf]
        %v2844 = vld [vmem:[%s3 + $0x8] sm:$0xf]
        %v2845 = vld [vmem:[%s3 + $0xc] sm:$0xf]
        %v2846 = vld [vmem:[%s3 + $0x10] sm:$0xf]
        %v2847 = vld [vmem:[%s3 + $0x14] sm:$0xf]
        %v2848 = vld [vmem:[%s3 + $0x18] sm:$0xf]
        %v2849 = vld [vmem:[%s3 + $0x1c] sm:$0xf]
        %v2850 = vld [vmem:[%s3 + $0x20] sm:$0xf]
        %v2851 = vld [vmem:[%s3 + $0x24] sm:$0xf]
        %v2852 = vld [vmem:[%s3 + $0x28] sm:$0xf]
        %v2853 = vld [vmem:[%s3 + $0x2c] sm:$0xf]
        %v2854 = vld [vmem:[%s3 + $0x30] sm:$0xf]
        %v2855 = vld [vmem:[%s3 + $0x34] sm:$0xf]
        %v2856 = vld [vmem:[%s3 + $0x38] sm:$0xf]
        %v2857 = vld [vmem:[%s3 + $0x3c] sm:$0xf]
        %v2874 = vunpack.c.l.b16 %v2842
        %v2875 = vunpack.c.l.b16 %v2843
        %v2876 = vunpack.c.l.b16 %v2844
        %v2877 = vunpack.c.l.b16 %v2845
        %v2878 = vunpack.c.l.b16 %v2846
        %v2879 = vunpack.c.l.b16 %v2847
        %v2880 = vunpack.c.l.b16 %v2848
        %v2881 = vunpack.c.l.b16 %v2849
        %v2882 = vunpack.c.l.b16 %v2850
        %v2883 = vunpack.c.l.b16 %v2851
        %v2884 = vunpack.c.l.b16 %v2852
        %v2885 = vunpack.c.l.b16 %v2853
        %v2886 = vunpack.c.l.b16 %v2854
        %v2887 = vunpack.c.l.b16 %v2855
        %v2888 = vunpack.c.l.b16 %v2856
        %v2889 = vunpack.c.l.b16 %v2857
        %v2890 = vpack.c.b16 %v2875, %v2874
        %v2891 = vpack.c.b16 %v2877, %v2876
        %v2892 = vpack.c.b16 %v2879, %v2878
        %v2893 = vpack.c.b16 %v2881, %v2880
        %v2894 = vpack.c.b16 %v2883, %v2882
        %v2895 = vpack.c.b16 %v2885, %v2884
        %v2896 = vpack.c.b16 %v2887, %v2886
        %v2897 = vpack.c.b16 %v2889, %v2888
        %2906 = vmatprep.subr.bf16.mxu0 0
        %2907 = vmatpush1.bf16.msra.mxu0 %v2897
        %2908 = vmatprep.subr.bf16.mxu0 0
        %2909 = vmatpush1.bf16.msra.mxu0 %v2896
        %2910 = vmatprep.subr.bf16.mxu0 0
        %2911 = vmatpush1.bf16.msra.mxu0 %v2895
        %2912 = vmatprep.subr.bf16.mxu0 0
        %2913 = vmatpush1.bf16.msra.mxu0 %v2894
        %2914 = vmatprep.subr.bf16.mxu0 0
        %2915 = vmatpush1.bf16.msra.mxu0 %v2893
        %2916 = vmatprep.subr.bf16.mxu0 0
        %2917 = vmatpush1.bf16.msra.mxu0 %v2892
        %2918 = vmatprep.subr.bf16.mxu0 0
        %2919 = vmatpush1.bf16.msra.mxu0 %v2891
        %2920 = vmatprep.subr.bf16.mxu0 0
        %2921 = vmatpush1.bf16.msra.mxu0 %v2890
        %2922 = vmatprep.subr.bf16.mxu0 0
        %2923 = vmatpush2.bf16.msra.mxu0 0
        %2924 = vmatprep.subr.bf16.mxu0 0
        %2925 = vmatpush2.bf16.msra.mxu0 0
        %2926 = vmatprep.subr.bf16.mxu0 0
        %2927 = vmatpush2.bf16.msra.mxu0 0
        %2928 = vmatprep.subr.bf16.mxu0 0
        %2929 = vmatpush2.bf16.msra.mxu0 0
        %2930 = vmatprep.subr.bf16.mxu0 0
        %2931 = vmatpush2.bf16.msra.mxu0 0
        %2932 = vmatprep.subr.bf16.mxu0 0
        %2933 = vmatpush2.bf16.msra.mxu0 0
        %2934 = vmatprep.subr.bf16.mxu0 0
        %2935 = vmatpush2.bf16.msra.mxu0 0
        %2936 = vmatprep.subr.bf16.mxu0 0
        %2937 = vmatpush2.bf16.msra.mxu0 0
        %2938 = vmatprep.mubr.bf16.mxu0 0
        %2939 = vmatmul.mubr.bf16.gmra.mxu0 %v2834
        %v2940 = vpop.f32.mrf.mxu0
        %v2941 = vadd.f32 0.0, %v2940
        %v2942 = vpop.f32.mrf.mxu0
        %v2943 = vpop.f32.mrf.mxu0
        %v2944 = vadd.f32 0.0, %v2943
        %v2945 = vpop.f32.mrf.mxu0
        %2946 = vmatprep.mubr.bf16.mxu0 0
        %2947 = vmatmul.mubr.bf16.gmra.mxu0 %v2835
        %v2948 = vpop.f32.mrf.mxu0
        %v2949 = vadd.f32 0.0, %v2948
        %v2950 = vpop.f32.mrf.mxu0
        %v2951 = vpop.f32.mrf.mxu0
        %v2952 = vadd.f32 0.0, %v2951
        %v2953 = vpop.f32.mrf.mxu0
        %2954 = vmatprep.mubr.bf16.mxu0 0
        %2955 = vmatmul.mubr.bf16.gmra.mxu0 %v2836
        %v2956 = vpop.f32.mrf.mxu0
        %v2957 = vadd.f32 0.0, %v2956
        %v2958 = vpop.f32.mrf.mxu0
        %v2959 = vpop.f32.mrf.mxu0
        %v2960 = vadd.f32 0.0, %v2959
        %v2961 = vpop.f32.mrf.mxu0
        %2962 = vmatprep.mubr.bf16.mxu0 0
        %2963 = vmatmul.mubr.bf16.gmra.mxu0 %v2837
        %v2964 = vpop.f32.mrf.mxu0
        %v2965 = vadd.f32 0.0, %v2964
        %v2966 = vpop.f32.mrf.mxu0
        %v2967 = vpop.f32.mrf.mxu0
        %v2968 = vadd.f32 0.0, %v2967
        %v2969 = vpop.f32.mrf.mxu0
        %2970 = vmatprep.mubr.bf16.mxu0 0
        %2971 = vmatmul.mubr.bf16.gmra.mxu0 %v2838
        %v2972 = vpop.f32.mrf.mxu0
        %v2973 = vadd.f32 0.0, %v2972
        %v2974 = vpop.f32.mrf.mxu0
        %v2975 = vpop.f32.mrf.mxu0
        %v2976 = vadd.f32 0.0, %v2975
        %v2977 = vpop.f32.mrf.mxu0
        %2978 = vmatprep.mubr.bf16.mxu0 0
        %2979 = vmatmul.mubr.bf16.gmra.mxu0 %v2839
        %v2980 = vpop.f32.mrf.mxu0
        %v2981 = vadd.f32 0.0, %v2980
        %v2982 = vpop.f32.mrf.mxu0
        %v2983 = vpop.f32.mrf.mxu0
        %v2984 = vadd.f32 0.0, %v2983
        %v2985 = vpop.f32.mrf.mxu0
        %2986 = vmatprep.mubr.bf16.mxu0 0
        %2987 = vmatmul.mubr.bf16.gmra.mxu0 %v2840
        %v2988 = vpop.f32.mrf.mxu0
        %v2989 = vadd.f32 0.0, %v2988
        %v2990 = vpop.f32.mrf.mxu0
        %v2991 = vpop.f32.mrf.mxu0
        %v2992 = vadd.f32 0.0, %v2991
        %v2993 = vpop.f32.mrf.mxu0
        %2994 = vmatprep.mubr.bf16.mxu0 0
        %2995 = vmatmul.mubr.bf16.gmra.mxu0 %v2841
        %v2996 = vpop.f32.mrf.mxu0
        %v2997 = vadd.f32 0.0, %v2996
        %v2998 = vpop.f32.mrf.mxu0
        %v2999 = vpop.f32.mrf.mxu0
        %v3000 = vadd.f32 0.0, %v2999
        %v3001 = vpop.f32.mrf.mxu0
        %3002 = vdwg.mxu0
        %3003 = vst [vmem:[#allocation3] sm:$0xff] %v2941
        %3004 = vst [vmem:[#allocation3 + $0x8] sm:$0xff] %v2944
        %3005 = vst [vmem:[#allocation3 + $0x10] sm:$0xff] %v2949
        %3006 = vst [vmem:[#allocation3 + $0x18] sm:$0xff] %v2952
        %3007 = vst [vmem:[#allocation3 + $0x20] sm:$0xff] %v2957
        %3008 = vst [vmem:[#allocation3 + $0x28] sm:$0xff] %v2960
        %3009 = vst [vmem:[#allocation3 + $0x30] sm:$0xff] %v2965
        %3010 = vst [vmem:[#allocation3 + $0x38] sm:$0xff] %v2968
        %3011 = vst [vmem:[#allocation3 + $0x40] sm:$0xff] %v2973
        %3012 = vst [vmem:[#allocation3 + $0x48] sm:$0xff] %v2976
        %3013 = vst [vmem:[#allocation3 + $0x50] sm:$0xff] %v2981
        %3014 = vst [vmem:[#allocation3 + $0x58] sm:$0xff] %v2984
        %3015 = vst [vmem:[#allocation3 + $0x60] sm:$0xff] %v2989
        %3016 = vst [vmem:[#allocation3 + $0x68] sm:$0xff] %v2992
        %3017 = vst [vmem:[#allocation3 + $0x70] sm:$0xff] %v2997
        %3018 = vst [vmem:[#allocation3 + $0x78] sm:$0xff] %v3000
        %v3019 = vld [vmem:[#allocation4 + $0x1] sm:$0xff]
        %v3020 = vld [vmem:[#allocation4 + $0x9] sm:$0xff]
        %v3021 = vld [vmem:[#allocation4 + $0x19] sm:$0xff]
        %v3022 = vld [vmem:[#allocation4 + $0x21] sm:$0xff]
        %v3023 = vld [vmem:[#allocation4 + $0x31] sm:$0xff]
        %v3024 = vld [vmem:[#allocation4 + $0x39] sm:$0xff]
        %v3025 = vld [vmem:[#allocation4 + $0x49] sm:$0xff]
        %v3026 = vld [vmem:[#allocation4 + $0x51] sm:$0xff]
        %v3027 = vld [vmem:[#allocation4 + $0x61] sm:$0xff]
        %v3028 = vld [vmem:[#allocation4 + $0x69] sm:$0xff]
        %v3029 = vld [vmem:[#allocation4 + $0x79] sm:$0xff]
        %v3030 = vld [vmem:[#allocation4 + $0x81] sm:$0xff]
        %v3031 = vld [vmem:[#allocation4 + $0x91] sm:$0xff]
        %v3032 = vld [vmem:[#allocation4 + $0x99] sm:$0xff]
        %v3033 = vld [vmem:[#allocation4 + $0xa9] sm:$0xff]
        %v3034 = vld [vmem:[#allocation4 + $0xb1] sm:$0xff]
        %v3035 = vpack.c.bf16 %v3020, %v3019
        %v3036 = vpack.c.bf16 %v3022, %v3021
        %v3037 = vpack.c.bf16 %v3024, %v3023
        %v3038 = vpack.c.bf16 %v3026, %v3025
        %v3039 = vpack.c.bf16 %v3028, %v3027
        %v3040 = vpack.c.bf16 %v3030, %v3029
        %v3041 = vpack.c.bf16 %v3032, %v3031
        %v3042 = vpack.c.bf16 %v3034, %v3033
        %s3043 = scalar_lea.vmem %s3, 64
        %v3044 = vld [vmem:[%s3043] sm:$0xf]
        %v3045 = vld [vmem:[%s3043 + $0x4] sm:$0xf]
        %v3046 = vld [vmem:[%s3043 + $0x8] sm:$0xf]
        %v3047 = vld [vmem:[%s3043 + $0xc] sm:$0xf]
        %v3048 = vld [vmem:[%s3043 + $0x10] sm:$0xf]
        %v3049 = vld [vmem:[%s3043 + $0x14] sm:$0xf]
        %v3050 = vld [vmem:[%s3043 + $0x18] sm:$0xf]
        %v3051 = vld [vmem:[%s3043 + $0x1c] sm:$0xf]
        %v3052 = vld [vmem:[%s3043 + $0x20] sm:$0xf]
        %v3053 = vld [vmem:[%s3043 + $0x24] sm:$0xf]
        %v3054 = vld [vmem:[%s3043 + $0x28] sm:$0xf]
        %v3055 = vld [vmem:[%s3043 + $0x2c] sm:$0xf]
        %v3056 = vld [vmem:[%s3043 + $0x30] sm:$0xf]
        %v3057 = vld [vmem:[%s3043 + $0x34] sm:$0xf]
        %v3058 = vld [vmem:[%s3043 + $0x38] sm:$0xf]
        %v3059 = vld [vmem:[%s3043 + $0x3c] sm:$0xf]
        %v3076 = vunpack.c.l.b16 %v3044
        %v3077 = vunpack.c.l.b16 %v3045
        %v3078 = vunpack.c.l.b16 %v3046
        %v3079 = vunpack.c.l.b16 %v3047
        %v3080 = vunpack.c.l.b16 %v3048
        %v3081 = vunpack.c.l.b16 %v3049
        %v3082 = vunpack.c.l.b16 %v3050
        %v3083 = vunpack.c.l.b16 %v3051
        %v3084 = vunpack.c.l.b16 %v3052
        %v3085 = vunpack.c.l.b16 %v3053
        %v3086 = vunpack.c.l.b16 %v3054
        %v3087 = vunpack.c.l.b16 %v3055
        %v3088 = vunpack.c.l.b16 %v3056
        %v3089 = vunpack.c.l.b16 %v3057
        %v3090 = vunpack.c.l.b16 %v3058
        %v3091 = vunpack.c.l.b16 %v3059
        %v3092 = vpack.c.b16 %v3077, %v3076
        %v3093 = vpack.c.b16 %v3079, %v3078
        %v3094 = vpack.c.b16 %v3081, %v3080
        %v3095 = vpack.c.b16 %v3083, %v3082
        %v3096 = vpack.c.b16 %v3085, %v3084
        %v3097 = vpack.c.b16 %v3087, %v3086
        %v3098 = vpack.c.b16 %v3089, %v3088
        %v3099 = vpack.c.b16 %v3091, %v3090
        %3108 = vmatprep.subr.bf16.mxu0 0
        %3109 = vmatpush1.bf16.msra.mxu0 %v3099
        %3110 = vmatprep.subr.bf16.mxu0 0
        %3111 = vmatpush1.bf16.msra.mxu0 %v3098
        %3112 = vmatprep.subr.bf16.mxu0 0
        %3113 = vmatpush1.bf16.msra.mxu0 %v3097
        %3114 = vmatprep.subr.bf16.mxu0 0
        %3115 = vmatpush1.bf16.msra.mxu0 %v3096
        %3116 = vmatprep.subr.bf16.mxu0 0
        %3117 = vmatpush1.bf16.msra.mxu0 %v3095
        %3118 = vmatprep.subr.bf16.mxu0 0
        %3119 = vmatpush1.bf16.msra.mxu0 %v3094
        %3120 = vmatprep.subr.bf16.mxu0 0
        %3121 = vmatpush1.bf16.msra.mxu0 %v3093
        %3122 = vmatprep.subr.bf16.mxu0 0
        %3123 = vmatpush1.bf16.msra.mxu0 %v3092
        %3124 = vmatprep.subr.bf16.mxu0 0
        %3125 = vmatpush2.bf16.msra.mxu0 0
        %3126 = vmatprep.subr.bf16.mxu0 0
        %3127 = vmatpush2.bf16.msra.mxu0 0
        %3128 = vmatprep.subr.bf16.mxu0 0
        %3129 = vmatpush2.bf16.msra.mxu0 0
        %3130 = vmatprep.subr.bf16.mxu0 0
        %3131 = vmatpush2.bf16.msra.mxu0 0
        %3132 = vmatprep.subr.bf16.mxu0 0
        %3133 = vmatpush2.bf16.msra.mxu0 0
        %3134 = vmatprep.subr.bf16.mxu0 0
        %3135 = vmatpush2.bf16.msra.mxu0 0
        %3136 = vmatprep.subr.bf16.mxu0 0
        %3137 = vmatpush2.bf16.msra.mxu0 0
        %3138 = vmatprep.subr.bf16.mxu0 0
        %3139 = vmatpush2.bf16.msra.mxu0 0
        %3140 = vmatprep.mubr.bf16.mxu0 0
        %3141 = vmatmul.mubr.bf16.gmra.mxu0 %v3035
        %v3142 = vpop.f32.mrf.mxu0
        %v3143 = vadd.f32 0.0, %v3142
        %v3144 = vpop.f32.mrf.mxu0
        %v3145 = vpop.f32.mrf.mxu0
        %v3146 = vadd.f32 0.0, %v3145
        %v3147 = vpop.f32.mrf.mxu0
        %3148 = vmatprep.mubr.bf16.mxu0 0
        %3149 = vmatmul.mubr.bf16.gmra.mxu0 %v3036
        %v3150 = vpop.f32.mrf.mxu0
        %v3151 = vadd.f32 0.0, %v3150
        %v3152 = vpop.f32.mrf.mxu0
        %v3153 = vpop.f32.mrf.mxu0
        %v3154 = vadd.f32 0.0, %v3153
        %v3155 = vpop.f32.mrf.mxu0
        %3156 = vmatprep.mubr.bf16.mxu0 0
        %3157 = vmatmul.mubr.bf16.gmra.mxu0 %v3037
        %v3158 = vpop.f32.mrf.mxu0
        %v3159 = vadd.f32 0.0, %v3158
        %v3160 = vpop.f32.mrf.mxu0
        %v3161 = vpop.f32.mrf.mxu0
        %v3162 = vadd.f32 0.0, %v3161
        %v3163 = vpop.f32.mrf.mxu0
        %3164 = vmatprep.mubr.bf16.mxu0 0
        %3165 = vmatmul.mubr.bf16.gmra.mxu0 %v3038
        %v3166 = vpop.f32.mrf.mxu0
        %v3167 = vadd.f32 0.0, %v3166
        %v3168 = vpop.f32.mrf.mxu0
        %v3169 = vpop.f32.mrf.mxu0
        %v3170 = vadd.f32 0.0, %v3169
        %v3171 = vpop.f32.mrf.mxu0
        %3172 = vmatprep.mubr.bf16.mxu0 0
        %3173 = vmatmul.mubr.bf16.gmra.mxu0 %v3039
        %v3174 = vpop.f32.mrf.mxu0
        %v3175 = vadd.f32 0.0, %v3174
        %v3176 = vpop.f32.mrf.mxu0
        %v3177 = vpop.f32.mrf.mxu0
        %v3178 = vadd.f32 0.0, %v3177
        %v3179 = vpop.f32.mrf.mxu0
        %3180 = vmatprep.mubr.bf16.mxu0 0
        %3181 = vmatmul.mubr.bf16.gmra.mxu0 %v3040
        %v3182 = vpop.f32.mrf.mxu0
        %v3183 = vadd.f32 0.0, %v3182
        %v3184 = vpop.f32.mrf.mxu0
        %v3185 = vpop.f32.mrf.mxu0
        %v3186 = vadd.f32 0.0, %v3185
        %v3187 = vpop.f32.mrf.mxu0
        %3188 = vmatprep.mubr.bf16.mxu0 0
        %3189 = vmatmul.mubr.bf16.gmra.mxu0 %v3041
        %v3190 = vpop.f32.mrf.mxu0
        %v3191 = vadd.f32 0.0, %v3190
        %v3192 = vpop.f32.mrf.mxu0
        %v3193 = vpop.f32.mrf.mxu0
        %v3194 = vadd.f32 0.0, %v3193
        %v3195 = vpop.f32.mrf.mxu0
        %3196 = vmatprep.mubr.bf16.mxu0 0
        %3197 = vmatmul.mubr.bf16.gmra.mxu0 %v3042
        %v3198 = vpop.f32.mrf.mxu0
        %v3199 = vadd.f32 0.0, %v3198
        %v3200 = vpop.f32.mrf.mxu0
        %v3201 = vpop.f32.mrf.mxu0
        %v3202 = vadd.f32 0.0, %v3201
        %v3203 = vpop.f32.mrf.mxu0
        %3204 = vdwg.mxu0
        %v3205 = vld [vmem:[#allocation3] sm:$0xff]
        %v3206 = vld [vmem:[#allocation3 + $0x8] sm:$0xff]
        %v3207 = vld [vmem:[#allocation3 + $0x10] sm:$0xff]
        %v3208 = vld [vmem:[#allocation3 + $0x18] sm:$0xff]
        %v3209 = vld [vmem:[#allocation3 + $0x20] sm:$0xff]
        %v3210 = vld [vmem:[#allocation3 + $0x28] sm:$0xff]
        %v3211 = vld [vmem:[#allocation3 + $0x30] sm:$0xff]
        %v3212 = vld [vmem:[#allocation3 + $0x38] sm:$0xff]
        %v3213 = vld [vmem:[#allocation3 + $0x40] sm:$0xff]
        %v3214 = vld [vmem:[#allocation3 + $0x48] sm:$0xff]
        %v3215 = vld [vmem:[#allocation3 + $0x50] sm:$0xff]
        %v3216 = vld [vmem:[#allocation3 + $0x58] sm:$0xff]
        %v3217 = vld [vmem:[#allocation3 + $0x60] sm:$0xff]
        %v3218 = vld [vmem:[#allocation3 + $0x68] sm:$0xff]
        %v3219 = vld [vmem:[#allocation3 + $0x70] sm:$0xff]
        %v3220 = vld [vmem:[#allocation3 + $0x78] sm:$0xff]
        %v3221 = vadd.f32 %v3205, %v3143
        %v3222 = vadd.f32 %v3206, %v3146
        %v3223 = vadd.f32 %v3207, %v3151
        %v3224 = vadd.f32 %v3208, %v3154
        %v3225 = vadd.f32 %v3209, %v3159
        %v3226 = vadd.f32 %v3210, %v3162
        %v3227 = vadd.f32 %v3211, %v3167
        %v3228 = vadd.f32 %v3212, %v3170
        %v3229 = vadd.f32 %v3213, %v3175
        %v3230 = vadd.f32 %v3214, %v3178
        %v3231 = vadd.f32 %v3215, %v3183
        %v3232 = vadd.f32 %v3216, %v3186
        %v3233 = vadd.f32 %v3217, %v3191
        %v3234 = vadd.f32 %v3218, %v3194
        %v3235 = vadd.f32 %v3219, %v3199
        %v3236 = vadd.f32 %v3220, %v3202
        %3237 = vst [vmem:[#allocation3] sm:$0xff] %v3221
        %3238 = vst [vmem:[#allocation3 + $0x8] sm:$0xff] %v3222
        %3239 = vst [vmem:[#allocation3 + $0x10] sm:$0xff] %v3223
        %3240 = vst [vmem:[#allocation3 + $0x18] sm:$0xff] %v3224
        %3241 = vst [vmem:[#allocation3 + $0x20] sm:$0xff] %v3225
        %3242 = vst [vmem:[#allocation3 + $0x28] sm:$0xff] %v3226
        %3243 = vst [vmem:[#allocation3 + $0x30] sm:$0xff] %v3227
        %3244 = vst [vmem:[#allocation3 + $0x38] sm:$0xff] %v3228
        %3245 = vst [vmem:[#allocation3 + $0x40] sm:$0xff] %v3229
        %3246 = vst [vmem:[#allocation3 + $0x48] sm:$0xff] %v3230
        %3247 = vst [vmem:[#allocation3 + $0x50] sm:$0xff] %v3231
        %3248 = vst [vmem:[#allocation3 + $0x58] sm:$0xff] %v3232
        %3249 = vst [vmem:[#allocation3 + $0x60] sm:$0xff] %v3233
        %3250 = vst [vmem:[#allocation3 + $0x68] sm:$0xff] %v3234
        %3251 = vst [vmem:[#allocation3 + $0x70] sm:$0xff] %v3235
        %3252 = vst [vmem:[#allocation3 + $0x78] sm:$0xff] %v3236
        %v3253 = vld [vmem:[#allocation4 + $0x2] sm:$0xff]
        %v3254 = vld [vmem:[#allocation4 + $0xa] sm:$0xff]
        %v3255 = vld [vmem:[#allocation4 + $0x1a] sm:$0xff]
        %v3256 = vld [vmem:[#allocation4 + $0x22] sm:$0xff]
        %v3257 = vld [vmem:[#allocation4 + $0x32] sm:$0xff]
        %v3258 = vld [vmem:[#allocation4 + $0x3a] sm:$0xff]
        %v3259 = vld [vmem:[#allocation4 + $0x4a] sm:$0xff]
        %v3260 = vld [vmem:[#allocation4 + $0x52] sm:$0xff]
        %v3261 = vld [vmem:[#allocation4 + $0x62] sm:$0xff]
        %v3262 = vld [vmem:[#allocation4 + $0x6a] sm:$0xff]
        %v3263 = vld [vmem:[#allocation4 + $0x7a] sm:$0xff]
        %v3264 = vld [vmem:[#allocation4 + $0x82] sm:$0xff]
        %v3265 = vld [vmem:[#allocation4 + $0x92] sm:$0xff]
        %v3266 = vld [vmem:[#allocation4 + $0x9a] sm:$0xff]
        %v3267 = vld [vmem:[#allocation4 + $0xaa] sm:$0xff]
        %v3268 = vld [vmem:[#allocation4 + $0xb2] sm:$0xff]
        %v3269 = vpack.c.bf16 %v3254, %v3253
        %v3270 = vpack.c.bf16 %v3256, %v3255
        %v3271 = vpack.c.bf16 %v3258, %v3257
        %v3272 = vpack.c.bf16 %v3260, %v3259
        %v3273 = vpack.c.bf16 %v3262, %v3261
        %v3274 = vpack.c.bf16 %v3264, %v3263
        %v3275 = vpack.c.bf16 %v3266, %v3265
        %v3276 = vpack.c.bf16 %v3268, %v3267
        %s3277 = scalar_lea.vmem %s3, 128
        %v3278 = vld [vmem:[%s3277] sm:$0xf]
        %v3279 = vld [vmem:[%s3277 + $0x4] sm:$0xf]
        %v3280 = vld [vmem:[%s3277 + $0x8] sm:$0xf]
        %v3281 = vld [vmem:[%s3277 + $0xc] sm:$0xf]
        %v3282 = vld [vmem:[%s3277 + $0x10] sm:$0xf]
        %v3283 = vld [vmem:[%s3277 + $0x14] sm:$0xf]
        %v3284 = vld [vmem:[%s3277 + $0x18] sm:$0xf]
        %v3285 = vld [vmem:[%s3277 + $0x1c] sm:$0xf]
        %v3286 = vld [vmem:[%s3277 + $0x20] sm:$0xf]
        %v3287 = vld [vmem:[%s3277 + $0x24] sm:$0xf]
        %v3288 = vld [vmem:[%s3277 + $0x28] sm:$0xf]
        %v3289 = vld [vmem:[%s3277 + $0x2c] sm:$0xf]
        %v3290 = vld [vmem:[%s3277 + $0x30] sm:$0xf]
        %v3291 = vld [vmem:[%s3277 + $0x34] sm:$0xf]
        %v3292 = vld [vmem:[%s3277 + $0x38] sm:$0xf]
        %v3293 = vld [vmem:[%s3277 + $0x3c] sm:$0xf]
        %v3310 = vunpack.c.l.b16 %v3278
        %v3311 = vunpack.c.l.b16 %v3279
        %v3312 = vunpack.c.l.b16 %v3280
        %v3313 = vunpack.c.l.b16 %v3281
        %v3314 = vunpack.c.l.b16 %v3282
        %v3315 = vunpack.c.l.b16 %v3283
        %v3316 = vunpack.c.l.b16 %v3284
        %v3317 = vunpack.c.l.b16 %v3285
        %v3318 = vunpack.c.l.b16 %v3286
        %v3319 = vunpack.c.l.b16 %v3287
        %v3320 = vunpack.c.l.b16 %v3288
        %v3321 = vunpack.c.l.b16 %v3289
        %v3322 = vunpack.c.l.b16 %v3290
        %v3323 = vunpack.c.l.b16 %v3291
        %v3324 = vunpack.c.l.b16 %v3292
        %v3325 = vunpack.c.l.b16 %v3293
        %v3326 = vpack.c.b16 %v3311, %v3310
        %v3327 = vpack.c.b16 %v3313, %v3312
        %v3328 = vpack.c.b16 %v3315, %v3314
        %v3329 = vpack.c.b16 %v3317, %v3316
        %v3330 = vpack.c.b16 %v3319, %v3318
        %v3331 = vpack.c.b16 %v3321, %v3320
        %v3332 = vpack.c.b16 %v3323, %v3322
        %v3333 = vpack.c.b16 %v3325, %v3324
        %3342 = vmatprep.subr.bf16.mxu0 0
        %3343 = vmatpush1.bf16.msra.mxu0 %v3333
        %3344 = vmatprep.subr.bf16.mxu0 0
        %3345 = vmatpush1.bf16.msra.mxu0 %v3332
        %3346 = vmatprep.subr.bf16.mxu0 0
        %3347 = vmatpush1.bf16.msra.mxu0 %v3331
        %3348 = vmatprep.subr.bf16.mxu0 0
        %3349 = vmatpush1.bf16.msra.mxu0 %v3330
        %3350 = vmatprep.subr.bf16.mxu0 0
        %3351 = vmatpush1.bf16.msra.mxu0 %v3329
        %3352 = vmatprep.subr.bf16.mxu0 0
        %3353 = vmatpush1.bf16.msra.mxu0 %v3328
        %3354 = vmatprep.subr.bf16.mxu0 0
        %3355 = vmatpush1.bf16.msra.mxu0 %v3327
        %3356 = vmatprep.subr.bf16.mxu0 0
        %3357 = vmatpush1.bf16.msra.mxu0 %v3326
        %3358 = vmatprep.subr.bf16.mxu0 0
        %3359 = vmatpush2.bf16.msra.mxu0 0
        %3360 = vmatprep.subr.bf16.mxu0 0
        %3361 = vmatpush2.bf16.msra.mxu0 0
        %3362 = vmatprep.subr.bf16.mxu0 0
        %3363 = vmatpush2.bf16.msra.mxu0 0
        %3364 = vmatprep.subr.bf16.mxu0 0
        %3365 = vmatpush2.bf16.msra.mxu0 0
        %3366 = vmatprep.subr.bf16.mxu0 0
        %3367 = vmatpush2.bf16.msra.mxu0 0
        %3368 = vmatprep.subr.bf16.mxu0 0
        %3369 = vmatpush2.bf16.msra.mxu0 0
        %3370 = vmatprep.subr.bf16.mxu0 0
        %3371 = vmatpush2.bf16.msra.mxu0 0
        %3372 = vmatprep.subr.bf16.mxu0 0
        %3373 = vmatpush2.bf16.msra.mxu0 0
        %3374 = vmatprep.mubr.bf16.mxu0 0
        %3375 = vmatmul.mubr.bf16.gmra.mxu0 %v3269
        %v3376 = vpop.f32.mrf.mxu0
        %v3377 = vadd.f32 0.0, %v3376
        %v3378 = vpop.f32.mrf.mxu0
        %v3379 = vpop.f32.mrf.mxu0
        %v3380 = vadd.f32 0.0, %v3379
        %v3381 = vpop.f32.mrf.mxu0
        %3382 = vmatprep.mubr.bf16.mxu0 0
        %3383 = vmatmul.mubr.bf16.gmra.mxu0 %v3270
        %v3384 = vpop.f32.mrf.mxu0
        %v3385 = vadd.f32 0.0, %v3384
        %v3386 = vpop.f32.mrf.mxu0
        %v3387 = vpop.f32.mrf.mxu0
        %v3388 = vadd.f32 0.0, %v3387
        %v3389 = vpop.f32.mrf.mxu0
        %3390 = vmatprep.mubr.bf16.mxu0 0
        %3391 = vmatmul.mubr.bf16.gmra.mxu0 %v3271
        %v3392 = vpop.f32.mrf.mxu0
        %v3393 = vadd.f32 0.0, %v3392
        %v3394 = vpop.f32.mrf.mxu0
        %v3395 = vpop.f32.mrf.mxu0
        %v3396 = vadd.f32 0.0, %v3395
        %v3397 = vpop.f32.mrf.mxu0
        %3398 = vmatprep.mubr.bf16.mxu0 0
        %3399 = vmatmul.mubr.bf16.gmra.mxu0 %v3272
        %v3400 = vpop.f32.mrf.mxu0
        %v3401 = vadd.f32 0.0, %v3400
        %v3402 = vpop.f32.mrf.mxu0
        %v3403 = vpop.f32.mrf.mxu0
        %v3404 = vadd.f32 0.0, %v3403
        %v3405 = vpop.f32.mrf.mxu0
        %3406 = vmatprep.mubr.bf16.mxu0 0
        %3407 = vmatmul.mubr.bf16.gmra.mxu0 %v3273
        %v3408 = vpop.f32.mrf.mxu0
        %v3409 = vadd.f32 0.0, %v3408
        %v3410 = vpop.f32.mrf.mxu0
        %v3411 = vpop.f32.mrf.mxu0
        %v3412 = vadd.f32 0.0, %v3411
        %v3413 = vpop.f32.mrf.mxu0
        %3414 = vmatprep.mubr.bf16.mxu0 0
        %3415 = vmatmul.mubr.bf16.gmra.mxu0 %v3274
        %v3416 = vpop.f32.mrf.mxu0
        %v3417 = vadd.f32 0.0, %v3416
        %v3418 = vpop.f32.mrf.mxu0
        %v3419 = vpop.f32.mrf.mxu0
        %v3420 = vadd.f32 0.0, %v3419
        %v3421 = vpop.f32.mrf.mxu0
        %3422 = vmatprep.mubr.bf16.mxu0 0
        %3423 = vmatmul.mubr.bf16.gmra.mxu0 %v3275
        %v3424 = vpop.f32.mrf.mxu0
        %v3425 = vadd.f32 0.0, %v3424
        %v3426 = vpop.f32.mrf.mxu0
        %v3427 = vpop.f32.mrf.mxu0
        %v3428 = vadd.f32 0.0, %v3427
        %v3429 = vpop.f32.mrf.mxu0
        %3430 = vmatprep.mubr.bf16.mxu0 0
        %3431 = vmatmul.mubr.bf16.gmra.mxu0 %v3276
        %v3432 = vpop.f32.mrf.mxu0
        %v3433 = vadd.f32 0.0, %v3432
        %v3434 = vpop.f32.mrf.mxu0
        %v3435 = vpop.f32.mrf.mxu0
        %v3436 = vadd.f32 0.0, %v3435
        %v3437 = vpop.f32.mrf.mxu0
        %3438 = vdwg.mxu0
        %v3439 = vld [vmem:[#allocation3] sm:$0xff]
        %v3440 = vld [vmem:[#allocation3 + $0x8] sm:$0xff]
        %v3441 = vld [vmem:[#allocation3 + $0x10] sm:$0xff]
        %v3442 = vld [vmem:[#allocation3 + $0x18] sm:$0xff]
        %v3443 = vld [vmem:[#allocation3 + $0x20] sm:$0xff]
        %v3444 = vld [vmem:[#allocation3 + $0x28] sm:$0xff]
        %v3445 = vld [vmem:[#allocation3 + $0x30] sm:$0xff]
        %v3446 = vld [vmem:[#allocation3 + $0x38] sm:$0xff]
        %v3447 = vld [vmem:[#allocation3 + $0x40] sm:$0xff]
        %v3448 = vld [vmem:[#allocation3 + $0x48] sm:$0xff]
        %v3449 = vld [vmem:[#allocation3 + $0x50] sm:$0xff]
        %v3450 = vld [vmem:[#allocation3 + $0x58] sm:$0xff]
        %v3451 = vld [vmem:[#allocation3 + $0x60] sm:$0xff]
        %v3452 = vld [vmem:[#allocation3 + $0x68] sm:$0xff]
        %v3453 = vld [vmem:[#allocation3 + $0x70] sm:$0xff]
        %v3454 = vld [vmem:[#allocation3 + $0x78] sm:$0xff]
        %v3455 = vadd.f32 %v3439, %v3377
        %v3456 = vadd.f32 %v3440, %v3380
        %v3457 = vadd.f32 %v3441, %v3385
        %v3458 = vadd.f32 %v3442, %v3388
        %v3459 = vadd.f32 %v3443, %v3393
        %v3460 = vadd.f32 %v3444, %v3396
        %v3461 = vadd.f32 %v3445, %v3401
        %v3462 = vadd.f32 %v3446, %v3404
        %v3463 = vadd.f32 %v3447, %v3409
        %v3464 = vadd.f32 %v3448, %v3412
        %v3465 = vadd.f32 %v3449, %v3417
        %v3466 = vadd.f32 %v3450, %v3420
        %v3467 = vadd.f32 %v3451, %v3425
        %v3468 = vadd.f32 %v3452, %v3428
        %v3469 = vadd.f32 %v3453, %v3433
        %v3470 = vadd.f32 %v3454, %v3436
        %3471 = vst [vmem:[#allocation3] sm:$0xff] %v3455
        %3472 = vst [vmem:[#allocation3 + $0x8] sm:$0xff] %v3456
        %3473 = vst [vmem:[#allocation3 + $0x10] sm:$0xff] %v3457
        %3474 = vst [vmem:[#allocation3 + $0x18] sm:$0xff] %v3458
        %3475 = vst [vmem:[#allocation3 + $0x20] sm:$0xff] %v3459
        %3476 = vst [vmem:[#allocation3 + $0x28] sm:$0xff] %v3460
        %3477 = vst [vmem:[#allocation3 + $0x30] sm:$0xff] %v3461
        %3478 = vst [vmem:[#allocation3 + $0x38] sm:$0xff] %v3462
        %3479 = vst [vmem:[#allocation3 + $0x40] sm:$0xff] %v3463
        %3480 = vst [vmem:[#allocation3 + $0x48] sm:$0xff] %v3464
        %3481 = vst [vmem:[#allocation3 + $0x50] sm:$0xff] %v3465
        %3482 = vst [vmem:[#allocation3 + $0x58] sm:$0xff] %v3466
        %3483 = vst [vmem:[#allocation3 + $0x60] sm:$0xff] %v3467
        %3484 = vst [vmem:[#allocation3 + $0x68] sm:$0xff] %v3468
        %3485 = vst [vmem:[#allocation3 + $0x70] sm:$0xff] %v3469
        %3486 = vst [vmem:[#allocation3 + $0x78] sm:$0xff] %v3470
        %s3487 = scalar_lea.vmem [#allocation4], 24
        %v3488 = vld [vmem:[%s3487] sm:$0xff]
        %v3489 = vld [vmem:[%s3487 + $0x8] sm:$0xff]
        %v3490 = vld [vmem:[%s3487 + $0x18] sm:$0xff]
        %v3491 = vld [vmem:[%s3487 + $0x20] sm:$0xff]
        %v3492 = vld [vmem:[%s3487 + $0x30] sm:$0xff]
        %v3493 = vld [vmem:[%s3487 + $0x38] sm:$0xff]
        %v3494 = vld [vmem:[%s3487 + $0x48] sm:$0xff]
        %v3495 = vld [vmem:[%s3487 + $0x50] sm:$0xff]
        %v3496 = vld [vmem:[%s3487 + $0x60] sm:$0xff]
        %v3497 = vld [vmem:[%s3487 + $0x68] sm:$0xff]
        %v3498 = vld [vmem:[%s3487 + $0x78] sm:$0xff]
        %v3499 = vld [vmem:[%s3487 + $0x80] sm:$0xff]
        %v3500 = vld [vmem:[%s3487 + $0x90] sm:$0xff]
        %v3501 = vld [vmem:[%s3487 + $0x98] sm:$0xff]
        %v3502 = vld [vmem:[%s3487 + $0xa8] sm:$0xff]
        %v3503 = vld [vmem:[%s3487 + $0xb0] sm:$0xff]
        %v3504 = vpack.c.bf16 %v3489, %v3488
        %v3505 = vpack.c.bf16 %v3491, %v3490
        %v3506 = vpack.c.bf16 %v3493, %v3492
        %v3507 = vpack.c.bf16 %v3495, %v3494
        %v3508 = vpack.c.bf16 %v3497, %v3496
        %v3509 = vpack.c.bf16 %v3499, %v3498
        %v3510 = vpack.c.bf16 %v3501, %v3500
        %v3511 = vpack.c.bf16 %v3503, %v3502
        %s3512 = scalar_lea.vmem %s3, 192
        %v3513 = vld [vmem:[%s3512] sm:$0xf]
        %v3514 = vld [vmem:[%s3512 + $0x4] sm:$0xf]
        %v3515 = vld [vmem:[%s3512 + $0x8] sm:$0xf]
        %v3516 = vld [vmem:[%s3512 + $0xc] sm:$0xf]
        %v3517 = vld [vmem:[%s3512 + $0x10] sm:$0xf]
        %v3518 = vld [vmem:[%s3512 + $0x14] sm:$0xf]
        %v3519 = vld [vmem:[%s3512 + $0x18] sm:$0xf]
        %v3520 = vld [vmem:[%s3512 + $0x1c] sm:$0xf]
        %v3521 = vld [vmem:[%s3512 + $0x20] sm:$0xf]
        %v3522 = vld [vmem:[%s3512 + $0x24] sm:$0xf]
        %v3523 = vld [vmem:[%s3512 + $0x28] sm:$0xf]
        %v3524 = vld [vmem:[%s3512 + $0x2c] sm:$0xf]
        %v3525 = vld [vmem:[%s3512 + $0x30] sm:$0xf]
        %v3526 = vld [vmem:[%s3512 + $0x34] sm:$0xf]
        %v3527 = vld [vmem:[%s3512 + $0x38] sm:$0xf]
        %v3528 = vld [vmem:[%s3512 + $0x3c] sm:$0xf]
        %v3545 = vunpack.c.l.b16 %v3513
        %v3546 = vunpack.c.l.b16 %v3514
        %v3547 = vunpack.c.l.b16 %v3515
        %v3548 = vunpack.c.l.b16 %v3516
        %v3549 = vunpack.c.l.b16 %v3517
        %v3550 = vunpack.c.l.b16 %v3518
        %v3551 = vunpack.c.l.b16 %v3519
        %v3552 = vunpack.c.l.b16 %v3520
        %v3553 = vunpack.c.l.b16 %v3521
        %v3554 = vunpack.c.l.b16 %v3522
        %v3555 = vunpack.c.l.b16 %v3523
        %v3556 = vunpack.c.l.b16 %v3524
        %v3557 = vunpack.c.l.b16 %v3525
        %v3558 = vunpack.c.l.b16 %v3526
        %v3559 = vunpack.c.l.b16 %v3527
        %v3560 = vunpack.c.l.b16 %v3528
        %v3561 = vpack.c.b16 %v3546, %v3545
        %v3562 = vpack.c.b16 %v3548, %v3547
        %v3563 = vpack.c.b16 %v3550, %v3549
        %v3564 = vpack.c.b16 %v3552, %v3551
        %v3565 = vpack.c.b16 %v3554, %v3553
        %v3566 = vpack.c.b16 %v3556, %v3555
        %v3567 = vpack.c.b16 %v3558, %v3557
        %v3568 = vpack.c.b16 %v3560, %v3559
        %3577 = vmatprep.subr.bf16.mxu0 0
        %3578 = vmatpush1.bf16.msra.mxu0 %v3568
        %3579 = vmatprep.subr.bf16.mxu0 0
        %3580 = vmatpush1.bf16.msra.mxu0 %v3567
        %3581 = vmatprep.subr.bf16.mxu0 0
        %3582 = vmatpush1.bf16.msra.mxu0 %v3566
        %3583 = vmatprep.subr.bf16.mxu0 0
        %3584 = vmatpush1.bf16.msra.mxu0 %v3565
        %3585 = vmatprep.subr.bf16.mxu0 0
        %3586 = vmatpush1.bf16.msra.mxu0 %v3564
        %3587 = vmatprep.subr.bf16.mxu0 0
        %3588 = vmatpush1.bf16.msra.mxu0 %v3563
        %3589 = vmatprep.subr.bf16.mxu0 0
        %3590 = vmatpush1.bf16.msra.mxu0 %v3562
        %3591 = vmatprep.subr.bf16.mxu0 0
        %3592 = vmatpush1.bf16.msra.mxu0 %v3561
        %3593 = vmatprep.subr.bf16.mxu0 0
        %3594 = vmatpush2.bf16.msra.mxu0 0
        %3595 = vmatprep.subr.bf16.mxu0 0
        %3596 = vmatpush2.bf16.msra.mxu0 0
        %3597 = vmatprep.subr.bf16.mxu0 0
        %3598 = vmatpush2.bf16.msra.mxu0 0
        %3599 = vmatprep.subr.bf16.mxu0 0
        %3600 = vmatpush2.bf16.msra.mxu0 0
        %3601 = vmatprep.subr.bf16.mxu0 0
        %3602 = vmatpush2.bf16.msra.mxu0 0
        %3603 = vmatprep.subr.bf16.mxu0 0
        %3604 = vmatpush2.bf16.msra.mxu0 0
        %3605 = vmatprep.subr.bf16.mxu0 0
        %3606 = vmatpush2.bf16.msra.mxu0 0
        %3607 = vmatprep.subr.bf16.mxu0 0
        %3608 = vmatpush2.bf16.msra.mxu0 0
        %3609 = vmatprep.mubr.bf16.mxu0 0
        %3610 = vmatmul.mubr.bf16.gmra.mxu0 %v3504
        %v3611 = vpop.f32.mrf.mxu0
        %v3612 = vadd.f32 0.0, %v3611
        %v3613 = vpop.f32.mrf.mxu0
        %v3614 = vpop.f32.mrf.mxu0
        %v3615 = vadd.f32 0.0, %v3614
        %v3616 = vpop.f32.mrf.mxu0
        %3617 = vmatprep.mubr.bf16.mxu0 0
        %3618 = vmatmul.mubr.bf16.gmra.mxu0 %v3505
        %v3619 = vpop.f32.mrf.mxu0
        %v3620 = vadd.f32 0.0, %v3619
        %v3621 = vpop.f32.mrf.mxu0
        %v3622 = vpop.f32.mrf.mxu0
        %v3623 = vadd.f32 0.0, %v3622
        %v3624 = vpop.f32.mrf.mxu0
        %3625 = vmatprep.mubr.bf16.mxu0 0
        %3626 = vmatmul.mubr.bf16.gmra.mxu0 %v3506
        %v3627 = vpop.f32.mrf.mxu0
        %v3628 = vadd.f32 0.0, %v3627
        %v3629 = vpop.f32.mrf.mxu0
        %v3630 = vpop.f32.mrf.mxu0
        %v3631 = vadd.f32 0.0, %v3630
        %v3632 = vpop.f32.mrf.mxu0
        %3633 = vmatprep.mubr.bf16.mxu0 0
        %3634 = vmatmul.mubr.bf16.gmra.mxu0 %v3507
        %v3635 = vpop.f32.mrf.mxu0
        %v3636 = vadd.f32 0.0, %v3635
        %v3637 = vpop.f32.mrf.mxu0
        %v3638 = vpop.f32.mrf.mxu0
        %v3639 = vadd.f32 0.0, %v3638
        %v3640 = vpop.f32.mrf.mxu0
        %3641 = vmatprep.mubr.bf16.mxu0 0
        %3642 = vmatmul.mubr.bf16.gmra.mxu0 %v3508
        %v3643 = vpop.f32.mrf.mxu0
        %v3644 = vadd.f32 0.0, %v3643
        %v3645 = vpop.f32.mrf.mxu0
        %v3646 = vpop.f32.mrf.mxu0
        %v3647 = vadd.f32 0.0, %v3646
        %v3648 = vpop.f32.mrf.mxu0
        %3649 = vmatprep.mubr.bf16.mxu0 0
        %3650 = vmatmul.mubr.bf16.gmra.mxu0 %v3509
        %v3651 = vpop.f32.mrf.mxu0
        %v3652 = vadd.f32 0.0, %v3651
        %v3653 = vpop.f32.mrf.mxu0
        %v3654 = vpop.f32.mrf.mxu0
        %v3655 = vadd.f32 0.0, %v3654
        %v3656 = vpop.f32.mrf.mxu0
        %3657 = vmatprep.mubr.bf16.mxu0 0
        %3658 = vmatmul.mubr.bf16.gmra.mxu0 %v3510
        %v3659 = vpop.f32.mrf.mxu0
        %v3660 = vadd.f32 0.0, %v3659
        %v3661 = vpop.f32.mrf.mxu0
        %v3662 = vpop.f32.mrf.mxu0
        %v3663 = vadd.f32 0.0, %v3662
        %v3664 = vpop.f32.mrf.mxu0
        %3665 = vmatprep.mubr.bf16.mxu0 0
        %3666 = vmatmul.mubr.bf16.gmra.mxu0 %v3511
        %v3667 = vpop.f32.mrf.mxu0
        %v3668 = vadd.f32 0.0, %v3667
        %v3669 = vpop.f32.mrf.mxu0
        %v3670 = vpop.f32.mrf.mxu0
        %v3671 = vadd.f32 0.0, %v3670
        %v3672 = vpop.f32.mrf.mxu0
        %3673 = vdwg.mxu0
        %v3674 = vld [vmem:[#allocation3] sm:$0xff]
        %v3675 = vld [vmem:[#allocation3 + $0x8] sm:$0xff]
        %v3676 = vld [vmem:[#allocation3 + $0x10] sm:$0xff]
        %v3677 = vld [vmem:[#allocation3 + $0x18] sm:$0xff]
        %v3678 = vld [vmem:[#allocation3 + $0x20] sm:$0xff]
        %v3679 = vld [vmem:[#allocation3 + $0x28] sm:$0xff]
        %v3680 = vld [vmem:[#allocation3 + $0x30] sm:$0xff]
        %v3681 = vld [vmem:[#allocation3 + $0x38] sm:$0xff]
        %v3682 = vld [vmem:[#allocation3 + $0x40] sm:$0xff]
        %v3683 = vld [vmem:[#allocation3 + $0x48] sm:$0xff]
        %v3684 = vld [vmem:[#allocation3 + $0x50] sm:$0xff]
        %v3685 = vld [vmem:[#allocation3 + $0x58] sm:$0xff]
        %v3686 = vld [vmem:[#allocation3 + $0x60] sm:$0xff]
        %v3687 = vld [vmem:[#allocation3 + $0x68] sm:$0xff]
        %v3688 = vld [vmem:[#allocation3 + $0x70] sm:$0xff]
        %v3689 = vld [vmem:[#allocation3 + $0x78] sm:$0xff]
        %v3690 = vadd.f32 %v3674, %v3612
        %v3691 = vadd.f32 %v3675, %v3615
        %v3692 = vadd.f32 %v3676, %v3620
        %v3693 = vadd.f32 %v3677, %v3623
        %v3694 = vadd.f32 %v3678, %v3628
        %v3695 = vadd.f32 %v3679, %v3631
        %v3696 = vadd.f32 %v3680, %v3636
        %v3697 = vadd.f32 %v3681, %v3639
        %v3698 = vadd.f32 %v3682, %v3644
        %v3699 = vadd.f32 %v3683, %v3647
        %v3700 = vadd.f32 %v3684, %v3652
        %v3701 = vadd.f32 %v3685, %v3655
        %v3702 = vadd.f32 %v3686, %v3660
        %v3703 = vadd.f32 %v3687, %v3663
        %v3704 = vadd.f32 %v3688, %v3668
        %v3705 = vadd.f32 %v3689, %v3671
        %3706 = vst [vmem:[#allocation3] sm:$0xff] %v3690
        %3707 = vst [vmem:[#allocation3 + $0x8] sm:$0xff] %v3691
        %3708 = vst [vmem:[#allocation3 + $0x10] sm:$0xff] %v3692
        %3709 = vst [vmem:[#allocation3 + $0x18] sm:$0xff] %v3693
        %3710 = vst [vmem:[#allocation3 + $0x20] sm:$0xff] %v3694
        %3711 = vst [vmem:[#allocation3 + $0x28] sm:$0xff] %v3695
        %3712 = vst [vmem:[#allocation3 + $0x30] sm:$0xff] %v3696
        %3713 = vst [vmem:[#allocation3 + $0x38] sm:$0xff] %v3697
        %3714 = vst [vmem:[#allocation3 + $0x40] sm:$0xff] %v3698
        %3715 = vst [vmem:[#allocation3 + $0x48] sm:$0xff] %v3699
        %3716 = vst [vmem:[#allocation3 + $0x50] sm:$0xff] %v3700
        %3717 = vst [vmem:[#allocation3 + $0x58] sm:$0xff] %v3701
        %3718 = vst [vmem:[#allocation3 + $0x60] sm:$0xff] %v3702
        %3719 = vst [vmem:[#allocation3 + $0x68] sm:$0xff] %v3703
        %3720 = vst [vmem:[#allocation3 + $0x70] sm:$0xff] %v3704
        %3721 = vst [vmem:[#allocation3 + $0x78] sm:$0xff] %v3705
        %v3722 = vld [vmem:[%s3487 + $0x1] sm:$0xff]
        %v3723 = vld [vmem:[%s3487 + $0x9] sm:$0xff]
        %v3724 = vld [vmem:[%s3487 + $0x19] sm:$0xff]
        %v3725 = vld [vmem:[%s3487 + $0x21] sm:$0xff]
        %v3726 = vld [vmem:[%s3487 + $0x31] sm:$0xff]
        %v3727 = vld [vmem:[%s3487 + $0x39] sm:$0xff]
        %v3728 = vld [vmem:[%s3487 + $0x49] sm:$0xff]
        %v3729 = vld [vmem:[%s3487 + $0x51] sm:$0xff]
        %v3730 = vld [vmem:[%s3487 + $0x61] sm:$0xff]
        %v3731 = vld [vmem:[%s3487 + $0x69] sm:$0xff]
        %v3732 = vld [vmem:[%s3487 + $0x79] sm:$0xff]
        %v3733 = vld [vmem:[%s3487 + $0x81] sm:$0xff]
        %v3734 = vld [vmem:[%s3487 + $0x91] sm:$0xff]
        %v3735 = vld [vmem:[%s3487 + $0x99] sm:$0xff]
        %v3736 = vld [vmem:[%s3487 + $0xa9] sm:$0xff]
        %v3737 = vld [vmem:[%s3487 + $0xb1] sm:$0xff]
        %v3738 = vpack.c.bf16 %v3723, %v3722
        %v3739 = vpack.c.bf16 %v3725, %v3724
        %v3740 = vpack.c.bf16 %v3727, %v3726
        %v3741 = vpack.c.bf16 %v3729, %v3728
        %v3742 = vpack.c.bf16 %v3731, %v3730
        %v3743 = vpack.c.bf16 %v3733, %v3732
        %v3744 = vpack.c.bf16 %v3735, %v3734
        %v3745 = vpack.c.bf16 %v3737, %v3736
        %s3746 = scalar_lea.vmem %s3, 256
        %v3747 = vld [vmem:[%s3746] sm:$0xf]
        %v3748 = vld [vmem:[%s3746 + $0x4] sm:$0xf]
        %v3749 = vld [vmem:[%s3746 + $0x8] sm:$0xf]
        %v3750 = vld [vmem:[%s3746 + $0xc] sm:$0xf]
        %v3751 = vld [vmem:[%s3746 + $0x10] sm:$0xf]
        %v3752 = vld [vmem:[%s3746 + $0x14] sm:$0xf]
        %v3753 = vld [vmem:[%s3746 + $0x18] sm:$0xf]
        %v3754 = vld [vmem:[%s3746 + $0x1c] sm:$0xf]
        %v3755 = vld [vmem:[%s3746 + $0x20] sm:$0xf]
        %v3756 = vld [vmem:[%s3746 + $0x24] sm:$0xf]
        %v3757 = vld [vmem:[%s3746 + $0x28] sm:$0xf]
        %v3758 = vld [vmem:[%s3746 + $0x2c] sm:$0xf]
        %v3759 = vld [vmem:[%s3746 + $0x30] sm:$0xf]
        %v3760 = vld [vmem:[%s3746 + $0x34] sm:$0xf]
        %v3761 = vld [vmem:[%s3746 + $0x38] sm:$0xf]
        %v3762 = vld [vmem:[%s3746 + $0x3c] sm:$0xf]
        %v3779 = vunpack.c.l.b16 %v3747
        %v3780 = vunpack.c.l.b16 %v3748
        %v3781 = vunpack.c.l.b16 %v3749
        %v3782 = vunpack.c.l.b16 %v3750
        %v3783 = vunpack.c.l.b16 %v3751
        %v3784 = vunpack.c.l.b16 %v3752
        %v3785 = vunpack.c.l.b16 %v3753
        %v3786 = vunpack.c.l.b16 %v3754
        %v3787 = vunpack.c.l.b16 %v3755
        %v3788 = vunpack.c.l.b16 %v3756
        %v3789 = vunpack.c.l.b16 %v3757
        %v3790 = vunpack.c.l.b16 %v3758
        %v3791 = vunpack.c.l.b16 %v3759
        %v3792 = vunpack.c.l.b16 %v3760
        %v3793 = vunpack.c.l.b16 %v3761
        %v3794 = vunpack.c.l.b16 %v3762
        %v3795 = vpack.c.b16 %v3780, %v3779
        %v3796 = vpack.c.b16 %v3782, %v3781
        %v3797 = vpack.c.b16 %v3784, %v3783
        %v3798 = vpack.c.b16 %v3786, %v3785
        %v3799 = vpack.c.b16 %v3788, %v3787
        %v3800 = vpack.c.b16 %v3790, %v3789
        %v3801 = vpack.c.b16 %v3792, %v3791
        %v3802 = vpack.c.b16 %v3794, %v3793
        %3811 = vmatprep.subr.bf16.mxu0 0
        %3812 = vmatpush1.bf16.msra.mxu0 %v3802
        %3813 = vmatprep.subr.bf16.mxu0 0
        %3814 = vmatpush1.bf16.msra.mxu0 %v3801
        %3815 = vmatprep.subr.bf16.mxu0 0
        %3816 = vmatpush1.bf16.msra.mxu0 %v3800
        %3817 = vmatprep.subr.bf16.mxu0 0
        %3818 = vmatpush1.bf16.msra.mxu0 %v3799
        %3819 = vmatprep.subr.bf16.mxu0 0
        %3820 = vmatpush1.bf16.msra.mxu0 %v3798
        %3821 = vmatprep.subr.bf16.mxu0 0
        %3822 = vmatpush1.bf16.msra.mxu0 %v3797
        %3823 = vmatprep.subr.bf16.mxu0 0
        %3824 = vmatpush1.bf16.msra.mxu0 %v3796
        %3825 = vmatprep.subr.bf16.mxu0 0
        %3826 = vmatpush1.bf16.msra.mxu0 %v3795
        %3827 = vmatprep.subr.bf16.mxu0 0
        %3828 = vmatpush2.bf16.msra.mxu0 0
        %3829 = vmatprep.subr.bf16.mxu0 0
        %3830 = vmatpush2.bf16.msra.mxu0 0
        %3831 = vmatprep.subr.bf16.mxu0 0
        %3832 = vmatpush2.bf16.msra.mxu0 0
        %3833 = vmatprep.subr.bf16.mxu0 0
        %3834 = vmatpush2.bf16.msra.mxu0 0
        %3835 = vmatprep.subr.bf16.mxu0 0
        %3836 = vmatpush2.bf16.msra.mxu0 0
        %3837 = vmatprep.subr.bf16.mxu0 0
        %3838 = vmatpush2.bf16.msra.mxu0 0
        %3839 = vmatprep.subr.bf16.mxu0 0
        %3840 = vmatpush2.bf16.msra.mxu0 0
        %3841 = vmatprep.subr.bf16.mxu0 0
        %3842 = vmatpush2.bf16.msra.mxu0 0
        %3843 = vmatprep.mubr.bf16.mxu0 0
        %3844 = vmatmul.mubr.bf16.gmra.mxu0 %v3738
        %v3845 = vpop.f32.mrf.mxu0
        %v3846 = vadd.f32 0.0, %v3845
        %v3847 = vpop.f32.mrf.mxu0
        %v3848 = vpop.f32.mrf.mxu0
        %v3849 = vadd.f32 0.0, %v3848
        %v3850 = vpop.f32.mrf.mxu0
        %3851 = vmatprep.mubr.bf16.mxu0 0
        %3852 = vmatmul.mubr.bf16.gmra.mxu0 %v3739
        %v3853 = vpop.f32.mrf.mxu0
        %v3854 = vadd.f32 0.0, %v3853
        %v3855 = vpop.f32.mrf.mxu0
        %v3856 = vpop.f32.mrf.mxu0
        %v3857 = vadd.f32 0.0, %v3856
        %v3858 = vpop.f32.mrf.mxu0
        %3859 = vmatprep.mubr.bf16.mxu0 0
        %3860 = vmatmul.mubr.bf16.gmra.mxu0 %v3740
        %v3861 = vpop.f32.mrf.mxu0
        %v3862 = vadd.f32 0.0, %v3861
        %v3863 = vpop.f32.mrf.mxu0
        %v3864 = vpop.f32.mrf.mxu0
        %v3865 = vadd.f32 0.0, %v3864
        %v3866 = vpop.f32.mrf.mxu0
        %3867 = vmatprep.mubr.bf16.mxu0 0
        %3868 = vmatmul.mubr.bf16.gmra.mxu0 %v3741
        %v3869 = vpop.f32.mrf.mxu0
        %v3870 = vadd.f32 0.0, %v3869
        %v3871 = vpop.f32.mrf.mxu0
        %v3872 = vpop.f32.mrf.mxu0
        %v3873 = vadd.f32 0.0, %v3872
        %v3874 = vpop.f32.mrf.mxu0
        %3875 = vmatprep.mubr.bf16.mxu0 0
        %3876 = vmatmul.mubr.bf16.gmra.mxu0 %v3742
        %v3877 = vpop.f32.mrf.mxu0
        %v3878 = vadd.f32 0.0, %v3877
        %v3879 = vpop.f32.mrf.mxu0
        %v3880 = vpop.f32.mrf.mxu0
        %v3881 = vadd.f32 0.0, %v3880
        %v3882 = vpop.f32.mrf.mxu0
        %3883 = vmatprep.mubr.bf16.mxu0 0
        %3884 = vmatmul.mubr.bf16.gmra.mxu0 %v3743
        %v3885 = vpop.f32.mrf.mxu0
        %v3886 = vadd.f32 0.0, %v3885
        %v3887 = vpop.f32.mrf.mxu0
        %v3888 = vpop.f32.mrf.mxu0
        %v3889 = vadd.f32 0.0, %v3888
        %v3890 = vpop.f32.mrf.mxu0
        %3891 = vmatprep.mubr.bf16.mxu0 0
        %3892 = vmatmul.mubr.bf16.gmra.mxu0 %v3744
        %v3893 = vpop.f32.mrf.mxu0
        %v3894 = vadd.f32 0.0, %v3893
        %v3895 = vpop.f32.mrf.mxu0
        %v3896 = vpop.f32.mrf.mxu0
        %v3897 = vadd.f32 0.0, %v3896
        %v3898 = vpop.f32.mrf.mxu0
        %3899 = vmatprep.mubr.bf16.mxu0 0
        %3900 = vmatmul.mubr.bf16.gmra.mxu0 %v3745
        %v3901 = vpop.f32.mrf.mxu0
        %v3902 = vadd.f32 0.0, %v3901
        %v3903 = vpop.f32.mrf.mxu0
        %v3904 = vpop.f32.mrf.mxu0
        %v3905 = vadd.f32 0.0, %v3904
        %v3906 = vpop.f32.mrf.mxu0
        %3907 = vdwg.mxu0
        %v3908 = vld [vmem:[#allocation3] sm:$0xff]
        %v3909 = vld [vmem:[#allocation3 + $0x8] sm:$0xff]
        %v3910 = vld [vmem:[#allocation3 + $0x10] sm:$0xff]
        %v3911 = vld [vmem:[#allocation3 + $0x18] sm:$0xff]
        %v3912 = vld [vmem:[#allocation3 + $0x20] sm:$0xff]
        %v3913 = vld [vmem:[#allocation3 + $0x28] sm:$0xff]
        %v3914 = vld [vmem:[#allocation3 + $0x30] sm:$0xff]
        %v3915 = vld [vmem:[#allocation3 + $0x38] sm:$0xff]
        %v3916 = vld [vmem:[#allocation3 + $0x40] sm:$0xff]
        %v3917 = vld [vmem:[#allocation3 + $0x48] sm:$0xff]
        %v3918 = vld [vmem:[#allocation3 + $0x50] sm:$0xff]
        %v3919 = vld [vmem:[#allocation3 + $0x58] sm:$0xff]
        %v3920 = vld [vmem:[#allocation3 + $0x60] sm:$0xff]
        %v3921 = vld [vmem:[#allocation3 + $0x68] sm:$0xff]
        %v3922 = vld [vmem:[#allocation3 + $0x70] sm:$0xff]
        %v3923 = vld [vmem:[#allocation3 + $0x78] sm:$0xff]
        %v3924 = vadd.f32 %v3908, %v3846
        %v3925 = vadd.f32 %v3909, %v3849
        %v3926 = vadd.f32 %v3910, %v3854
        %v3927 = vadd.f32 %v3911, %v3857
        %v3928 = vadd.f32 %v3912, %v3862
        %v3929 = vadd.f32 %v3913, %v3865
        %v3930 = vadd.f32 %v3914, %v3870
        %v3931 = vadd.f32 %v3915, %v3873
        %v3932 = vadd.f32 %v3916, %v3878
        %v3933 = vadd.f32 %v3917, %v3881
        %v3934 = vadd.f32 %v3918, %v3886
        %v3935 = vadd.f32 %v3919, %v3889
        %v3936 = vadd.f32 %v3920, %v3894
        %v3937 = vadd.f32 %v3921, %v3897
        %v3938 = vadd.f32 %v3922, %v3902
        %v3939 = vadd.f32 %v3923, %v3905
        %3940 = vst [vmem:[#allocation3] sm:$0xff] %v3924
        %3941 = vst [vmem:[#allocation3 + $0x8] sm:$0xff] %v3925
        %3942 = vst [vmem:[#allocation3 + $0x10] sm:$0xff] %v3926
        %3943 = vst [vmem:[#allocation3 + $0x18] sm:$0xff] %v3927
        %3944 = vst [vmem:[#allocation3 + $0x20] sm:$0xff] %v3928
        %3945 = vst [vmem:[#allocation3 + $0x28] sm:$0xff] %v3929
        %3946 = vst [vmem:[#allocation3 + $0x30] sm:$0xff] %v3930
        %3947 = vst [vmem:[#allocation3 + $0x38] sm:$0xff] %v3931
        %3948 = vst [vmem:[#allocation3 + $0x40] sm:$0xff] %v3932
        %3949 = vst [vmem:[#allocation3 + $0x48] sm:$0xff] %v3933
        %3950 = vst [vmem:[#allocation3 + $0x50] sm:$0xff] %v3934
        %3951 = vst [vmem:[#allocation3 + $0x58] sm:$0xff] %v3935
        %3952 = vst [vmem:[#allocation3 + $0x60] sm:$0xff] %v3936
        %3953 = vst [vmem:[#allocation3 + $0x68] sm:$0xff] %v3937
        %3954 = vst [vmem:[#allocation3 + $0x70] sm:$0xff] %v3938
        %3955 = vst [vmem:[#allocation3 + $0x78] sm:$0xff] %v3939
        %v3956 = vld [vmem:[%s3487 + $0x2] sm:$0xff]
        %v3957 = vld [vmem:[%s3487 + $0xa] sm:$0xff]
        %v3958 = vld [vmem:[%s3487 + $0x1a] sm:$0xff]
        %v3959 = vld [vmem:[%s3487 + $0x22] sm:$0xff]
        %v3960 = vld [vmem:[%s3487 + $0x32] sm:$0xff]
        %v3961 = vld [vmem:[%s3487 + $0x3a] sm:$0xff]
        %v3962 = vld [vmem:[%s3487 + $0x4a] sm:$0xff]
        %v3963 = vld [vmem:[%s3487 + $0x52] sm:$0xff]
        %v3964 = vld [vmem:[%s3487 + $0x62] sm:$0xff]
        %v3965 = vld [vmem:[%s3487 + $0x6a] sm:$0xff]
        %v3966 = vld [vmem:[%s3487 + $0x7a] sm:$0xff]
        %v3967 = vld [vmem:[%s3487 + $0x82] sm:$0xff]
        %v3968 = vld [vmem:[%s3487 + $0x92] sm:$0xff]
        %v3969 = vld [vmem:[%s3487 + $0x9a] sm:$0xff]
        %v3970 = vld [vmem:[%s3487 + $0xaa] sm:$0xff]
        %v3971 = vld [vmem:[%s3487 + $0xb2] sm:$0xff]
        %v3972 = vpack.c.bf16 %v3957, %v3956
        %v3973 = vpack.c.bf16 %v3959, %v3958
        %v3974 = vpack.c.bf16 %v3961, %v3960
        %v3975 = vpack.c.bf16 %v3963, %v3962
        %v3976 = vpack.c.bf16 %v3965, %v3964
        %v3977 = vpack.c.bf16 %v3967, %v3966
        %v3978 = vpack.c.bf16 %v3969, %v3968
        %v3979 = vpack.c.bf16 %v3971, %v3970
        %s3980 = scalar_lea.vmem %s3, 320
        %v3981 = vld [vmem:[%s3980] sm:$0xf]
        %v3982 = vld [vmem:[%s3980 + $0x4] sm:$0xf]
        %v3983 = vld [vmem:[%s3980 + $0x8] sm:$0xf]
        %v3984 = vld [vmem:[%s3980 + $0xc] sm:$0xf]
        %v3985 = vld [vmem:[%s3980 + $0x10] sm:$0xf]
        %v3986 = vld [vmem:[%s3980 + $0x14] sm:$0xf]
        %v3987 = vld [vmem:[%s3980 + $0x18] sm:$0xf]
        %v3988 = vld [vmem:[%s3980 + $0x1c] sm:$0xf]
        %v3989 = vld [vmem:[%s3980 + $0x20] sm:$0xf]
        %v3990 = vld [vmem:[%s3980 + $0x24] sm:$0xf]
        %v3991 = vld [vmem:[%s3980 + $0x28] sm:$0xf]
        %v3992 = vld [vmem:[%s3980 + $0x2c] sm:$0xf]
        %v3993 = vld [vmem:[%s3980 + $0x30] sm:$0xf]
        %v3994 = vld [vmem:[%s3980 + $0x34] sm:$0xf]
        %v3995 = vld [vmem:[%s3980 + $0x38] sm:$0xf]
        %v3996 = vld [vmem:[%s3980 + $0x3c] sm:$0xf]
        %v4013 = vunpack.c.l.b16 %v3981
        %v4014 = vunpack.c.l.b16 %v3982
        %v4015 = vunpack.c.l.b16 %v3983
        %v4016 = vunpack.c.l.b16 %v3984
        %v4017 = vunpack.c.l.b16 %v3985
        %v4018 = vunpack.c.l.b16 %v3986
        %v4019 = vunpack.c.l.b16 %v3987
        %v4020 = vunpack.c.l.b16 %v3988
        %v4021 = vunpack.c.l.b16 %v3989
        %v4022 = vunpack.c.l.b16 %v3990
        %v4023 = vunpack.c.l.b16 %v3991
        %v4024 = vunpack.c.l.b16 %v3992
        %v4025 = vunpack.c.l.b16 %v3993
        %v4026 = vunpack.c.l.b16 %v3994
        %v4027 = vunpack.c.l.b16 %v3995
        %v4028 = vunpack.c.l.b16 %v3996
        %v4029 = vpack.c.b16 %v4014, %v4013
        %v4030 = vpack.c.b16 %v4016, %v4015
        %v4031 = vpack.c.b16 %v4018, %v4017
        %v4032 = vpack.c.b16 %v4020, %v4019
        %v4033 = vpack.c.b16 %v4022, %v4021
        %v4034 = vpack.c.b16 %v4024, %v4023
        %v4035 = vpack.c.b16 %v4026, %v4025
        %v4036 = vpack.c.b16 %v4028, %v4027
        %4045 = vmatprep.subr.bf16.mxu0 0
        %4046 = vmatpush1.bf16.msra.mxu0 %v4036
        %4047 = vmatprep.subr.bf16.mxu0 0
        %4048 = vmatpush1.bf16.msra.mxu0 %v4035
        %4049 = vmatprep.subr.bf16.mxu0 0
        %4050 = vmatpush1.bf16.msra.mxu0 %v4034
        %4051 = vmatprep.subr.bf16.mxu0 0
        %4052 = vmatpush1.bf16.msra.mxu0 %v4033
        %4053 = vmatprep.subr.bf16.mxu0 0
        %4054 = vmatpush1.bf16.msra.mxu0 %v4032
        %4055 = vmatprep.subr.bf16.mxu0 0
        %4056 = vmatpush1.bf16.msra.mxu0 %v4031
        %4057 = vmatprep.subr.bf16.mxu0 0
        %4058 = vmatpush1.bf16.msra.mxu0 %v4030
        %4059 = vmatprep.subr.bf16.mxu0 0
        %4060 = vmatpush1.bf16.msra.mxu0 %v4029
        %4061 = vmatprep.subr.bf16.mxu0 0
        %4062 = vmatpush2.bf16.msra.mxu0 0
        %4063 = vmatprep.subr.bf16.mxu0 0
        %4064 = vmatpush2.bf16.msra.mxu0 0
        %4065 = vmatprep.subr.bf16.mxu0 0
        %4066 = vmatpush2.bf16.msra.mxu0 0
        %4067 = vmatprep.subr.bf16.mxu0 0
        %4068 = vmatpush2.bf16.msra.mxu0 0
        %4069 = vmatprep.subr.bf16.mxu0 0
        %4070 = vmatpush2.bf16.msra.mxu0 0
        %4071 = vmatprep.subr.bf16.mxu0 0
        %4072 = vmatpush2.bf16.msra.mxu0 0
        %4073 = vmatprep.subr.bf16.mxu0 0
        %4074 = vmatpush2.bf16.msra.mxu0 0
        %4075 = vmatprep.subr.bf16.mxu0 0
        %4076 = vmatpush2.bf16.msra.mxu0 0
        %4077 = vmatprep.mubr.bf16.mxu0 0
        %4078 = vmatmul.mubr.bf16.gmra.mxu0 %v3972
        %v4079 = vpop.f32.mrf.mxu0
        %v4080 = vadd.f32 0.0, %v4079
        %v4081 = vpop.f32.mrf.mxu0
        %v4082 = vpop.f32.mrf.mxu0
        %v4083 = vadd.f32 0.0, %v4082
        %v4084 = vpop.f32.mrf.mxu0
        %4085 = vmatprep.mubr.bf16.mxu0 0
        %4086 = vmatmul.mubr.bf16.gmra.mxu0 %v3973
        %v4087 = vpop.f32.mrf.mxu0
        %v4088 = vadd.f32 0.0, %v4087
        %v4089 = vpop.f32.mrf.mxu0
        %v4090 = vpop.f32.mrf.mxu0
        %v4091 = vadd.f32 0.0, %v4090
        %v4092 = vpop.f32.mrf.mxu0
        %4093 = vmatprep.mubr.bf16.mxu0 0
        %4094 = vmatmul.mubr.bf16.gmra.mxu0 %v3974
        %v4095 = vpop.f32.mrf.mxu0
        %v4096 = vadd.f32 0.0, %v4095
        %v4097 = vpop.f32.mrf.mxu0
        %v4098 = vpop.f32.mrf.mxu0
        %v4099 = vadd.f32 0.0, %v4098
        %v4100 = vpop.f32.mrf.mxu0
        %4101 = vmatprep.mubr.bf16.mxu0 0
        %4102 = vmatmul.mubr.bf16.gmra.mxu0 %v3975
        %v4103 = vpop.f32.mrf.mxu0
        %v4104 = vadd.f32 0.0, %v4103
        %v4105 = vpop.f32.mrf.mxu0
        %v4106 = vpop.f32.mrf.mxu0
        %v4107 = vadd.f32 0.0, %v4106
        %v4108 = vpop.f32.mrf.mxu0
        %4109 = vmatprep.mubr.bf16.mxu0 0
        %4110 = vmatmul.mubr.bf16.gmra.mxu0 %v3976
        %v4111 = vpop.f32.mrf.mxu0
        %v4112 = vadd.f32 0.0, %v4111
        %v4113 = vpop.f32.mrf.mxu0
        %v4114 = vpop.f32.mrf.mxu0
        %v4115 = vadd.f32 0.0, %v4114
        %v4116 = vpop.f32.mrf.mxu0
        %4117 = vmatprep.mubr.bf16.mxu0 0
        %4118 = vmatmul.mubr.bf16.gmra.mxu0 %v3977
        %v4119 = vpop.f32.mrf.mxu0
        %v4120 = vadd.f32 0.0, %v4119
        %v4121 = vpop.f32.mrf.mxu0
        %v4122 = vpop.f32.mrf.mxu0
        %v4123 = vadd.f32 0.0, %v4122
        %v4124 = vpop.f32.mrf.mxu0
        %4125 = vmatprep.mubr.bf16.mxu0 0
        %4126 = vmatmul.mubr.bf16.gmra.mxu0 %v3978
        %v4127 = vpop.f32.mrf.mxu0
        %v4128 = vadd.f32 0.0, %v4127
        %v4129 = vpop.f32.mrf.mxu0
        %v4130 = vpop.f32.mrf.mxu0
        %v4131 = vadd.f32 0.0, %v4130
        %v4132 = vpop.f32.mrf.mxu0
        %4133 = vmatprep.mubr.bf16.mxu0 0
        %4134 = vmatmul.mubr.bf16.gmra.mxu0 %v3979
        %v4135 = vpop.f32.mrf.mxu0
        %v4136 = vadd.f32 0.0, %v4135
        %v4137 = vpop.f32.mrf.mxu0
        %v4138 = vpop.f32.mrf.mxu0
        %v4139 = vadd.f32 0.0, %v4138
        %v4140 = vpop.f32.mrf.mxu0
        %4141 = vdwg.mxu0
        %v4142 = vld [vmem:[#allocation3] sm:$0xff]
        %v4143 = vld [vmem:[#allocation3 + $0x8] sm:$0xff]
        %v4144 = vld [vmem:[#allocation3 + $0x10] sm:$0xff]
        %v4145 = vld [vmem:[#allocation3 + $0x18] sm:$0xff]
        %v4146 = vld [vmem:[#allocation3 + $0x20] sm:$0xff]
        %v4147 = vld [vmem:[#allocation3 + $0x28] sm:$0xff]
        %v4148 = vld [vmem:[#allocation3 + $0x30] sm:$0xff]
        %v4149 = vld [vmem:[#allocation3 + $0x38] sm:$0xff]
        %v4150 = vld [vmem:[#allocation3 + $0x40] sm:$0xff]
        %v4151 = vld [vmem:[#allocation3 + $0x48] sm:$0xff]
        %v4152 = vld [vmem:[#allocation3 + $0x50] sm:$0xff]
        %v4153 = vld [vmem:[#allocation3 + $0x58] sm:$0xff]
        %v4154 = vld [vmem:[#allocation3 + $0x60] sm:$0xff]
        %v4155 = vld [vmem:[#allocation3 + $0x68] sm:$0xff]
        %v4156 = vld [vmem:[#allocation3 + $0x70] sm:$0xff]
        %v4157 = vld [vmem:[#allocation3 + $0x78] sm:$0xff]
        %v4158 = vadd.f32 %v4142, %v4080
        %v4159 = vadd.f32 %v4143, %v4083
        %v4160 = vadd.f32 %v4144, %v4088
        %v4161 = vadd.f32 %v4145, %v4091
        %v4162 = vadd.f32 %v4146, %v4096
        %v4163 = vadd.f32 %v4147, %v4099
        %v4164 = vadd.f32 %v4148, %v4104
        %v4165 = vadd.f32 %v4149, %v4107
        %v4166 = vadd.f32 %v4150, %v4112
        %v4167 = vadd.f32 %v4151, %v4115
        %v4168 = vadd.f32 %v4152, %v4120
        %v4169 = vadd.f32 %v4153, %v4123
        %v4170 = vadd.f32 %v4154, %v4128
        %v4171 = vadd.f32 %v4155, %v4131
        %v4172 = vadd.f32 %v4156, %v4136
        %v4173 = vadd.f32 %v4157, %v4139
        %4174 = vst [vmem:[#allocation3] sm:$0xff] %v4158
        %4175 = vst [vmem:[#allocation3 + $0x8] sm:$0xff] %v4159
        %4176 = vst [vmem:[#allocation3 + $0x10] sm:$0xff] %v4160
        %4177 = vst [vmem:[#allocation3 + $0x18] sm:$0xff] %v4161
        %4178 = vst [vmem:[#allocation3 + $0x20] sm:$0xff] %v4162
        %4179 = vst [vmem:[#allocation3 + $0x28] sm:$0xff] %v4163
        %4180 = vst [vmem:[#allocation3 + $0x30] sm:$0xff] %v4164
        %4181 = vst [vmem:[#allocation3 + $0x38] sm:$0xff] %v4165
        %4182 = vst [vmem:[#allocation3 + $0x40] sm:$0xff] %v4166
        %4183 = vst [vmem:[#allocation3 + $0x48] sm:$0xff] %v4167
        %4184 = vst [vmem:[#allocation3 + $0x50] sm:$0xff] %v4168
        %4185 = vst [vmem:[#allocation3 + $0x58] sm:$0xff] %v4169
        %4186 = vst [vmem:[#allocation3 + $0x60] sm:$0xff] %v4170
        %4187 = vst [vmem:[#allocation3 + $0x68] sm:$0xff] %v4171
        %4188 = vst [vmem:[#allocation3 + $0x70] sm:$0xff] %v4172
        %4189 = vst [vmem:[#allocation3 + $0x78] sm:$0xff] %v4173
        %s4190 = scalar_lea.vmem [#allocation4], 48
        %v4191 = vld [vmem:[%s4190] sm:$0xff]
        %v4192 = vld [vmem:[%s4190 + $0x8] sm:$0xff]
        %v4193 = vld [vmem:[%s4190 + $0x18] sm:$0xff]
        %v4194 = vld [vmem:[%s4190 + $0x20] sm:$0xff]
        %v4195 = vld [vmem:[%s4190 + $0x30] sm:$0xff]
        %v4196 = vld [vmem:[%s4190 + $0x38] sm:$0xff]
        %v4197 = vld [vmem:[%s4190 + $0x48] sm:$0xff]
        %v4198 = vld [vmem:[%s4190 + $0x50] sm:$0xff]
        %v4199 = vld [vmem:[%s4190 + $0x60] sm:$0xff]
        %v4200 = vld [vmem:[%s4190 + $0x68] sm:$0xff]
        %v4201 = vld [vmem:[%s4190 + $0x78] sm:$0xff]
        %v4202 = vld [vmem:[%s4190 + $0x80] sm:$0xff]
        %v4203 = vld [vmem:[%s4190 + $0x90] sm:$0xff]
        %v4204 = vld [vmem:[%s4190 + $0x98] sm:$0xff]
        %v4205 = vld [vmem:[%s4190 + $0xa8] sm:$0xff]
        %v4206 = vld [vmem:[%s4190 + $0xb0] sm:$0xff]
        %v4207 = vpack.c.bf16 %v4192, %v4191
        %v4208 = vpack.c.bf16 %v4194, %v4193
        %v4209 = vpack.c.bf16 %v4196, %v4195
        %v4210 = vpack.c.bf16 %v4198, %v4197
        %v4211 = vpack.c.bf16 %v4200, %v4199
        %v4212 = vpack.c.bf16 %v4202, %v4201
        %v4213 = vpack.c.bf16 %v4204, %v4203
        %v4214 = vpack.c.bf16 %v4206, %v4205
        %s4215 = scalar_lea.vmem %s3, 384
        %v4216 = vld [vmem:[%s4215] sm:$0xf]
        %v4217 = vld [vmem:[%s4215 + $0x4] sm:$0xf]
        %v4218 = vld [vmem:[%s4215 + $0x8] sm:$0xf]
        %v4219 = vld [vmem:[%s4215 + $0xc] sm:$0xf]
        %v4220 = vld [vmem:[%s4215 + $0x10] sm:$0xf]
        %v4221 = vld [vmem:[%s4215 + $0x14] sm:$0xf]
        %v4222 = vld [vmem:[%s4215 + $0x18] sm:$0xf]
        %v4223 = vld [vmem:[%s4215 + $0x1c] sm:$0xf]
        %v4224 = vld [vmem:[%s4215 + $0x20] sm:$0xf]
        %v4225 = vld [vmem:[%s4215 + $0x24] sm:$0xf]
        %v4226 = vld [vmem:[%s4215 + $0x28] sm:$0xf]
        %v4227 = vld [vmem:[%s4215 + $0x2c] sm:$0xf]
        %v4228 = vld [vmem:[%s4215 + $0x30] sm:$0xf]
        %v4229 = vld [vmem:[%s4215 + $0x34] sm:$0xf]
        %v4230 = vld [vmem:[%s4215 + $0x38] sm:$0xf]
        %v4231 = vld [vmem:[%s4215 + $0x3c] sm:$0xf]
        %v4248 = vunpack.c.l.b16 %v4216
        %v4249 = vunpack.c.l.b16 %v4217
        %v4250 = vunpack.c.l.b16 %v4218
        %v4251 = vunpack.c.l.b16 %v4219
        %v4252 = vunpack.c.l.b16 %v4220
        %v4253 = vunpack.c.l.b16 %v4221
        %v4254 = vunpack.c.l.b16 %v4222
        %v4255 = vunpack.c.l.b16 %v4223
        %v4256 = vunpack.c.l.b16 %v4224
        %v4257 = vunpack.c.l.b16 %v4225
        %v4258 = vunpack.c.l.b16 %v4226
        %v4259 = vunpack.c.l.b16 %v4227
        %v4260 = vunpack.c.l.b16 %v4228
        %v4261 = vunpack.c.l.b16 %v4229
        %v4262 = vunpack.c.l.b16 %v4230
        %v4263 = vunpack.c.l.b16 %v4231
        %v4264 = vpack.c.b16 %v4249, %v4248
        %v4265 = vpack.c.b16 %v4251, %v4250
        %v4266 = vpack.c.b16 %v4253, %v4252
        %v4267 = vpack.c.b16 %v4255, %v4254
        %v4268 = vpack.c.b16 %v4257, %v4256
        %v4269 = vpack.c.b16 %v4259, %v4258
        %v4270 = vpack.c.b16 %v4261, %v4260
        %v4271 = vpack.c.b16 %v4263, %v4262
        %4280 = vmatprep.subr.bf16.mxu0 0
        %4281 = vmatpush1.bf16.msra.mxu0 %v4271
        %4282 = vmatprep.subr.bf16.mxu0 0
        %4283 = vmatpush1.bf16.msra.mxu0 %v4270
        %4284 = vmatprep.subr.bf16.mxu0 0
        %4285 = vmatpush1.bf16.msra.mxu0 %v4269
        %4286 = vmatprep.subr.bf16.mxu0 0
        %4287 = vmatpush1.bf16.msra.mxu0 %v4268
        %4288 = vmatprep.subr.bf16.mxu0 0
        %4289 = vmatpush1.bf16.msra.mxu0 %v4267
        %4290 = vmatprep.subr.bf16.mxu0 0
        %4291 = vmatpush1.bf16.msra.mxu0 %v4266
        %4292 = vmatprep.subr.bf16.mxu0 0
        %4293 = vmatpush1.bf16.msra.mxu0 %v4265
        %4294 = vmatprep.subr.bf16.mxu0 0
        %4295 = vmatpush1.bf16.msra.mxu0 %v4264
        %4296 = vmatprep.subr.bf16.mxu0 0
        %4297 = vmatpush2.bf16.msra.mxu0 0
        %4298 = vmatprep.subr.bf16.mxu0 0
        %4299 = vmatpush2.bf16.msra.mxu0 0
        %4300 = vmatprep.subr.bf16.mxu0 0
        %4301 = vmatpush2.bf16.msra.mxu0 0
        %4302 = vmatprep.subr.bf16.mxu0 0
        %4303 = vmatpush2.bf16.msra.mxu0 0
        %4304 = vmatprep.subr.bf16.mxu0 0
        %4305 = vmatpush2.bf16.msra.mxu0 0
        %4306 = vmatprep.subr.bf16.mxu0 0
        %4307 = vmatpush2.bf16.msra.mxu0 0
        %4308 = vmatprep.subr.bf16.mxu0 0
        %4309 = vmatpush2.bf16.msra.mxu0 0
        %4310 = vmatprep.subr.bf16.mxu0 0
        %4311 = vmatpush2.bf16.msra.mxu0 0
        %4312 = vmatprep.mubr.bf16.mxu0 0
        %4313 = vmatmul.mubr.bf16.gmra.mxu0 %v4207
        %v4314 = vpop.f32.mrf.mxu0
        %v4315 = vadd.f32 0.0, %v4314
        %v4316 = vpop.f32.mrf.mxu0
        %v4317 = vpop.f32.mrf.mxu0
        %v4318 = vadd.f32 0.0, %v4317
        %v4319 = vpop.f32.mrf.mxu0
        %4320 = vmatprep.mubr.bf16.mxu0 0
        %4321 = vmatmul.mubr.bf16.gmra.mxu0 %v4208
        %v4322 = vpop.f32.mrf.mxu0
        %v4323 = vadd.f32 0.0, %v4322
        %v4324 = vpop.f32.mrf.mxu0
        %v4325 = vpop.f32.mrf.mxu0
        %v4326 = vadd.f32 0.0, %v4325
        %v4327 = vpop.f32.mrf.mxu0
        %4328 = vmatprep.mubr.bf16.mxu0 0
        %4329 = vmatmul.mubr.bf16.gmra.mxu0 %v4209
        %v4330 = vpop.f32.mrf.mxu0
        %v4331 = vadd.f32 0.0, %v4330
        %v4332 = vpop.f32.mrf.mxu0
        %v4333 = vpop.f32.mrf.mxu0
        %v4334 = vadd.f32 0.0, %v4333
        %v4335 = vpop.f32.mrf.mxu0
        %4336 = vmatprep.mubr.bf16.mxu0 0
        %4337 = vmatmul.mubr.bf16.gmra.mxu0 %v4210
        %v4338 = vpop.f32.mrf.mxu0
        %v4339 = vadd.f32 0.0, %v4338
        %v4340 = vpop.f32.mrf.mxu0
        %v4341 = vpop.f32.mrf.mxu0
        %v4342 = vadd.f32 0.0, %v4341
        %v4343 = vpop.f32.mrf.mxu0
        %4344 = vmatprep.mubr.bf16.mxu0 0
        %4345 = vmatmul.mubr.bf16.gmra.mxu0 %v4211
        %v4346 = vpop.f32.mrf.mxu0
        %v4347 = vadd.f32 0.0, %v4346
        %v4348 = vpop.f32.mrf.mxu0
        %v4349 = vpop.f32.mrf.mxu0
        %v4350 = vadd.f32 0.0, %v4349
        %v4351 = vpop.f32.mrf.mxu0
        %4352 = vmatprep.mubr.bf16.mxu0 0
        %4353 = vmatmul.mubr.bf16.gmra.mxu0 %v4212
        %v4354 = vpop.f32.mrf.mxu0
        %v4355 = vadd.f32 0.0, %v4354
        %v4356 = vpop.f32.mrf.mxu0
        %v4357 = vpop.f32.mrf.mxu0
        %v4358 = vadd.f32 0.0, %v4357
        %v4359 = vpop.f32.mrf.mxu0
        %4360 = vmatprep.mubr.bf16.mxu0 0
        %4361 = vmatmul.mubr.bf16.gmra.mxu0 %v4213
        %v4362 = vpop.f32.mrf.mxu0
        %v4363 = vadd.f32 0.0, %v4362
        %v4364 = vpop.f32.mrf.mxu0
        %v4365 = vpop.f32.mrf.mxu0
        %v4366 = vadd.f32 0.0, %v4365
        %v4367 = vpop.f32.mrf.mxu0
        %4368 = vmatprep.mubr.bf16.mxu0 0
        %4369 = vmatmul.mubr.bf16.gmra.mxu0 %v4214
        %v4370 = vpop.f32.mrf.mxu0
        %v4371 = vadd.f32 0.0, %v4370
        %v4372 = vpop.f32.mrf.mxu0
        %v4373 = vpop.f32.mrf.mxu0
        %v4374 = vadd.f32 0.0, %v4373
        %v4375 = vpop.f32.mrf.mxu0
        %4376 = vdwg.mxu0
        %v4377 = vld [vmem:[#allocation3] sm:$0xff]
        %v4378 = vld [vmem:[#allocation3 + $0x8] sm:$0xff]
        %v4379 = vld [vmem:[#allocation3 + $0x10] sm:$0xff]
        %v4380 = vld [vmem:[#allocation3 + $0x18] sm:$0xff]
        %v4381 = vld [vmem:[#allocation3 + $0x20] sm:$0xff]
        %v4382 = vld [vmem:[#allocation3 + $0x28] sm:$0xff]
        %v4383 = vld [vmem:[#allocation3 + $0x30] sm:$0xff]
        %v4384 = vld [vmem:[#allocation3 + $0x38] sm:$0xff]
        %v4385 = vld [vmem:[#allocation3 + $0x40] sm:$0xff]
        %v4386 = vld [vmem:[#allocation3 + $0x48] sm:$0xff]
        %v4387 = vld [vmem:[#allocation3 + $0x50] sm:$0xff]
        %v4388 = vld [vmem:[#allocation3 + $0x58] sm:$0xff]
        %v4389 = vld [vmem:[#allocation3 + $0x60] sm:$0xff]
        %v4390 = vld [vmem:[#allocation3 + $0x68] sm:$0xff]
        %v4391 = vld [vmem:[#allocation3 + $0x70] sm:$0xff]
        %v4392 = vld [vmem:[#allocation3 + $0x78] sm:$0xff]
        %v4393 = vadd.f32 %v4377, %v4315
        %v4394 = vadd.f32 %v4378, %v4318
        %v4395 = vadd.f32 %v4379, %v4323
        %v4396 = vadd.f32 %v4380, %v4326
        %v4397 = vadd.f32 %v4381, %v4331
        %v4398 = vadd.f32 %v4382, %v4334
        %v4399 = vadd.f32 %v4383, %v4339
        %v4400 = vadd.f32 %v4384, %v4342
        %v4401 = vadd.f32 %v4385, %v4347
        %v4402 = vadd.f32 %v4386, %v4350
        %v4403 = vadd.f32 %v4387, %v4355
        %v4404 = vadd.f32 %v4388, %v4358
        %v4405 = vadd.f32 %v4389, %v4363
        %v4406 = vadd.f32 %v4390, %v4366
        %v4407 = vadd.f32 %v4391, %v4371
        %v4408 = vadd.f32 %v4392, %v4374
        %4409 = vst [vmem:[#allocation3] sm:$0xff] %v4393
        %4410 = vst [vmem:[#allocation3 + $0x8] sm:$0xff] %v4394
        %4411 = vst [vmem:[#allocation3 + $0x10] sm:$0xff] %v4395
        %4412 = vst [vmem:[#allocation3 + $0x18] sm:$0xff] %v4396
        %4413 = vst [vmem:[#allocation3 + $0x20] sm:$0xff] %v4397
        %4414 = vst [vmem:[#allocation3 + $0x28] sm:$0xff] %v4398
        %4415 = vst [vmem:[#allocation3 + $0x30] sm:$0xff] %v4399
        %4416 = vst [vmem:[#allocation3 + $0x38] sm:$0xff] %v4400
        %4417 = vst [vmem:[#allocation3 + $0x40] sm:$0xff] %v4401
        %4418 = vst [vmem:[#allocation3 + $0x48] sm:$0xff] %v4402
        %4419 = vst [vmem:[#allocation3 + $0x50] sm:$0xff] %v4403
        %4420 = vst [vmem:[#allocation3 + $0x58] sm:$0xff] %v4404
        %4421 = vst [vmem:[#allocation3 + $0x60] sm:$0xff] %v4405
        %4422 = vst [vmem:[#allocation3 + $0x68] sm:$0xff] %v4406
        %4423 = vst [vmem:[#allocation3 + $0x70] sm:$0xff] %v4407
        %4424 = vst [vmem:[#allocation3 + $0x78] sm:$0xff] %v4408
        %v4425 = vld [vmem:[%s4190 + $0x1] sm:$0xff]
        %v4426 = vld [vmem:[%s4190 + $0x9] sm:$0xff]
        %v4427 = vld [vmem:[%s4190 + $0x19] sm:$0xff]
        %v4428 = vld [vmem:[%s4190 + $0x21] sm:$0xff]
        %v4429 = vld [vmem:[%s4190 + $0x31] sm:$0xff]
        %v4430 = vld [vmem:[%s4190 + $0x39] sm:$0xff]
        %v4431 = vld [vmem:[%s4190 + $0x49] sm:$0xff]
        %v4432 = vld [vmem:[%s4190 + $0x51] sm:$0xff]
        %v4433 = vld [vmem:[%s4190 + $0x61] sm:$0xff]
        %v4434 = vld [vmem:[%s4190 + $0x69] sm:$0xff]
        %v4435 = vld [vmem:[%s4190 + $0x79] sm:$0xff]
        %v4436 = vld [vmem:[%s4190 + $0x81] sm:$0xff]
        %v4437 = vld [vmem:[%s4190 + $0x91] sm:$0xff]
        %v4438 = vld [vmem:[%s4190 + $0x99] sm:$0xff]
        %v4439 = vld [vmem:[%s4190 + $0xa9] sm:$0xff]
        %v4440 = vld [vmem:[%s4190 + $0xb1] sm:$0xff]
        %v4441 = vpack.c.bf16 %v4426, %v4425
        %v4442 = vpack.c.bf16 %v4428, %v4427
        %v4443 = vpack.c.bf16 %v4430, %v4429
        %v4444 = vpack.c.bf16 %v4432, %v4431
        %v4445 = vpack.c.bf16 %v4434, %v4433
        %v4446 = vpack.c.bf16 %v4436, %v4435
        %v4447 = vpack.c.bf16 %v4438, %v4437
        %v4448 = vpack.c.bf16 %v4440, %v4439
        %s4449 = scalar_lea.vmem %s3, 448
        %v4450 = vld [vmem:[%s4449] sm:$0xf]
        %v4451 = vld [vmem:[%s4449 + $0x4] sm:$0xf]
        %v4452 = vld [vmem:[%s4449 + $0x8] sm:$0xf]
        %v4453 = vld [vmem:[%s4449 + $0xc] sm:$0xf]
        %v4454 = vld [vmem:[%s4449 + $0x10] sm:$0xf]
        %v4455 = vld [vmem:[%s4449 + $0x14] sm:$0xf]
        %v4456 = vld [vmem:[%s4449 + $0x18] sm:$0xf]
        %v4457 = vld [vmem:[%s4449 + $0x1c] sm:$0xf]
        %v4458 = vld [vmem:[%s4449 + $0x20] sm:$0xf]
        %v4459 = vld [vmem:[%s4449 + $0x24] sm:$0xf]
        %v4460 = vld [vmem:[%s4449 + $0x28] sm:$0xf]
        %v4461 = vld [vmem:[%s4449 + $0x2c] sm:$0xf]
        %v4462 = vld [vmem:[%s4449 + $0x30] sm:$0xf]
        %v4463 = vld [vmem:[%s4449 + $0x34] sm:$0xf]
        %v4464 = vld [vmem:[%s4449 + $0x38] sm:$0xf]
        %v4465 = vld [vmem:[%s4449 + $0x3c] sm:$0xf]
        %v4482 = vunpack.c.l.b16 %v4450
        %v4483 = vunpack.c.l.b16 %v4451
        %v4484 = vunpack.c.l.b16 %v4452
        %v4485 = vunpack.c.l.b16 %v4453
        %v4486 = vunpack.c.l.b16 %v4454
        %v4487 = vunpack.c.l.b16 %v4455
        %v4488 = vunpack.c.l.b16 %v4456
        %v4489 = vunpack.c.l.b16 %v4457
        %v4490 = vunpack.c.l.b16 %v4458
        %v4491 = vunpack.c.l.b16 %v4459
        %v4492 = vunpack.c.l.b16 %v4460
        %v4493 = vunpack.c.l.b16 %v4461
        %v4494 = vunpack.c.l.b16 %v4462
        %v4495 = vunpack.c.l.b16 %v4463
        %v4496 = vunpack.c.l.b16 %v4464
        %v4497 = vunpack.c.l.b16 %v4465
        %v4498 = vpack.c.b16 %v4483, %v4482
        %v4499 = vpack.c.b16 %v4485, %v4484
        %v4500 = vpack.c.b16 %v4487, %v4486
        %v4501 = vpack.c.b16 %v4489, %v4488
        %v4502 = vpack.c.b16 %v4491, %v4490
        %v4503 = vpack.c.b16 %v4493, %v4492
        %v4504 = vpack.c.b16 %v4495, %v4494
        %v4505 = vpack.c.b16 %v4497, %v4496
        %4514 = vmatprep.subr.bf16.mxu0 0
        %4515 = vmatpush1.bf16.msra.mxu0 %v4505
        %4516 = vmatprep.subr.bf16.mxu0 0
        %4517 = vmatpush1.bf16.msra.mxu0 %v4504
        %4518 = vmatprep.subr.bf16.mxu0 0
        %4519 = vmatpush1.bf16.msra.mxu0 %v4503
        %4520 = vmatprep.subr.bf16.mxu0 0
        %4521 = vmatpush1.bf16.msra.mxu0 %v4502
        %4522 = vmatprep.subr.bf16.mxu0 0
        %4523 = vmatpush1.bf16.msra.mxu0 %v4501
        %4524 = vmatprep.subr.bf16.mxu0 0
        %4525 = vmatpush1.bf16.msra.mxu0 %v4500
        %4526 = vmatprep.subr.bf16.mxu0 0
        %4527 = vmatpush1.bf16.msra.mxu0 %v4499
        %4528 = vmatprep.subr.bf16.mxu0 0
        %4529 = vmatpush1.bf16.msra.mxu0 %v4498
        %4530 = vmatprep.subr.bf16.mxu0 0
        %4531 = vmatpush2.bf16.msra.mxu0 0
        %4532 = vmatprep.subr.bf16.mxu0 0
        %4533 = vmatpush2.bf16.msra.mxu0 0
        %4534 = vmatprep.subr.bf16.mxu0 0
        %4535 = vmatpush2.bf16.msra.mxu0 0
        %4536 = vmatprep.subr.bf16.mxu0 0
        %4537 = vmatpush2.bf16.msra.mxu0 0
        %4538 = vmatprep.subr.bf16.mxu0 0
        %4539 = vmatpush2.bf16.msra.mxu0 0
        %4540 = vmatprep.subr.bf16.mxu0 0
        %4541 = vmatpush2.bf16.msra.mxu0 0
        %4542 = vmatprep.subr.bf16.mxu0 0
        %4543 = vmatpush2.bf16.msra.mxu0 0
        %4544 = vmatprep.subr.bf16.mxu0 0
        %4545 = vmatpush2.bf16.msra.mxu0 0
        %4546 = vmatprep.mubr.bf16.mxu0 0
        %4547 = vmatmul.mubr.bf16.gmra.mxu0 %v4441
        %v4548 = vpop.f32.mrf.mxu0
        %v4549 = vadd.f32 0.0, %v4548
        %v4550 = vpop.f32.mrf.mxu0
        %v4551 = vpop.f32.mrf.mxu0
        %v4552 = vadd.f32 0.0, %v4551
        %v4553 = vpop.f32.mrf.mxu0
        %4554 = vmatprep.mubr.bf16.mxu0 0
        %4555 = vmatmul.mubr.bf16.gmra.mxu0 %v4442
        %v4556 = vpop.f32.mrf.mxu0
        %v4557 = vadd.f32 0.0, %v4556
        %v4558 = vpop.f32.mrf.mxu0
        %v4559 = vpop.f32.mrf.mxu0
        %v4560 = vadd.f32 0.0, %v4559
        %v4561 = vpop.f32.mrf.mxu0
        %4562 = vmatprep.mubr.bf16.mxu0 0
        %4563 = vmatmul.mubr.bf16.gmra.mxu0 %v4443
        %v4564 = vpop.f32.mrf.mxu0
        %v4565 = vadd.f32 0.0, %v4564
        %v4566 = vpop.f32.mrf.mxu0
        %v4567 = vpop.f32.mrf.mxu0
        %v4568 = vadd.f32 0.0, %v4567
        %v4569 = vpop.f32.mrf.mxu0
        %4570 = vmatprep.mubr.bf16.mxu0 0
        %4571 = vmatmul.mubr.bf16.gmra.mxu0 %v4444
        %v4572 = vpop.f32.mrf.mxu0
        %v4573 = vadd.f32 0.0, %v4572
        %v4574 = vpop.f32.mrf.mxu0
        %v4575 = vpop.f32.mrf.mxu0
        %v4576 = vadd.f32 0.0, %v4575
        %v4577 = vpop.f32.mrf.mxu0
        %4578 = vmatprep.mubr.bf16.mxu0 0
        %4579 = vmatmul.mubr.bf16.gmra.mxu0 %v4445
        %v4580 = vpop.f32.mrf.mxu0
        %v4581 = vadd.f32 0.0, %v4580
        %v4582 = vpop.f32.mrf.mxu0
        %v4583 = vpop.f32.mrf.mxu0
        %v4584 = vadd.f32 0.0, %v4583
        %v4585 = vpop.f32.mrf.mxu0
        %4586 = vmatprep.mubr.bf16.mxu0 0
        %4587 = vmatmul.mubr.bf16.gmra.mxu0 %v4446
        %v4588 = vpop.f32.mrf.mxu0
        %v4589 = vadd.f32 0.0, %v4588
        %v4590 = vpop.f32.mrf.mxu0
        %v4591 = vpop.f32.mrf.mxu0
        %v4592 = vadd.f32 0.0, %v4591
        %v4593 = vpop.f32.mrf.mxu0
        %4594 = vmatprep.mubr.bf16.mxu0 0
        %4595 = vmatmul.mubr.bf16.gmra.mxu0 %v4447
        %v4596 = vpop.f32.mrf.mxu0
        %v4597 = vadd.f32 0.0, %v4596
        %v4598 = vpop.f32.mrf.mxu0
        %v4599 = vpop.f32.mrf.mxu0
        %v4600 = vadd.f32 0.0, %v4599
        %v4601 = vpop.f32.mrf.mxu0
        %4602 = vmatprep.mubr.bf16.mxu0 0
        %4603 = vmatmul.mubr.bf16.gmra.mxu0 %v4448
        %v4604 = vpop.f32.mrf.mxu0
        %v4605 = vadd.f32 0.0, %v4604
        %v4606 = vpop.f32.mrf.mxu0
        %v4607 = vpop.f32.mrf.mxu0
        %v4608 = vadd.f32 0.0, %v4607
        %v4609 = vpop.f32.mrf.mxu0
        %4610 = vdwg.mxu0
        %v4611 = vld [vmem:[#allocation3] sm:$0xff]
        %v4612 = vld [vmem:[#allocation3 + $0x8] sm:$0xff]
        %v4613 = vld [vmem:[#allocation3 + $0x10] sm:$0xff]
        %v4614 = vld [vmem:[#allocation3 + $0x18] sm:$0xff]
        %v4615 = vld [vmem:[#allocation3 + $0x20] sm:$0xff]
        %v4616 = vld [vmem:[#allocation3 + $0x28] sm:$0xff]
        %v4617 = vld [vmem:[#allocation3 + $0x30] sm:$0xff]
        %v4618 = vld [vmem:[#allocation3 + $0x38] sm:$0xff]
        %v4619 = vld [vmem:[#allocation3 + $0x40] sm:$0xff]
        %v4620 = vld [vmem:[#allocation3 + $0x48] sm:$0xff]
        %v4621 = vld [vmem:[#allocation3 + $0x50] sm:$0xff]
        %v4622 = vld [vmem:[#allocation3 + $0x58] sm:$0xff]
        %v4623 = vld [vmem:[#allocation3 + $0x60] sm:$0xff]
        %v4624 = vld [vmem:[#allocation3 + $0x68] sm:$0xff]
        %v4625 = vld [vmem:[#allocation3 + $0x70] sm:$0xff]
        %v4626 = vld [vmem:[#allocation3 + $0x78] sm:$0xff]
        %v4627 = vadd.f32 %v4611, %v4549
        %v4628 = vadd.f32 %v4612, %v4552
        %v4629 = vadd.f32 %v4613, %v4557
        %v4630 = vadd.f32 %v4614, %v4560
        %v4631 = vadd.f32 %v4615, %v4565
        %v4632 = vadd.f32 %v4616, %v4568
        %v4633 = vadd.f32 %v4617, %v4573
        %v4634 = vadd.f32 %v4618, %v4576
        %v4635 = vadd.f32 %v4619, %v4581
        %v4636 = vadd.f32 %v4620, %v4584
        %v4637 = vadd.f32 %v4621, %v4589
        %v4638 = vadd.f32 %v4622, %v4592
        %v4639 = vadd.f32 %v4623, %v4597
        %v4640 = vadd.f32 %v4624, %v4600
        %v4641 = vadd.f32 %v4625, %v4605
        %v4642 = vadd.f32 %v4626, %v4608
        %4643 = vst [vmem:[#allocation3] sm:$0xff] %v4627
        %4644 = vst [vmem:[#allocation3 + $0x8] sm:$0xff] %v4628
        %4645 = vst [vmem:[#allocation3 + $0x10] sm:$0xff] %v4629
        %4646 = vst [vmem:[#allocation3 + $0x18] sm:$0xff] %v4630
        %4647 = vst [vmem:[#allocation3 + $0x20] sm:$0xff] %v4631
        %4648 = vst [vmem:[#allocation3 + $0x28] sm:$0xff] %v4632
        %4649 = vst [vmem:[#allocation3 + $0x30] sm:$0xff] %v4633
        %4650 = vst [vmem:[#allocation3 + $0x38] sm:$0xff] %v4634
        %4651 = vst [vmem:[#allocation3 + $0x40] sm:$0xff] %v4635
        %4652 = vst [vmem:[#allocation3 + $0x48] sm:$0xff] %v4636
        %4653 = vst [vmem:[#allocation3 + $0x50] sm:$0xff] %v4637
        %4654 = vst [vmem:[#allocation3 + $0x58] sm:$0xff] %v4638
        %4655 = vst [vmem:[#allocation3 + $0x60] sm:$0xff] %v4639
        %4656 = vst [vmem:[#allocation3 + $0x68] sm:$0xff] %v4640
        %4657 = vst [vmem:[#allocation3 + $0x70] sm:$0xff] %v4641
        %4658 = vst [vmem:[#allocation3 + $0x78] sm:$0xff] %v4642
        %v4659 = vld [vmem:[%s4190 + $0x2] sm:$0xff]
        %v4660 = vld [vmem:[%s4190 + $0xa] sm:$0xff]
        %v4661 = vld [vmem:[%s4190 + $0x1a] sm:$0xff]
        %v4662 = vld [vmem:[%s4190 + $0x22] sm:$0xff]
        %v4663 = vld [vmem:[%s4190 + $0x32] sm:$0xff]
        %v4664 = vld [vmem:[%s4190 + $0x3a] sm:$0xff]
        %v4665 = vld [vmem:[%s4190 + $0x4a] sm:$0xff]
        %v4666 = vld [vmem:[%s4190 + $0x52] sm:$0xff]
        %v4667 = vld [vmem:[%s4190 + $0x62] sm:$0xff]
        %v4668 = vld [vmem:[%s4190 + $0x6a] sm:$0xff]
        %v4669 = vld [vmem:[%s4190 + $0x7a] sm:$0xff]
        %v4670 = vld [vmem:[%s4190 + $0x82] sm:$0xff]
        %v4671 = vld [vmem:[%s4190 + $0x92] sm:$0xff]
        %v4672 = vld [vmem:[%s4190 + $0x9a] sm:$0xff]
        %v4673 = vld [vmem:[%s4190 + $0xaa] sm:$0xff]
        %v4674 = vld [vmem:[%s4190 + $0xb2] sm:$0xff]
        %v4675 = vpack.c.bf16 %v4660, %v4659
        %v4676 = vpack.c.bf16 %v4662, %v4661
        %v4677 = vpack.c.bf16 %v4664, %v4663
        %v4678 = vpack.c.bf16 %v4666, %v4665
        %v4679 = vpack.c.bf16 %v4668, %v4667
        %v4680 = vpack.c.bf16 %v4670, %v4669
        %v4681 = vpack.c.bf16 %v4672, %v4671
        %v4682 = vpack.c.bf16 %v4674, %v4673
        %s4683 = scalar_lea.vmem %s3, 512
        %v4684 = vld [vmem:[%s4683] sm:$0xf]
        %v4685 = vld [vmem:[%s4683 + $0x4] sm:$0xf]
        %v4686 = vld [vmem:[%s4683 + $0x8] sm:$0xf]
        %v4687 = vld [vmem:[%s4683 + $0xc] sm:$0xf]
        %v4688 = vld [vmem:[%s4683 + $0x10] sm:$0xf]
        %v4689 = vld [vmem:[%s4683 + $0x14] sm:$0xf]
        %v4690 = vld [vmem:[%s4683 + $0x18] sm:$0xf]
        %v4691 = vld [vmem:[%s4683 + $0x1c] sm:$0xf]
        %v4692 = vld [vmem:[%s4683 + $0x20] sm:$0xf]
        %v4693 = vld [vmem:[%s4683 + $0x24] sm:$0xf]
        %v4694 = vld [vmem:[%s4683 + $0x28] sm:$0xf]
        %v4695 = vld [vmem:[%s4683 + $0x2c] sm:$0xf]
        %v4696 = vld [vmem:[%s4683 + $0x30] sm:$0xf]
        %v4697 = vld [vmem:[%s4683 + $0x34] sm:$0xf]
        %v4698 = vld [vmem:[%s4683 + $0x38] sm:$0xf]
        %v4699 = vld [vmem:[%s4683 + $0x3c] sm:$0xf]
        %v4716 = vunpack.c.l.b16 %v4684
        %v4717 = vunpack.c.l.b16 %v4685
        %v4718 = vunpack.c.l.b16 %v4686
        %v4719 = vunpack.c.l.b16 %v4687
        %v4720 = vunpack.c.l.b16 %v4688
        %v4721 = vunpack.c.l.b16 %v4689
        %v4722 = vunpack.c.l.b16 %v4690
        %v4723 = vunpack.c.l.b16 %v4691
        %v4724 = vunpack.c.l.b16 %v4692
        %v4725 = vunpack.c.l.b16 %v4693
        %v4726 = vunpack.c.l.b16 %v4694
        %v4727 = vunpack.c.l.b16 %v4695
        %v4728 = vunpack.c.l.b16 %v4696
        %v4729 = vunpack.c.l.b16 %v4697
        %v4730 = vunpack.c.l.b16 %v4698
        %v4731 = vunpack.c.l.b16 %v4699
        %v4732 = vpack.c.b16 %v4717, %v4716
        %v4733 = vpack.c.b16 %v4719, %v4718
        %v4734 = vpack.c.b16 %v4721, %v4720
        %v4735 = vpack.c.b16 %v4723, %v4722
        %v4736 = vpack.c.b16 %v4725, %v4724
        %v4737 = vpack.c.b16 %v4727, %v4726
        %v4738 = vpack.c.b16 %v4729, %v4728
        %v4739 = vpack.c.b16 %v4731, %v4730
        %4748 = vmatprep.subr.bf16.mxu0 0
        %4749 = vmatpush1.bf16.msra.mxu0 %v4739
        %4750 = vmatprep.subr.bf16.mxu0 0
        %4751 = vmatpush1.bf16.msra.mxu0 %v4738
        %4752 = vmatprep.subr.bf16.mxu0 0
        %4753 = vmatpush1.bf16.msra.mxu0 %v4737
        %4754 = vmatprep.subr.bf16.mxu0 0
        %4755 = vmatpush1.bf16.msra.mxu0 %v4736
        %4756 = vmatprep.subr.bf16.mxu0 0
        %4757 = vmatpush1.bf16.msra.mxu0 %v4735
        %4758 = vmatprep.subr.bf16.mxu0 0
        %4759 = vmatpush1.bf16.msra.mxu0 %v4734
        %4760 = vmatprep.subr.bf16.mxu0 0
        %4761 = vmatpush1.bf16.msra.mxu0 %v4733
        %4762 = vmatprep.subr.bf16.mxu0 0
        %4763 = vmatpush1.bf16.msra.mxu0 %v4732
        %4764 = vmatprep.subr.bf16.mxu0 0
        %4765 = vmatpush2.bf16.msra.mxu0 0
        %4766 = vmatprep.subr.bf16.mxu0 0
        %4767 = vmatpush2.bf16.msra.mxu0 0
        %4768 = vmatprep.subr.bf16.mxu0 0
        %4769 = vmatpush2.bf16.msra.mxu0 0
        %4770 = vmatprep.subr.bf16.mxu0 0
        %4771 = vmatpush2.bf16.msra.mxu0 0
        %4772 = vmatprep.subr.bf16.mxu0 0
        %4773 = vmatpush2.bf16.msra.mxu0 0
        %4774 = vmatprep.subr.bf16.mxu0 0
        %4775 = vmatpush2.bf16.msra.mxu0 0
        %4776 = vmatprep.subr.bf16.mxu0 0
        %4777 = vmatpush2.bf16.msra.mxu0 0
        %4778 = vmatprep.subr.bf16.mxu0 0
        %4779 = vmatpush2.bf16.msra.mxu0 0
        %4780 = vmatprep.mubr.bf16.mxu0 0
        %4781 = vmatmul.mubr.bf16.gmra.mxu0 %v4675
        %v4782 = vpop.f32.mrf.mxu0
        %v4783 = vadd.f32 0.0, %v4782
        %v4784 = vpop.f32.mrf.mxu0
        %v4785 = vpop.f32.mrf.mxu0
        %v4786 = vadd.f32 0.0, %v4785
        %v4787 = vpop.f32.mrf.mxu0
        %4788 = vmatprep.mubr.bf16.mxu0 0
        %4789 = vmatmul.mubr.bf16.gmra.mxu0 %v4676
        %v4790 = vpop.f32.mrf.mxu0
        %v4791 = vadd.f32 0.0, %v4790
        %v4792 = vpop.f32.mrf.mxu0
        %v4793 = vpop.f32.mrf.mxu0
        %v4794 = vadd.f32 0.0, %v4793
        %v4795 = vpop.f32.mrf.mxu0
        %4796 = vmatprep.mubr.bf16.mxu0 0
        %4797 = vmatmul.mubr.bf16.gmra.mxu0 %v4677
        %v4798 = vpop.f32.mrf.mxu0
        %v4799 = vadd.f32 0.0, %v4798
        %v4800 = vpop.f32.mrf.mxu0
        %v4801 = vpop.f32.mrf.mxu0
        %v4802 = vadd.f32 0.0, %v4801
        %v4803 = vpop.f32.mrf.mxu0
        %4804 = vmatprep.mubr.bf16.mxu0 0
        %4805 = vmatmul.mubr.bf16.gmra.mxu0 %v4678
        %v4806 = vpop.f32.mrf.mxu0
        %v4807 = vadd.f32 0.0, %v4806
        %v4808 = vpop.f32.mrf.mxu0
        %v4809 = vpop.f32.mrf.mxu0
        %v4810 = vadd.f32 0.0, %v4809
        %v4811 = vpop.f32.mrf.mxu0
        %4812 = vmatprep.mubr.bf16.mxu0 0
        %4813 = vmatmul.mubr.bf16.gmra.mxu0 %v4679
        %v4814 = vpop.f32.mrf.mxu0
        %v4815 = vadd.f32 0.0, %v4814
        %v4816 = vpop.f32.mrf.mxu0
        %v4817 = vpop.f32.mrf.mxu0
        %v4818 = vadd.f32 0.0, %v4817
        %v4819 = vpop.f32.mrf.mxu0
        %4820 = vmatprep.mubr.bf16.mxu0 0
        %4821 = vmatmul.mubr.bf16.gmra.mxu0 %v4680
        %v4822 = vpop.f32.mrf.mxu0
        %v4823 = vadd.f32 0.0, %v4822
        %v4824 = vpop.f32.mrf.mxu0
        %v4825 = vpop.f32.mrf.mxu0
        %v4826 = vadd.f32 0.0, %v4825
        %v4827 = vpop.f32.mrf.mxu0
        %4828 = vmatprep.mubr.bf16.mxu0 0
        %4829 = vmatmul.mubr.bf16.gmra.mxu0 %v4681
        %v4830 = vpop.f32.mrf.mxu0
        %v4831 = vadd.f32 0.0, %v4830
        %v4832 = vpop.f32.mrf.mxu0
        %v4833 = vpop.f32.mrf.mxu0
        %v4834 = vadd.f32 0.0, %v4833
        %v4835 = vpop.f32.mrf.mxu0
        %4836 = vmatprep.mubr.bf16.mxu0 0
        %4837 = vmatmul.mubr.bf16.gmra.mxu0 %v4682
        %v4838 = vpop.f32.mrf.mxu0
        %v4839 = vadd.f32 0.0, %v4838
        %v4840 = vpop.f32.mrf.mxu0
        %v4841 = vpop.f32.mrf.mxu0
        %v4842 = vadd.f32 0.0, %v4841
        %v4843 = vpop.f32.mrf.mxu0
        %4844 = vdwg.mxu0
        %v4845 = vld [vmem:[#allocation3] sm:$0xff]
        %v4846 = vld [vmem:[#allocation3 + $0x8] sm:$0xff]
        %v4847 = vld [vmem:[#allocation3 + $0x10] sm:$0xff]
        %v4848 = vld [vmem:[#allocation3 + $0x18] sm:$0xff]
        %v4849 = vld [vmem:[#allocation3 + $0x20] sm:$0xff]
        %v4850 = vld [vmem:[#allocation3 + $0x28] sm:$0xff]
        %v4851 = vld [vmem:[#allocation3 + $0x30] sm:$0xff]
        %v4852 = vld [vmem:[#allocation3 + $0x38] sm:$0xff]
        %v4853 = vld [vmem:[#allocation3 + $0x40] sm:$0xff]
        %v4854 = vld [vmem:[#allocation3 + $0x48] sm:$0xff]
        %v4855 = vld [vmem:[#allocation3 + $0x50] sm:$0xff]
        %v4856 = vld [vmem:[#allocation3 + $0x58] sm:$0xff]
        %v4857 = vld [vmem:[#allocation3 + $0x60] sm:$0xff]
        %v4858 = vld [vmem:[#allocation3 + $0x68] sm:$0xff]
        %v4859 = vld [vmem:[#allocation3 + $0x70] sm:$0xff]
        %v4860 = vld [vmem:[#allocation3 + $0x78] sm:$0xff]
        %v4861 = vadd.f32 %v4845, %v4783
        %v4862 = vadd.f32 %v4846, %v4786
        %v4863 = vadd.f32 %v4847, %v4791
        %v4864 = vadd.f32 %v4848, %v4794
        %v4865 = vadd.f32 %v4849, %v4799
        %v4866 = vadd.f32 %v4850, %v4802
        %v4867 = vadd.f32 %v4851, %v4807
        %v4868 = vadd.f32 %v4852, %v4810
        %v4869 = vadd.f32 %v4853, %v4815
        %v4870 = vadd.f32 %v4854, %v4818
        %v4871 = vadd.f32 %v4855, %v4823
        %v4872 = vadd.f32 %v4856, %v4826
        %v4873 = vadd.f32 %v4857, %v4831
        %v4874 = vadd.f32 %v4858, %v4834
        %v4875 = vadd.f32 %v4859, %v4839
        %v4876 = vadd.f32 %v4860, %v4842
        %4877 = vst [vmem:[#allocation3] sm:$0xff] %v4861
        %4878 = vst [vmem:[#allocation3 + $0x8] sm:$0xff] %v4862
        %4879 = vst [vmem:[#allocation3 + $0x10] sm:$0xff] %v4863
        %4880 = vst [vmem:[#allocation3 + $0x18] sm:$0xff] %v4864
        %4881 = vst [vmem:[#allocation3 + $0x20] sm:$0xff] %v4865
        %4882 = vst [vmem:[#allocation3 + $0x28] sm:$0xff] %v4866
        %4883 = vst [vmem:[#allocation3 + $0x30] sm:$0xff] %v4867
        %4884 = vst [vmem:[#allocation3 + $0x38] sm:$0xff] %v4868
        %4885 = vst [vmem:[#allocation3 + $0x40] sm:$0xff] %v4869
        %4886 = vst [vmem:[#allocation3 + $0x48] sm:$0xff] %v4870
        %4887 = vst [vmem:[#allocation3 + $0x50] sm:$0xff] %v4871
        %4888 = vst [vmem:[#allocation3 + $0x58] sm:$0xff] %v4872
        %4889 = vst [vmem:[#allocation3 + $0x60] sm:$0xff] %v4873
        %4890 = vst [vmem:[#allocation3 + $0x68] sm:$0xff] %v4874
        %4891 = vst [vmem:[#allocation3 + $0x70] sm:$0xff] %v4875
        %4892 = vst [vmem:[#allocation3 + $0x78] sm:$0xff] %v4876
        %v4893 = vld [vmem:[#allocation3] sm:$0xff]
        %v4894 = vld [vmem:[#allocation3 + $0x8] sm:$0xff]
        %v4895 = vld [vmem:[#allocation3 + $0x10] sm:$0xff]
        %v4896 = vld [vmem:[#allocation3 + $0x18] sm:$0xff]
        %v4897 = vld [vmem:[#allocation3 + $0x20] sm:$0xff]
        %v4898 = vld [vmem:[#allocation3 + $0x28] sm:$0xff]
        %v4899 = vld [vmem:[#allocation3 + $0x30] sm:$0xff]
        %v4900 = vld [vmem:[#allocation3 + $0x38] sm:$0xff]
        %v4901 = vld [vmem:[#allocation3 + $0x40] sm:$0xff]
        %v4902 = vld [vmem:[#allocation3 + $0x48] sm:$0xff]
        %v4903 = vld [vmem:[#allocation3 + $0x50] sm:$0xff]
        %v4904 = vld [vmem:[#allocation3 + $0x58] sm:$0xff]
        %v4905 = vld [vmem:[#allocation3 + $0x60] sm:$0xff]
        %v4906 = vld [vmem:[#allocation3 + $0x68] sm:$0xff]
        %v4907 = vld [vmem:[#allocation3 + $0x70] sm:$0xff]
        %v4908 = vld [vmem:[#allocation3 + $0x78] sm:$0xff]
        %v4909 = vld [vmem:[%s4] sm:$0x1]
        %v4910 = vlaneseq
        %v4911 = vshrl.u32 %v4910, 7
        %v4912 = vsub.s32 0, %v4911
        %v4913 = vrot.slane %v4909, %v4912
        %v4914 = vmul.f32 %v4893, %v4913
        %v4915 = vmul.f32 %v4894, %v4913
        %v4916 = vmul.f32 %v4895, %v4913
        %v4917 = vmul.f32 %v4896, %v4913
        %v4918 = vmul.f32 %v4897, %v4913
        %v4919 = vmul.f32 %v4898, %v4913
        %v4920 = vmul.f32 %v4899, %v4913
        %v4921 = vmul.f32 %v4900, %v4913
        %v4922 = vmul.f32 %v4901, %v4913
        %v4923 = vmul.f32 %v4902, %v4913
        %v4924 = vmul.f32 %v4903, %v4913
        %v4925 = vmul.f32 %v4904, %v4913
        %v4926 = vmul.f32 %v4905, %v4913
        %v4927 = vmul.f32 %v4906, %v4913
        %v4928 = vmul.f32 %v4907, %v4913
        %v4929 = vmul.f32 %v4908, %v4913
        %v4930 = vld [vmem:[%s4 + $0x1] sm:$0x1]
        %v4931 = vlaneseq
        %v4932 = vshrl.u32 %v4931, 7
        %v4933 = vsub.s32 0, %v4932
        %v4934 = vrot.slane %v4930, %v4933
        %v4935 = vadd.f32 %v4914, %v4934
        %v4936 = vadd.f32 %v4915, %v4934
        %v4937 = vadd.f32 %v4916, %v4934
        %v4938 = vadd.f32 %v4917, %v4934
        %v4939 = vadd.f32 %v4918, %v4934
        %v4940 = vadd.f32 %v4919, %v4934
        %v4941 = vadd.f32 %v4920, %v4934
        %v4942 = vadd.f32 %v4921, %v4934
        %v4943 = vadd.f32 %v4922, %v4934
        %v4944 = vadd.f32 %v4923, %v4934
        %v4945 = vadd.f32 %v4924, %v4934
        %v4946 = vadd.f32 %v4925, %v4934
        %v4947 = vadd.f32 %v4926, %v4934
        %v4948 = vadd.f32 %v4927, %v4934
        %v4949 = vadd.f32 %v4928, %v4934
        %v4950 = vadd.f32 %v4929, %v4934
        %v4951 = vld [vmem:[%s1868 + $0x1] sm:$0xff]
        %v4952 = vld [vmem:[%s1868 + $0x9] sm:$0xff]
        %v4953 = vld [vmem:[%s1868 + $0x19] sm:$0xff]
        %v4954 = vld [vmem:[%s1868 + $0x21] sm:$0xff]
        %v4955 = vld [vmem:[%s1868 + $0x31] sm:$0xff]
        %v4956 = vld [vmem:[%s1868 + $0x39] sm:$0xff]
        %v4957 = vld [vmem:[%s1868 + $0x49] sm:$0xff]
        %v4958 = vld [vmem:[%s1868 + $0x51] sm:$0xff]
        %v4959 = vld [vmem:[%s1868 + $0x61] sm:$0xff]
        %v4960 = vld [vmem:[%s1868 + $0x69] sm:$0xff]
        %v4961 = vld [vmem:[%s1868 + $0x79] sm:$0xff]
        %v4962 = vld [vmem:[%s1868 + $0x81] sm:$0xff]
        %v4963 = vld [vmem:[%s1868 + $0x91] sm:$0xff]
        %v4964 = vld [vmem:[%s1868 + $0x99] sm:$0xff]
        %v4965 = vld [vmem:[%s1868 + $0xa9] sm:$0xff]
        %v4966 = vld [vmem:[%s1868 + $0xb1] sm:$0xff]
        %v4967 = vpack.c.bf16 %v4952, %v4951
        %v4968 = vpack.c.bf16 %v4954, %v4953
        %v4969 = vpack.c.bf16 %v4956, %v4955
        %v4970 = vpack.c.bf16 %v4958, %v4957
        %v4971 = vpack.c.bf16 %v4960, %v4959
        %v4972 = vpack.c.bf16 %v4962, %v4961
        %v4973 = vpack.c.bf16 %v4964, %v4963
        %v4974 = vpack.c.bf16 %v4966, %v4965
        %v4975 = vld [vmem:[%s5] sm:$0xf]
        %v4976 = vld [vmem:[%s5 + $0x4] sm:$0xf]
        %v4977 = vld [vmem:[%s5 + $0x8] sm:$0xf]
        %v4978 = vld [vmem:[%s5 + $0xc] sm:$0xf]
        %v4979 = vld [vmem:[%s5 + $0x10] sm:$0xf]
        %v4980 = vld [vmem:[%s5 + $0x14] sm:$0xf]
        %v4981 = vld [vmem:[%s5 + $0x18] sm:$0xf]
        %v4982 = vld [vmem:[%s5 + $0x1c] sm:$0xf]
        %v4983 = vld [vmem:[%s5 + $0x20] sm:$0xf]
        %v4984 = vld [vmem:[%s5 + $0x24] sm:$0xf]
        %v4985 = vld [vmem:[%s5 + $0x28] sm:$0xf]
        %v4986 = vld [vmem:[%s5 + $0x2c] sm:$0xf]
        %v4987 = vld [vmem:[%s5 + $0x30] sm:$0xf]
        %v4988 = vld [vmem:[%s5 + $0x34] sm:$0xf]
        %v4989 = vld [vmem:[%s5 + $0x38] sm:$0xf]
        %v4990 = vld [vmem:[%s5 + $0x3c] sm:$0xf]
        %v5007 = vunpack.c.l.b16 %v4975
        %v5008 = vunpack.c.l.b16 %v4976
        %v5009 = vunpack.c.l.b16 %v4977
        %v5010 = vunpack.c.l.b16 %v4978
        %v5011 = vunpack.c.l.b16 %v4979
        %v5012 = vunpack.c.l.b16 %v4980
        %v5013 = vunpack.c.l.b16 %v4981
        %v5014 = vunpack.c.l.b16 %v4982
        %v5015 = vunpack.c.l.b16 %v4983
        %v5016 = vunpack.c.l.b16 %v4984
        %v5017 = vunpack.c.l.b16 %v4985
        %v5018 = vunpack.c.l.b16 %v4986
        %v5019 = vunpack.c.l.b16 %v4987
        %v5020 = vunpack.c.l.b16 %v4988
        %v5021 = vunpack.c.l.b16 %v4989
        %v5022 = vunpack.c.l.b16 %v4990
        %v5023 = vpack.c.b16 %v5008, %v5007
        %v5024 = vpack.c.b16 %v5010, %v5009
        %v5025 = vpack.c.b16 %v5012, %v5011
        %v5026 = vpack.c.b16 %v5014, %v5013
        %v5027 = vpack.c.b16 %v5016, %v5015
        %v5028 = vpack.c.b16 %v5018, %v5017
        %v5029 = vpack.c.b16 %v5020, %v5019
        %v5030 = vpack.c.b16 %v5022, %v5021
        %5039 = vmatprep.subr.bf16.mxu0 0
        %5040 = vmatpush1.bf16.msra.mxu0 %v5030
        %5041 = vmatprep.subr.bf16.mxu0 0
        %5042 = vmatpush1.bf16.msra.mxu0 %v5029
        %5043 = vmatprep.subr.bf16.mxu0 0
        %5044 = vmatpush1.bf16.msra.mxu0 %v5028
        %5045 = vmatprep.subr.bf16.mxu0 0
        %5046 = vmatpush1.bf16.msra.mxu0 %v5027
        %5047 = vmatprep.subr.bf16.mxu0 0
        %5048 = vmatpush1.bf16.msra.mxu0 %v5026
        %5049 = vmatprep.subr.bf16.mxu0 0
        %5050 = vmatpush1.bf16.msra.mxu0 %v5025
        %5051 = vmatprep.subr.bf16.mxu0 0
        %5052 = vmatpush1.bf16.msra.mxu0 %v5024
        %5053 = vmatprep.subr.bf16.mxu0 0
        %5054 = vmatpush1.bf16.msra.mxu0 %v5023
        %5055 = vmatprep.subr.bf16.mxu0 0
        %5056 = vmatpush2.bf16.msra.mxu0 0
        %5057 = vmatprep.subr.bf16.mxu0 0
        %5058 = vmatpush2.bf16.msra.mxu0 0
        %5059 = vmatprep.subr.bf16.mxu0 0
        %5060 = vmatpush2.bf16.msra.mxu0 0
        %5061 = vmatprep.subr.bf16.mxu0 0
        %5062 = vmatpush2.bf16.msra.mxu0 0
        %5063 = vmatprep.subr.bf16.mxu0 0
        %5064 = vmatpush2.bf16.msra.mxu0 0
        %5065 = vmatprep.subr.bf16.mxu0 0
        %5066 = vmatpush2.bf16.msra.mxu0 0
        %5067 = vmatprep.subr.bf16.mxu0 0
        %5068 = vmatpush2.bf16.msra.mxu0 0
        %5069 = vmatprep.subr.bf16.mxu0 0
        %5070 = vmatpush2.bf16.msra.mxu0 0
        %5071 = vmatprep.mubr.bf16.mxu0 0
        %5072 = vmatmul.mubr.bf16.gmra.mxu0 %v4967
        %v5073 = vpop.f32.mrf.mxu0
        %v5074 = vadd.f32 0.0, %v5073
        %v5075 = vpop.f32.mrf.mxu0
        %v5076 = vpop.f32.mrf.mxu0
        %v5077 = vadd.f32 0.0, %v5076
        %v5078 = vpop.f32.mrf.mxu0
        %5079 = vmatprep.mubr.bf16.mxu0 0
        %5080 = vmatmul.mubr.bf16.gmra.mxu0 %v4968
        %v5081 = vpop.f32.mrf.mxu0
        %v5082 = vadd.f32 0.0, %v5081
        %v5083 = vpop.f32.mrf.mxu0
        %v5084 = vpop.f32.mrf.mxu0
        %v5085 = vadd.f32 0.0, %v5084
        %v5086 = vpop.f32.mrf.mxu0
        %5087 = vmatprep.mubr.bf16.mxu0 0
        %5088 = vmatmul.mubr.bf16.gmra.mxu0 %v4969
        %v5089 = vpop.f32.mrf.mxu0
        %v5090 = vadd.f32 0.0, %v5089
        %v5091 = vpop.f32.mrf.mxu0
        %v5092 = vpop.f32.mrf.mxu0
        %v5093 = vadd.f32 0.0, %v5092
        %v5094 = vpop.f32.mrf.mxu0
        %5095 = vmatprep.mubr.bf16.mxu0 0
        %5096 = vmatmul.mubr.bf16.gmra.mxu0 %v4970
        %v5097 = vpop.f32.mrf.mxu0
        %v5098 = vadd.f32 0.0, %v5097
        %v5099 = vpop.f32.mrf.mxu0
        %v5100 = vpop.f32.mrf.mxu0
        %v5101 = vadd.f32 0.0, %v5100
        %v5102 = vpop.f32.mrf.mxu0
        %5103 = vmatprep.mubr.bf16.mxu0 0
        %5104 = vmatmul.mubr.bf16.gmra.mxu0 %v4971
        %v5105 = vpop.f32.mrf.mxu0
        %v5106 = vadd.f32 0.0, %v5105
        %v5107 = vpop.f32.mrf.mxu0
        %v5108 = vpop.f32.mrf.mxu0
        %v5109 = vadd.f32 0.0, %v5108
        %v5110 = vpop.f32.mrf.mxu0
        %5111 = vmatprep.mubr.bf16.mxu0 0
        %5112 = vmatmul.mubr.bf16.gmra.mxu0 %v4972
        %v5113 = vpop.f32.mrf.mxu0
        %v5114 = vadd.f32 0.0, %v5113
        %v5115 = vpop.f32.mrf.mxu0
        %v5116 = vpop.f32.mrf.mxu0
        %v5117 = vadd.f32 0.0, %v5116
        %v5118 = vpop.f32.mrf.mxu0
        %5119 = vmatprep.mubr.bf16.mxu0 0
        %5120 = vmatmul.mubr.bf16.gmra.mxu0 %v4973
        %v5121 = vpop.f32.mrf.mxu0
        %v5122 = vadd.f32 0.0, %v5121
        %v5123 = vpop.f32.mrf.mxu0
        %v5124 = vpop.f32.mrf.mxu0
        %v5125 = vadd.f32 0.0, %v5124
        %v5126 = vpop.f32.mrf.mxu0
        %5127 = vmatprep.mubr.bf16.mxu0 0
        %5128 = vmatmul.mubr.bf16.gmra.mxu0 %v4974
        %v5129 = vpop.f32.mrf.mxu0
        %v5130 = vadd.f32 0.0, %v5129
        %v5131 = vpop.f32.mrf.mxu0
        %v5132 = vpop.f32.mrf.mxu0
        %v5133 = vadd.f32 0.0, %v5132
        %v5134 = vpop.f32.mrf.mxu0
        %5135 = vdwg.mxu0
        %v5136 = vld [vmem:[%s6] sm:$0x1]
        %v5137 = vlaneseq
        %v5138 = vshrl.u32 %v5137, 7
        %v5139 = vsub.s32 0, %v5138
        %v5140 = vrot.slane %v5136, %v5139
        %v5141 = vmul.f32 %v5074, %v5140
        %v5142 = vmul.f32 %v5077, %v5140
        %v5143 = vmul.f32 %v5082, %v5140
        %v5144 = vmul.f32 %v5085, %v5140
        %v5145 = vmul.f32 %v5090, %v5140
        %v5146 = vmul.f32 %v5093, %v5140
        %v5147 = vmul.f32 %v5098, %v5140
        %v5148 = vmul.f32 %v5101, %v5140
        %v5149 = vmul.f32 %v5106, %v5140
        %v5150 = vmul.f32 %v5109, %v5140
        %v5151 = vmul.f32 %v5114, %v5140
        %v5152 = vmul.f32 %v5117, %v5140
        %v5153 = vmul.f32 %v5122, %v5140
        %v5154 = vmul.f32 %v5125, %v5140
        %v5155 = vmul.f32 %v5130, %v5140
        %v5156 = vmul.f32 %v5133, %v5140
        %v5157 = vld [vmem:[%s6 + $0x1] sm:$0x1]
        %v5158 = vlaneseq
        %v5159 = vshrl.u32 %v5158, 7
        %v5160 = vsub.s32 0, %v5159
        %v5161 = vrot.slane %v5157, %v5160
        %v5162 = vadd.f32 %v5141, %v5161
        %v5163 = vadd.f32 %v5142, %v5161
        %v5164 = vadd.f32 %v5143, %v5161
        %v5165 = vadd.f32 %v5144, %v5161
        %v5166 = vadd.f32 %v5145, %v5161
        %v5167 = vadd.f32 %v5146, %v5161
        %v5168 = vadd.f32 %v5147, %v5161
        %v5169 = vadd.f32 %v5148, %v5161
        %v5170 = vadd.f32 %v5149, %v5161
        %v5171 = vadd.f32 %v5150, %v5161
        %v5172 = vadd.f32 %v5151, %v5161
        %v5173 = vadd.f32 %v5152, %v5161
        %v5174 = vadd.f32 %v5153, %v5161
        %v5175 = vadd.f32 %v5154, %v5161
        %v5176 = vadd.f32 %v5155, %v5161
        %v5177 = vadd.f32 %v5156, %v5161
        %v5178 = vadd.f32 %v4935, %v5162
        %v5179 = vadd.f32 %v4936, %v5163
        %v5180 = vadd.f32 %v4937, %v5164
        %v5181 = vadd.f32 %v4938, %v5165
        %v5182 = vadd.f32 %v4939, %v5166
        %v5183 = vadd.f32 %v4940, %v5167
        %v5184 = vadd.f32 %v4941, %v5168
        %v5185 = vadd.f32 %v4942, %v5169
        %v5186 = vadd.f32 %v4943, %v5170
        %v5187 = vadd.f32 %v4944, %v5171
        %v5188 = vadd.f32 %v4945, %v5172
        %v5189 = vadd.f32 %v4946, %v5173
        %v5190 = vadd.f32 %v4947, %v5174
        %v5191 = vadd.f32 %v4948, %v5175
        %v5192 = vadd.f32 %v4949, %v5176
        %v5193 = vadd.f32 %v4950, %v5177
        %v5194 = vmax.f32 %v5178, 0.0
        %v5195 = vmax.f32 %v5179, 0.0
        %v5196 = vmax.f32 %v5180, 0.0
        %v5197 = vmax.f32 %v5181, 0.0
        %v5198 = vmax.f32 %v5182, 0.0
        %v5199 = vmax.f32 %v5183, 0.0
        %v5200 = vmax.f32 %v5184, 0.0
        %v5201 = vmax.f32 %v5185, 0.0
        %v5202 = vmax.f32 %v5186, 0.0
        %v5203 = vmax.f32 %v5187, 0.0
        %v5204 = vmax.f32 %v5188, 0.0
        %v5205 = vmax.f32 %v5189, 0.0
        %v5206 = vmax.f32 %v5190, 0.0
        %v5207 = vmax.f32 %v5191, 0.0
        %v5208 = vmax.f32 %v5192, 0.0
        %v5209 = vmax.f32 %v5193, 0.0
        %5210 = vst [vmem:[%s285] sm:$0xff] %v5194
        %5211 = vst [vmem:[%s285 + $0x8] sm:$0xff] %v5195
        %5212 = vst [vmem:[%s285 + $0x10] sm:$0xff] %v5196
        %5213 = vst [vmem:[%s285 + $0x18] sm:$0xff] %v5197
        %5214 = vst [vmem:[%s285 + $0x20] sm:$0xff] %v5198
        %5215 = vst [vmem:[%s285 + $0x28] sm:$0xff] %v5199
        %5216 = vst [vmem:[%s285 + $0x30] sm:$0xff] %v5200
        %5217 = vst [vmem:[%s285 + $0x38] sm:$0xff] %v5201
        %5218 = vst [vmem:[%s285 + $0x40] sm:$0xff] %v5202
        %5219 = vst [vmem:[%s285 + $0x48] sm:$0xff] %v5203
        %5220 = vst [vmem:[%s285 + $0x50] sm:$0xff] %v5204
        %5221 = vst [vmem:[%s285 + $0x58] sm:$0xff] %v5205
        %5222 = vst [vmem:[%s285 + $0x60] sm:$0xff] %v5206
        %5223 = vst [vmem:[%s285 + $0x68] sm:$0xff] %v5207
        %5224 = vst [vmem:[%s285 + $0x70] sm:$0xff] %v5208
        %5225 = vst [vmem:[%s285 + $0x78] sm:$0xff] %v5209
        %s5226 = sand.u32 %s195, 1
        %s5227 = scalar_lea.sflag [#allocation6], %s5226
        %s5228 = sand.u32 %s195, 1
        %s5229 = smul.addr %s5228, 128
        %s5230 = scalar_lea.vmem [#allocation5], %s5229
        // Predicated region
        $region57: #{tpu_custom_call.1} parent=47 // pred_check
          %p5231 = pneg %p205
        $region58: #{tpu_custom_call.1} parent=47 // pred_check_branch
          %5233 = sbr.rel (%p5231) target = $region60
        $region59: #{tpu_custom_call.1} parent=47 // pred_region
          %s5234 = smul.u32 8, %s26
          %s5236 = ssub.s32 2048, 2048
          %5237 = vsyncadd %s5227, %s5236
          %s5238 = smul.addr %s5234, 2
          %s5239 = smul.addr %s25, 32
          %s5240 = sadd.s32 %s5238, %s5239
          %s5241 = smul.addr %s5240, 128
          %s5242 = scalar_lea.hbm %s7, %s5241
          %s5243 = sshll.u32 %s5230, 4
          %s5244 = int_to_ptr.vmem [resolvable:$true] %s5243
          %5249 = dma.vmem_to_hbm [thread:$0]  %s5244, 2048, %s5242, %s5227, 128, 128, 8
        $region60: #{tpu_custom_call.1} parent=47 // pred_fallthru
          _
      $region48: #{tpu_custom_call.1} parent=5 // pred_fallthru
        _
      %p5250 = scmp.le.s32.totalorder 2, %s16
      // Predicated region
      $region61: #{tpu_custom_call.1} parent=5 // pred_check
        %p5251 = pneg %p5250
      $region62: #{tpu_custom_call.1} parent=5 // pred_check_branch
        %5253 = sbr.rel (%p5251) target = $region64
      $region63: #{tpu_custom_call.1} parent=5 // pred_region
        %s5254 = ssub.s32 %s16, 2
        // Predicated region
        $region65: #{tpu_custom_call.1} parent=63 // pred_check
          %p5255 = pneg %p211
        $region66: #{tpu_custom_call.1} parent=63 // pred_check_branch
          %5257 = sbr.rel (%p5255) target = $region68
        $region67: #{tpu_custom_call.1} parent=63 // pred_region
          %s5258 = sand.u32 %s196, 1
          %s5259 = scalar_lea.sflag [#allocation6], %s5258
          %s5260 = sand.u32 %s196, 1
          %s5261 = smul.addr %s5260, 128
          %s5262 = scalar_lea.vmem [#allocation5], %s5261
          %5263 = dma.done %s5259, 2048
        $region68: #{tpu_custom_call.1} parent=63 // pred_fallthru
          _
      $region64: #{tpu_custom_call.1} parent=5 // pred_fallthru
        _
    $region6: #{tpu_custom_call.1} parent=1 // loop_footer
      %s20 = sadd.s32 1, %s16
    $region7: #{tpu_custom_call.1} parent=1 // loop_footer_branch
      %15 = sbr.rel target = $region3
    $region8: #{tpu_custom_call.1} parent=1 // loop_exit
      _
    %5264 = vsyncpa [#allocation6], 1
    %s5265 = scalar_lea.sflag [#allocation6], 1
    %5266 = vsyncpa %s5265, 1

</llo_original>
